<compile_context>
chip_gen: v6e
topology: v6e:2x2x1
jax: 0.10.0
libtpu: 0.0.40
codegen_flags: <defaults>
</compile_context>

<pallas_src>
import functools

import jax
import jax.numpy as jnp
from jax.experimental import pallas as pl
from jax.experimental.pallas import tpu as pltpu

EPS = 1e-5  # eps of both LayerNorm and InstanceNorm2d


def _round_up(n, m):
    return ((n + m - 1) // m) * m


# ---------------- fused Pallas kernel ----------------

def _ginka_fused_kernel(x_ref, wfc_ref, vec_ref, wbig_ref, o_ref, f_ref, p_ref,
                        *, BCin, Wp, Wout, Hout, Jpad, inv_hw):
    # ---- Stage 1: Linear -> LayerNorm -> ELU in the "wide" replicate-padded layout.
    # bf16 x bf16 MXU matmul, f32 accumulation.
    y = jnp.dot(x_ref[...].astype(jnp.bfloat16), wfc_ref[...],
                preferred_element_type=jnp.float32)            # (BCin, Nw)
    vec = vec_ref[...]                                         # (4, Nw) packed vectors
    b_fc, gamma, beta, mln = vec[0:1, :], vec[1:2, :], vec[2:3, :], vec[3:4, :]
    y = y + b_fc
    # LN stats over the 1024 true pixels only (interior-pixel mask, each counted once).
    mean = jnp.sum(y * mln, axis=-1, keepdims=True) * inv_hw
    msq = jnp.sum((y * y) * mln, axis=-1, keepdims=True) * inv_hw
    var = jnp.maximum(msq - mean * mean, 0.0)                  # one-pass variance
    yn = (y - mean) * jax.lax.rsqrt(var + EPS) * gamma + beta
    # ELU(alpha=1); exp(y)-1 kept (guaranteed Mosaic lowering).
    f_ref[...] = jnp.where(yn > 0, yn, jnp.exp(yn) - 1.0)      # padded activation (wide)

    # ---- Stage 2: im2col (9 lane-shifted, sublane-aligned full-slab copies) + ONE
    # block-diagonal conv matmul covering all batches, then InstanceNorm + ELU.
    offs = tuple(dy * Wp + dx for dy in range(3) for dx in range(3))
    for t, off in enumerate(offs):
        # dest rows are multiples of BCin(=8) -> unmasked full-width stores.
        p_ref[t * BCin:(t + 1) * BCin, :] = f_ref[:, off:off + Jpad]

    z = jnp.dot(wbig_ref[...], p_ref[...],
                preferred_element_type=jnp.float32)            # (B*Cout, Jpad), wide layout

    # Compact wide (row stride Wp) -> dense (row stride Wout) straight into o_ref,
    # so no XLA slice op is needed after the kernel and the final store is lane-dense.
    for h in range(Hout):
        o_ref[:, h * Wout:(h + 1) * Wout] = z[:, h * Wp:h * Wp + Wout]

    # InstanceNorm2d (affine=False -> per (batch, out-channel) = per row) + ELU.
    # Conv bias is omitted on purpose: InstanceNorm cancels it exactly.
    zd = o_ref[...]                                            # (B*Cout, Hout*Wout)
    mean = jnp.sum(zd, axis=-1, keepdims=True) * inv_hw
    msq = jnp.sum(zd * zd, axis=-1, keepdims=True) * inv_hw
    var = jnp.maximum(msq - mean * mean, 0.0)
    zn = (zd - mean) * jax.lax.rsqrt(var + EPS)
    o_ref[...] = jnp.where(zn > 0, zn, jnp.exp(zn) - 1.0)


# ---------------- one-time parameter / layout preparation ----------------

def prepare_params(params, out_size, batch):
    """Pure layout plumbing, done once (weight preprocessing)."""
    Hout, Wout = out_size
    Wp = Wout + 2
    Jpad = _round_up(Hout * Wp, 128)          # padded conv-eval width (lane-dense)
    Nw = _round_up(Jpad + 2 * Wp + 2, 128)    # widened fc width, covers max tap offset

    p = jnp.arange(Nw)
    r, c = p // Wp, p % Wp
    # Each wide column maps to its replicate-padded source pixel of the fc output,
    # so the matmul directly produces a replicate-padded activation image.
    wide_map = jnp.clip(r - 1, 0, Hout - 1) * Wout + jnp.clip(c - 1, 0, Wout - 1)
    mask_ln = (((r >= 1) & (r <= Hout)) &
               ((c >= 1) & (c <= Wout))).astype(jnp.float32)   # each true pixel once

    # Packed (4, Nw) vector bundle: one DMA instead of four.
    vecs = jnp.stack([params["b_fc"][0][wide_map],
                      params["gamma"][0][wide_map],
                      params["beta"][0][wide_map],
                      mask_ln], axis=0).astype(jnp.float32)

    # Block-diagonal conv weight (B*Cout, 9*B*Cin): one matmul for all batches.
    # Conv bias dropped (InstanceNorm2d cancels it).
    w_conv = params["w_conv"]
    Cout, Cin = w_conv.shape[0], w_conv.shape[1]
    w_tc = jnp.transpose(w_conv, (2, 3, 1, 0)).reshape(9, Cin, Cout)   # (tap, cin, cout)
    w_big = jnp.einsum("bd,tcf->bftdc",
                       jnp.eye(batch, dtype=jnp.float32), w_tc)
    w_big = w_big.reshape(batch * Cout, 9 * batch * Cin)

    return {
        "w_fc_wide": params["w_fc"][:, wide_map].astype(jnp.bfloat16),  # (Din, Nw) bf16
        "vecs": vecs,                                                   # (4, Nw) f32
        "w_big": w_big,                                                 # (B*Cout, 9*B*Cin) f32
    }


# ---------------- forward wrapper ----------------

@functools.partial(jax.jit, static_argnums=2)
def ginka_input_forward(x, prep, out_size):
    B, C, H, W = x.shape
    Hout, Wout = out_size
    Wp, HW = Wout + 2, Hout * Wout
    Jpad = _round_up(Hout * Wp, 128)
    Din = H * W
    BCin = B * C
    Nw = prep["w_fc_wide"].shape[1]
    BCout = prep["w_big"].shape[0]

    kernel = functools.partial(_ginka_fused_kernel, BCin=BCin, Wp=Wp, Wout=Wout,
                               Hout=Hout, Jpad=Jpad, inv_hw=1.0 / HW)

    # Whole problem (~1 MB) fits VMEM on v5e/v6e/v7x -> single grid point; the kernel
    # is DMA/launch bound, so no extra grid steps (each would add ~0.35 us overhead).
    out = pl.pallas_call(
        kernel,
        out_shape=jax.ShapeDtypeStruct((BCout, HW), jnp.float32),
        grid=(1,),
        in_specs=[
            pl.BlockSpec((BCin, Din), lambda i: (0, 0)),      # x (f32, cast in-kernel)
            pl.BlockSpec((Din, Nw), lambda i: (0, 0)),        # widened fc weight (bf16)
            pl.BlockSpec((4, Nw), lambda i: (0, 0)),          # packed b/gamma/beta/mask
            pl.BlockSpec((BCout, 9 * BCin), lambda i: (0, 0)),  # block-diag conv weight
        ],
        out_specs=pl.BlockSpec((BCout, HW), lambda i: (0, 0)),
        scratch_shapes=[
            pltpu.VMEM((BCin, Nw), jnp.float32),              # padded activation (wide)
            pltpu.VMEM((9 * BCin, Jpad), jnp.float32),        # batched im2col patches
        ],
        compiler_params=pltpu.CompilerParams(dimension_semantics=("arbitrary",)),
    )(x.reshape(BCin, Din), prep["w_fc_wide"], prep["vecs"], prep["w_big"])

    # Contiguous reshape only (metadata / bitcast) -- no strided slice op anymore.
    return out.reshape(B, BCout // B, Hout, Wout)


# ---------------- pure-JAX reference (f32 throughout, with conv bias) ----------------

def ref_forward(x, params, out_size):
    B, C, H, W = x.shape
    Hout, Wout = out_size
    w_fc, b_fc, gamma, beta = params["w_fc"], params["b_fc"], params["gamma"], params["beta"]
    w_conv, b_conv = params["w_conv"], params["b_conv"]

    y = x.reshape(B * C, H * W) @ w_fc + b_fc[0]
    mean = y.mean(-1, keepdims=True)
    var = ((y - mean) ** 2).mean(-1, keepdims=True)
    y = (y - mean) / jnp.sqrt(var + EPS) * gamma[0] + beta[0]
    y = jnp.where(y > 0, y, jnp.exp(y) - 1.0)

    img = y.reshape(B, C, Hout, Wout)
    img_pad = jnp.pad(img, ((0, 0), (0, 0), (1, 1), (1, 1)), mode="edge")
    conv = jax.lax.conv_general_dilated(
        img_pad, w_conv, window_strides=(1, 1), padding="VALID",
        dimension_numbers=("NCHW", "OIHW", "NCHW"))
    conv = conv + b_conv[None, :, None, None]
    mean = conv.mean((2, 3), keepdims=True)
    var = ((conv - mean) ** 2).mean((2, 3), keepdims=True)
    z = (conv - mean) / jnp.sqrt(var + EPS)
    return jnp.where(z > 0, z, jnp.exp(z) - 1.0)


# ---------------- main ----------------

if __name__ == "__main__":
    # Small shapes consistent with the module: in_size=(13,13), out_size=(32,32).
    B, Cin, Cout = 2, 4, 8
    in_size = (13, 13)
    out_size = (32, 32)
    Din = in_size[0] * in_size[1]
    Dout = out_size[0] * out_size[1]

    key = jax.random.PRNGKey(0)
    k1, k2, k3, k4, k5, k6, k7 = jax.random.split(key, 7)
    params = {
        "w_fc": jax.random.normal(k1, (Din, Dout), jnp.float32) / jnp.sqrt(Din),
        "b_fc": 0.1 * jax.random.normal(k2, (1, Dout), jnp.float32),
        "gamma": 1.0 + 0.1 * jax.random.normal(k3, (1, Dout), jnp.float32),
        "beta": 0.1 * jax.random.normal(k4, (1, Dout), jnp.float32),
        "w_conv": jax.random.normal(k5, (Cout, Cin, 3, 3), jnp.float32) / jnp.sqrt(9 * Cin),
        "b_conv": 0.1 * jax.random.normal(k6, (Cout,), jnp.float32),
    }
    x = jax.random.normal(k7, (B, Cin, in_size[0], in_size[1]), jnp.float32)

    prep = prepare_params(params, out_size, B)   # one-time weight layout preparation
    out = ginka_input_forward(x, prep, out_size)
    out = jax.block_until_ready(out)

    assert out.shape == (B, Cout, out_size[0], out_size[1]), out.shape
    ref = ref_forward(x, params, out_size)
    max_err = float(jnp.max(jnp.abs(out - ref)))
    # bf16 fc-weight quantization vs the f32 reference bounds the error at ~1e-2;
    # both normalizations keep it from amplifying.
    assert max_err < 3e-2, f"max abs error {max_err}"

    print("KERNEL_OK")
</pallas_src>

<mosaic_0001>
module attributes {stable_mosaic.version = 11 : i64} {
  func.func @_ginka_fused_kernel(%arg0: i32, %arg1: memref<8x169xf32, #tpu.memory_space<vmem>>, %arg2: memref<169x1280xbf16, #tpu.memory_space<vmem>>, %arg3: memref<4x1280xf32, #tpu.memory_space<vmem>>, %arg4: memref<16x72xf32, #tpu.memory_space<vmem>>, %arg5: memref<16x1024xf32, #tpu.memory_space<vmem>>, %arg6: memref<8x1280xf32, #tpu.memory_space<vmem>>, %arg7: memref<72x1152xf32, #tpu.memory_space<vmem>>) attributes {dimension_semantics = [#tpu.dimension_semantics<arbitrary>], iteration_bounds = array<i64: 1>, scalar_prefetch = 0 : i64, scratch_operands = 2 : i64, tpu.core_type = #tpu.core_type<tc>, window_params = [{pipeline_mode = #tpu.pipeline_mode<synchronous>, transform_indices = @transform_0, window_bounds = array<i64: 8, 169>}, {pipeline_mode = #tpu.pipeline_mode<synchronous>, transform_indices = @transform_1, window_bounds = array<i64: 169, 1280>}, {pipeline_mode = #tpu.pipeline_mode<synchronous>, transform_indices = @transform_2, window_bounds = array<i64: 4, 1280>}, {pipeline_mode = #tpu.pipeline_mode<synchronous>, transform_indices = @transform_3, window_bounds = array<i64: 16, 72>}, {pipeline_mode = #tpu.pipeline_mode<synchronous>, transform_indices = @transform_4, window_bounds = array<i64: 16, 1024>}]} {
    %c0 = arith.constant 0 : index
    %c0_0 = arith.constant 0 : index
    %0 = vector.load %arg1[%c0, %c0_0] : memref<8x169xf32, #tpu.memory_space<vmem>>, vector<8x169xf32>
    %1 = arith.truncf %0 : vector<8x169xf32> to vector<8x169xbf16>
    %c0_1 = arith.constant 0 : index
    %c0_2 = arith.constant 0 : index
    %2 = vector.load %arg2[%c0_1, %c0_2] : memref<169x1280xbf16, #tpu.memory_space<vmem>>, vector<169x1280xbf16>
    %cst = arith.constant dense<0.000000e+00> : vector<8x1280xf32>
    %3 = tpu.matmul %1, %2, %cst {dimension_numbers = #tpu.dot_dimension_numbers<[1], [0], [0], [1], [0, 0, 1, 1], [], []>} : vector<8x169xbf16>, vector<169x1280xbf16>, vector<8x1280xf32> -> vector<8x1280xf32>
    %c0_3 = arith.constant 0 : index
    %c0_4 = arith.constant 0 : index
    %4 = vector.load %arg3[%c0_3, %c0_4] : memref<4x1280xf32, #tpu.memory_space<vmem>>, vector<4x1280xf32>
    %5 = vector.extract_strided_slice %4 {offsets = [0, 0], sizes = [1, 1280], strides = [1, 1]} : vector<4x1280xf32> to vector<1x1280xf32>
    %6 = vector.extract_strided_slice %4 {offsets = [1, 0], sizes = [1, 1280], strides = [1, 1]} : vector<4x1280xf32> to vector<1x1280xf32>
    %7 = vector.extract_strided_slice %4 {offsets = [2, 0], sizes = [1, 1280], strides = [1, 1]} : vector<4x1280xf32> to vector<1x1280xf32>
    %8 = vector.extract_strided_slice %4 {offsets = [3, 0], sizes = [1, 1280], strides = [1, 1]} : vector<4x1280xf32> to vector<1x1280xf32>
    %9 = vector.broadcast %5 : vector<1x1280xf32> to vector<8x1280xf32>
    %10 = arith.addf %3, %9 : vector<8x1280xf32>
    %11 = vector.broadcast %8 : vector<1x1280xf32> to vector<8x1280xf32>
    %12 = arith.mulf %10, %11 : vector<8x1280xf32>
    %cst_5 = arith.constant dense<0.000000e+00> : vector<8xf32>
    %13 = vector.multi_reduction <add>, %12, %cst_5 [1] : vector<8x1280xf32> to vector<8xf32>
    %14 = vector.shape_cast %13 : vector<8xf32> to vector<8x1xf32>
    %cst_6 = arith.constant 9.765625E-4 : f32
    %15 = vector.broadcast %cst_6 : f32 to vector<8x1xf32>
    %16 = arith.mulf %14, %15 : vector<8x1xf32>
    %17 = arith.mulf %10, %10 : vector<8x1280xf32>
    %18 = vector.broadcast %8 : vector<1x1280xf32> to vector<8x1280xf32>
    %19 = arith.mulf %17, %18 : vector<8x1280xf32>
    %cst_7 = arith.constant dense<0.000000e+00> : vector<8xf32>
    %20 = vector.multi_reduction <add>, %19, %cst_7 [1] : vector<8x1280xf32> to vector<8xf32>
    %21 = vector.shape_cast %20 : vector<8xf32> to vector<8x1xf32>
    %cst_8 = arith.constant 9.765625E-4 : f32
    %22 = vector.broadcast %cst_8 : f32 to vector<8x1xf32>
    %23 = arith.mulf %21, %22 : vector<8x1xf32>
    %24 = arith.mulf %16, %16 : vector<8x1xf32>
    %25 = arith.subf %23, %24 : vector<8x1xf32>
    %cst_9 = arith.constant 0.000000e+00 : f32
    %26 = vector.broadcast %cst_9 : f32 to vector<8x1xf32>
    %27 = arith.maximumf %25, %26 : vector<8x1xf32>
    %28 = vector.broadcast %16 : vector<8x1xf32> to vector<8x1280xf32>
    %29 = arith.subf %10, %28 : vector<8x1280xf32>
    %cst_10 = arith.constant 9.99999974E-6 : f32
    %30 = vector.broadcast %cst_10 : f32 to vector<8x1xf32>
    %31 = arith.addf %27, %30 : vector<8x1xf32>
    %32 = math.rsqrt %31 : vector<8x1xf32>
    %33 = vector.broadcast %32 : vector<8x1xf32> to vector<8x1280xf32>
    %34 = arith.mulf %29, %33 : vector<8x1280xf32>
    %35 = vector.broadcast %6 : vector<1x1280xf32> to vector<8x1280xf32>
    %36 = arith.mulf %34, %35 : vector<8x1280xf32>
    %37 = vector.broadcast %7 : vector<1x1280xf32> to vector<8x1280xf32>
    %38 = arith.addf %36, %37 : vector<8x1280xf32>
    %cst_11 = arith.constant 0.000000e+00 : f32
    %39 = vector.broadcast %cst_11 : f32 to vector<8x1280xf32>
    %40 = arith.cmpf ogt, %38, %39 : vector<8x1280xf32>
    %41 = math.exp %38 : vector<8x1280xf32>
    %cst_12 = arith.constant 1.000000e+00 : f32
    %42 = vector.broadcast %cst_12 : f32 to vector<8x1280xf32>
    %43 = arith.subf %41, %42 : vector<8x1280xf32>
    %44 = arith.select %40, %38, %43 : vector<8x1280xi1>, vector<8x1280xf32>
    %c0_13 = arith.constant 0 : index
    %c0_14 = arith.constant 0 : index
    %45 = vector.load %arg6[%c0_13, %c0_14] : memref<8x1280xf32, #tpu.memory_space<vmem>>, vector<8x1280xf32>
    tpu.vector_store %arg6[%c0_13, %c0_14], %44 {strides = array<i32>} : memref<8x1280xf32, #tpu.memory_space<vmem>>, vector<8x1280xf32>,
    %c0_15 = arith.constant 0 : index
    %c0_16 = arith.constant 0 : index
    %46 = vector.load %arg6[%c0_15, %c0_16] : memref<8x1280xf32, #tpu.memory_space<vmem>>, vector<8x1152xf32>
    %c0_17 = arith.constant 0 : index
    %c0_18 = arith.constant 0 : index
    %47 = vector.load %arg7[%c0_17, %c0_18] : memref<72x1152xf32, #tpu.memory_space<vmem>>, vector<8x1152xf32>
    tpu.vector_store %arg7[%c0_17, %c0_18], %46 {strides = array<i32>} : memref<72x1152xf32, #tpu.memory_space<vmem>>, vector<8x1152xf32>,
    %c0_19 = arith.constant 0 : index
    %c1 = arith.constant 1 : index
    %48 = vector.load %arg6[%c0_19, %c1] : memref<8x1280xf32, #tpu.memory_space<vmem>>, vector<8x1152xf32>
    %c8 = arith.constant 8 : index
    %c0_20 = arith.constant 0 : index
    %49 = vector.load %arg7[%c8, %c0_20] : memref<72x1152xf32, #tpu.memory_space<vmem>>, vector<8x1152xf32>
    tpu.vector_store %arg7[%c8, %c0_20], %48 {strides = array<i32>} : memref<72x1152xf32, #tpu.memory_space<vmem>>, vector<8x1152xf32>,
    %c0_21 = arith.constant 0 : index
    %c2 = arith.constant 2 : index
    %50 = vector.load %arg6[%c0_21, %c2] : memref<8x1280xf32, #tpu.memory_space<vmem>>, vector<8x1152xf32>
    %c16 = arith.constant 16 : index
    %c0_22 = arith.constant 0 : index
    %51 = vector.load %arg7[%c16, %c0_22] : memref<72x1152xf32, #tpu.memory_space<vmem>>, vector<8x1152xf32>
    tpu.vector_store %arg7[%c16, %c0_22], %50 {strides = array<i32>} : memref<72x1152xf32, #tpu.memory_space<vmem>>, vector<8x1152xf32>,
    %c0_23 = arith.constant 0 : index
    %c34 = arith.constant 34 : index
    %52 = vector.load %arg6[%c0_23, %c34] : memref<8x1280xf32, #tpu.memory_space<vmem>>, vector<8x1152xf32>
    %c24 = arith.constant 24 : index
    %c0_24 = arith.constant 0 : index
    %53 = vector.load %arg7[%c24, %c0_24] : memref<72x1152xf32, #tpu.memory_space<vmem>>, vector<8x1152xf32>
    tpu.vector_store %arg7[%c24, %c0_24], %52 {strides = array<i32>} : memref<72x1152xf32, #tpu.memory_space<vmem>>, vector<8x1152xf32>,
    %c0_25 = arith.constant 0 : index
    %c35 = arith.constant 35 : index
    %54 = vector.load %arg6[%c0_25, %c35] : memref<8x1280xf32, #tpu.memory_space<vmem>>, vector<8x1152xf32>
    %c32 = arith.constant 32 : index
    %c0_26 = arith.constant 0 : index
    %55 = vector.load %arg7[%c32, %c0_26] : memref<72x1152xf32, #tpu.memory_space<vmem>>, vector<8x1152xf32>
    tpu.vector_store %arg7[%c32, %c0_26], %54 {strides = array<i32>} : memref<72x1152xf32, #tpu.memory_space<vmem>>, vector<8x1152xf32>,
    %c0_27 = arith.constant 0 : index
    %c36 = arith.constant 36 : index
    %56 = vector.load %arg6[%c0_27, %c36] : memref<8x1280xf32, #tpu.memory_space<vmem>>, vector<8x1152xf32>
    %c40 = arith.constant 40 : index
    %c0_28 = arith.constant 0 : index
    %57 = vector.load %arg7[%c40, %c0_28] : memref<72x1152xf32, #tpu.memory_space<vmem>>, vector<8x1152xf32>
    tpu.vector_store %arg7[%c40, %c0_28], %56 {strides = array<i32>} : memref<72x1152xf32, #tpu.memory_space<vmem>>, vector<8x1152xf32>,
    %c0_29 = arith.constant 0 : index
    %c68 = arith.constant 68 : index
    %58 = vector.load %arg6[%c0_29, %c68] : memref<8x1280xf32, #tpu.memory_space<vmem>>, vector<8x1152xf32>
    %c48 = arith.constant 48 : index
    %c0_30 = arith.constant 0 : index
    %59 = vector.load %arg7[%c48, %c0_30] : memref<72x1152xf32, #tpu.memory_space<vmem>>, vector<8x1152xf32>
    tpu.vector_store %arg7[%c48, %c0_30], %58 {strides = array<i32>} : memref<72x1152xf32, #tpu.memory_space<vmem>>, vector<8x1152xf32>,
    %c0_31 = arith.constant 0 : index
    %c69 = arith.constant 69 : index
    %60 = vector.load %arg6[%c0_31, %c69] : memref<8x1280xf32, #tpu.memory_space<vmem>>, vector<8x1152xf32>
    %c56 = arith.constant 56 : index
    %c0_32 = arith.constant 0 : index
    %61 = vector.load %arg7[%c56, %c0_32] : memref<72x1152xf32, #tpu.memory_space<vmem>>, vector<8x1152xf32>
    tpu.vector_store %arg7[%c56, %c0_32], %60 {strides = array<i32>} : memref<72x1152xf32, #tpu.memory_space<vmem>>, vector<8x1152xf32>,
    %c0_33 = arith.constant 0 : index
    %c70 = arith.constant 70 : index
    %62 = vector.load %arg6[%c0_33, %c70] : memref<8x1280xf32, #tpu.memory_space<vmem>>, vector<8x1152xf32>
    %c64 = arith.constant 64 : index
    %c0_34 = arith.constant 0 : index
    %63 = vector.load %arg7[%c64, %c0_34] : memref<72x1152xf32, #tpu.memory_space<vmem>>, vector<8x1152xf32>
    tpu.vector_store %arg7[%c64, %c0_34], %62 {strides = array<i32>} : memref<72x1152xf32, #tpu.memory_space<vmem>>, vector<8x1152xf32>,
    %c0_35 = arith.constant 0 : index
    %c0_36 = arith.constant 0 : index
    %64 = vector.load %arg4[%c0_35, %c0_36] : memref<16x72xf32, #tpu.memory_space<vmem>>, vector<16x72xf32>
    %c0_37 = arith.constant 0 : index
    %c0_38 = arith.constant 0 : index
    %65 = vector.load %arg7[%c0_37, %c0_38] : memref<72x1152xf32, #tpu.memory_space<vmem>>, vector<72x1152xf32>
    %cst_39 = arith.constant dense<0.000000e+00> : vector<16x1152xf32>
    %66 = tpu.matmul %64, %65, %cst_39 {dimension_numbers = #tpu.dot_dimension_numbers<[1], [0], [0], [1], [0, 0, 1, 1], [], []>} : vector<16x72xf32>, vector<72x1152xf32>, vector<16x1152xf32> -> vector<16x1152xf32>
    %67 = vector.extract_strided_slice %66 {offsets = [0, 0], sizes = [16, 32], strides = [1, 1]} : vector<16x1152xf32> to vector<16x32xf32>
    %c0_40 = arith.constant 0 : index
    %c0_41 = arith.constant 0 : index
    %68 = vector.load %arg5[%c0_40, %c0_41] : memref<16x1024xf32, #tpu.memory_space<vmem>>, vector<16x32xf32>
    tpu.vector_store %arg5[%c0_40, %c0_41], %67 {strides = array<i32>} : memref<16x1024xf32, #tpu.memory_space<vmem>>, vector<16x32xf32>,
    %69 = vector.extract_strided_slice %66 {offsets = [0, 34], sizes = [16, 32], strides = [1, 1]} : vector<16x1152xf32> to vector<16x32xf32>
    %c0_42 = arith.constant 0 : index
    %c32_43 = arith.constant 32 : index
    %70 = vector.load %arg5[%c0_42, %c32_43] : memref<16x1024xf32, #tpu.memory_space<vmem>>, vector<16x32xf32>
    tpu.vector_store %arg5[%c0_42, %c32_43], %69 {strides = array<i32>} : memref<16x1024xf32, #tpu.memory_space<vmem>>, vector<16x32xf32>,
    %71 = vector.extract_strided_slice %66 {offsets = [0, 68], sizes = [16, 32], strides = [1, 1]} : vector<16x1152xf32> to vector<16x32xf32>
    %c0_44 = arith.constant 0 : index
    %c64_45 = arith.constant 64 : index
    %72 = vector.load %arg5[%c0_44, %c64_45] : memref<16x1024xf32, #tpu.memory_space<vmem>>, vector<16x32xf32>
    tpu.vector_store %arg5[%c0_44, %c64_45], %71 {strides = array<i32>} : memref<16x1024xf32, #tpu.memory_space<vmem>>, vector<16x32xf32>,
    %73 = vector.extract_strided_slice %66 {offsets = [0, 102], sizes = [16, 32], strides = [1, 1]} : vector<16x1152xf32> to vector<16x32xf32>
    %c0_46 = arith.constant 0 : index
    %c96 = arith.constant 96 : index
    %74 = vector.load %arg5[%c0_46, %c96] : memref<16x1024xf32, #tpu.memory_space<vmem>>, vector<16x32xf32>
    tpu.vector_store %arg5[%c0_46, %c96], %73 {strides = array<i32>} : memref<16x1024xf32, #tpu.memory_space<vmem>>, vector<16x32xf32>,
    %75 = vector.extract_strided_slice %66 {offsets = [0, 136], sizes = [16, 32], strides = [1, 1]} : vector<16x1152xf32> to vector<16x32xf32>
    %c0_47 = arith.constant 0 : index
    %c128 = arith.constant 128 : index
    %76 = vector.load %arg5[%c0_47, %c128] : memref<16x1024xf32, #tpu.memory_space<vmem>>, vector<16x32xf32>
    tpu.vector_store %arg5[%c0_47, %c128], %75 {strides = array<i32>} : memref<16x1024xf32, #tpu.memory_space<vmem>>, vector<16x32xf32>,
    %77 = vector.extract_strided_slice %66 {offsets = [0, 170], sizes = [16, 32], strides = [1, 1]} : vector<16x1152xf32> to vector<16x32xf32>
    %c0_48 = arith.constant 0 : index
    %c160 = arith.constant 160 : index
    %78 = vector.load %arg5[%c0_48, %c160] : memref<16x1024xf32, #tpu.memory_space<vmem>>, vector<16x32xf32>
    tpu.vector_store %arg5[%c0_48, %c160], %77 {strides = array<i32>} : memref<16x1024xf32, #tpu.memory_space<vmem>>, vector<16x32xf32>,
    %79 = vector.extract_strided_slice %66 {offsets = [0, 204], sizes = [16, 32], strides = [1, 1]} : vector<16x1152xf32> to vector<16x32xf32>
    %c0_49 = arith.constant 0 : index
    %c192 = arith.constant 192 : index
    %80 = vector.load %arg5[%c0_49, %c192] : memref<16x1024xf32, #tpu.memory_space<vmem>>, vector<16x32xf32>
    tpu.vector_store %arg5[%c0_49, %c192], %79 {strides = array<i32>} : memref<16x1024xf32, #tpu.memory_space<vmem>>, vector<16x32xf32>,
    %81 = vector.extract_strided_slice %66 {offsets = [0, 238], sizes = [16, 32], strides = [1, 1]} : vector<16x1152xf32> to vector<16x32xf32>
    %c0_50 = arith.constant 0 : index
    %c224 = arith.constant 224 : index
    %82 = vector.load %arg5[%c0_50, %c224] : memref<16x1024xf32, #tpu.memory_space<vmem>>, vector<16x32xf32>
    tpu.vector_store %arg5[%c0_50, %c224], %81 {strides = array<i32>} : memref<16x1024xf32, #tpu.memory_space<vmem>>, vector<16x32xf32>,
    %83 = vector.extract_strided_slice %66 {offsets = [0, 272], sizes = [16, 32], strides = [1, 1]} : vector<16x1152xf32> to vector<16x32xf32>
    %c0_51 = arith.constant 0 : index
    %c256 = arith.constant 256 : index
    %84 = vector.load %arg5[%c0_51, %c256] : memref<16x1024xf32, #tpu.memory_space<vmem>>, vector<16x32xf32>
    tpu.vector_store %arg5[%c0_51, %c256], %83 {strides = array<i32>} : memref<16x1024xf32, #tpu.memory_space<vmem>>, vector<16x32xf32>,
    %85 = vector.extract_strided_slice %66 {offsets = [0, 306], sizes = [16, 32], strides = [1, 1]} : vector<16x1152xf32> to vector<16x32xf32>
    %c0_52 = arith.constant 0 : index
    %c288 = arith.constant 288 : index
    %86 = vector.load %arg5[%c0_52, %c288] : memref<16x1024xf32, #tpu.memory_space<vmem>>, vector<16x32xf32>
    tpu.vector_store %arg5[%c0_52, %c288], %85 {strides = array<i32>} : memref<16x1024xf32, #tpu.memory_space<vmem>>, vector<16x32xf32>,
    %87 = vector.extract_strided_slice %66 {offsets = [0, 340], sizes = [16, 32], strides = [1, 1]} : vector<16x1152xf32> to vector<16x32xf32>
    %c0_53 = arith.constant 0 : index
    %c320 = arith.constant 320 : index
    %88 = vector.load %arg5[%c0_53, %c320] : memref<16x1024xf32, #tpu.memory_space<vmem>>, vector<16x32xf32>
    tpu.vector_store %arg5[%c0_53, %c320], %87 {strides = array<i32>} : memref<16x1024xf32, #tpu.memory_space<vmem>>, vector<16x32xf32>,
    %89 = vector.extract_strided_slice %66 {offsets = [0, 374], sizes = [16, 32], strides = [1, 1]} : vector<16x1152xf32> to vector<16x32xf32>
    %c0_54 = arith.constant 0 : index
    %c352 = arith.constant 352 : index
    %90 = vector.load %arg5[%c0_54, %c352] : memref<16x1024xf32, #tpu.memory_space<vmem>>, vector<16x32xf32>
    tpu.vector_store %arg5[%c0_54, %c352], %89 {strides = array<i32>} : memref<16x1024xf32, #tpu.memory_space<vmem>>, vector<16x32xf32>,
    %91 = vector.extract_strided_slice %66 {offsets = [0, 408], sizes = [16, 32], strides = [1, 1]} : vector<16x1152xf32> to vector<16x32xf32>
    %c0_55 = arith.constant 0 : index
    %c384 = arith.constant 384 : index
    %92 = vector.load %arg5[%c0_55, %c384] : memref<16x1024xf32, #tpu.memory_space<vmem>>, vector<16x32xf32>
    tpu.vector_store %arg5[%c0_55, %c384], %91 {strides = array<i32>} : memref<16x1024xf32, #tpu.memory_space<vmem>>, vector<16x32xf32>,
    %93 = vector.extract_strided_slice %66 {offsets = [0, 442], sizes = [16, 32], strides = [1, 1]} : vector<16x1152xf32> to vector<16x32xf32>
    %c0_56 = arith.constant 0 : index
    %c416 = arith.constant 416 : index
    %94 = vector.load %arg5[%c0_56, %c416] : memref<16x1024xf32, #tpu.memory_space<vmem>>, vector<16x32xf32>
    tpu.vector_store %arg5[%c0_56, %c416], %93 {strides = array<i32>} : memref<16x1024xf32, #tpu.memory_space<vmem>>, vector<16x32xf32>,
    %95 = vector.extract_strided_slice %66 {offsets = [0, 476], sizes = [16, 32], strides = [1, 1]} : vector<16x1152xf32> to vector<16x32xf32>
    %c0_57 = arith.constant 0 : index
    %c448 = arith.constant 448 : index
    %96 = vector.load %arg5[%c0_57, %c448] : memref<16x1024xf32, #tpu.memory_space<vmem>>, vector<16x32xf32>
    tpu.vector_store %arg5[%c0_57, %c448], %95 {strides = array<i32>} : memref<16x1024xf32, #tpu.memory_space<vmem>>, vector<16x32xf32>,
    %97 = vector.extract_strided_slice %66 {offsets = [0, 510], sizes = [16, 32], strides = [1, 1]} : vector<16x1152xf32> to vector<16x32xf32>
    %c0_58 = arith.constant 0 : index
    %c480 = arith.constant 480 : index
    %98 = vector.load %arg5[%c0_58, %c480] : memref<16x1024xf32, #tpu.memory_space<vmem>>, vector<16x32xf32>
    tpu.vector_store %arg5[%c0_58, %c480], %97 {strides = array<i32>} : memref<16x1024xf32, #tpu.memory_space<vmem>>, vector<16x32xf32>,
    %99 = vector.extract_strided_slice %66 {offsets = [0, 544], sizes = [16, 32], strides = [1, 1]} : vector<16x1152xf32> to vector<16x32xf32>
    %c0_59 = arith.constant 0 : index
    %c512 = arith.constant 512 : index
    %100 = vector.load %arg5[%c0_59, %c512] : memref<16x1024xf32, #tpu.memory_space<vmem>>, vector<16x32xf32>
    tpu.vector_store %arg5[%c0_59, %c512], %99 {strides = array<i32>} : memref<16x1024xf32, #tpu.memory_space<vmem>>, vector<16x32xf32>,
    %101 = vector.extract_strided_slice %66 {offsets = [0, 578], sizes = [16, 32], strides = [1, 1]} : vector<16x1152xf32> to vector<16x32xf32>
    %c0_60 = arith.constant 0 : index
    %c544 = arith.constant 544 : index
    %102 = vector.load %arg5[%c0_60, %c544] : memref<16x1024xf32, #tpu.memory_space<vmem>>, vector<16x32xf32>
    tpu.vector_store %arg5[%c0_60, %c544], %101 {strides = array<i32>} : memref<16x1024xf32, #tpu.memory_space<vmem>>, vector<16x32xf32>,
    %103 = vector.extract_strided_slice %66 {offsets = [0, 612], sizes = [16, 32], strides = [1, 1]} : vector<16x1152xf32> to vector<16x32xf32>
    %c0_61 = arith.constant 0 : index
    %c576 = arith.constant 576 : index
    %104 = vector.load %arg5[%c0_61, %c576] : memref<16x1024xf32, #tpu.memory_space<vmem>>, vector<16x32xf32>
    tpu.vector_store %arg5[%c0_61, %c576], %103 {strides = array<i32>} : memref<16x1024xf32, #tpu.memory_space<vmem>>, vector<16x32xf32>,
    %105 = vector.extract_strided_slice %66 {offsets = [0, 646], sizes = [16, 32], strides = [1, 1]} : vector<16x1152xf32> to vector<16x32xf32>
    %c0_62 = arith.constant 0 : index
    %c608 = arith.constant 608 : index
    %106 = vector.load %arg5[%c0_62, %c608] : memref<16x1024xf32, #tpu.memory_space<vmem>>, vector<16x32xf32>
    tpu.vector_store %arg5[%c0_62, %c608], %105 {strides = array<i32>} : memref<16x1024xf32, #tpu.memory_space<vmem>>, vector<16x32xf32>,
    %107 = vector.extract_strided_slice %66 {offsets = [0, 680], sizes = [16, 32], strides = [1, 1]} : vector<16x1152xf32> to vector<16x32xf32>
    %c0_63 = arith.constant 0 : index
    %c640 = arith.constant 640 : index
    %108 = vector.load %arg5[%c0_63, %c640] : memref<16x1024xf32, #tpu.memory_space<vmem>>, vector<16x32xf32>
    tpu.vector_store %arg5[%c0_63, %c640], %107 {strides = array<i32>} : memref<16x1024xf32, #tpu.memory_space<vmem>>, vector<16x32xf32>,
    %109 = vector.extract_strided_slice %66 {offsets = [0, 714], sizes = [16, 32], strides = [1, 1]} : vector<16x1152xf32> to vector<16x32xf32>
    %c0_64 = arith.constant 0 : index
    %c672 = arith.constant 672 : index
    %110 = vector.load %arg5[%c0_64, %c672] : memref<16x1024xf32, #tpu.memory_space<vmem>>, vector<16x32xf32>
    tpu.vector_store %arg5[%c0_64, %c672], %109 {strides = array<i32>} : memref<16x1024xf32, #tpu.memory_space<vmem>>, vector<16x32xf32>,
    %111 = vector.extract_strided_slice %66 {offsets = [0, 748], sizes = [16, 32], strides = [1, 1]} : vector<16x1152xf32> to vector<16x32xf32>
    %c0_65 = arith.constant 0 : index
    %c704 = arith.constant 704 : index
    %112 = vector.load %arg5[%c0_65, %c704] : memref<16x1024xf32, #tpu.memory_space<vmem>>, vector<16x32xf32>
    tpu.vector_store %arg5[%c0_65, %c704], %111 {strides = array<i32>} : memref<16x1024xf32, #tpu.memory_space<vmem>>, vector<16x32xf32>,
    %113 = vector.extract_strided_slice %66 {offsets = [0, 782], sizes = [16, 32], strides = [1, 1]} : vector<16x1152xf32> to vector<16x32xf32>
    %c0_66 = arith.constant 0 : index
    %c736 = arith.constant 736 : index
    %114 = vector.load %arg5[%c0_66, %c736] : memref<16x1024xf32, #tpu.memory_space<vmem>>, vector<16x32xf32>
    tpu.vector_store %arg5[%c0_66, %c736], %113 {strides = array<i32>} : memref<16x1024xf32, #tpu.memory_space<vmem>>, vector<16x32xf32>,
    %115 = vector.extract_strided_slice %66 {offsets = [0, 816], sizes = [16, 32], strides = [1, 1]} : vector<16x1152xf32> to vector<16x32xf32>
    %c0_67 = arith.constant 0 : index
    %c768 = arith.constant 768 : index
    %116 = vector.load %arg5[%c0_67, %c768] : memref<16x1024xf32, #tpu.memory_space<vmem>>, vector<16x32xf32>
    tpu.vector_store %arg5[%c0_67, %c768], %115 {strides = array<i32>} : memref<16x1024xf32, #tpu.memory_space<vmem>>, vector<16x32xf32>,
    %117 = vector.extract_strided_slice %66 {offsets = [0, 850], sizes = [16, 32], strides = [1, 1]} : vector<16x1152xf32> to vector<16x32xf32>
    %c0_68 = arith.constant 0 : index
    %c800 = arith.constant 800 : index
    %118 = vector.load %arg5[%c0_68, %c800] : memref<16x1024xf32, #tpu.memory_space<vmem>>, vector<16x32xf32>
    tpu.vector_store %arg5[%c0_68, %c800], %117 {strides = array<i32>} : memref<16x1024xf32, #tpu.memory_space<vmem>>, vector<16x32xf32>,
    %119 = vector.extract_strided_slice %66 {offsets = [0, 884], sizes = [16, 32], strides = [1, 1]} : vector<16x1152xf32> to vector<16x32xf32>
    %c0_69 = arith.constant 0 : index
    %c832 = arith.constant 832 : index
    %120 = vector.load %arg5[%c0_69, %c832] : memref<16x1024xf32, #tpu.memory_space<vmem>>, vector<16x32xf32>
    tpu.vector_store %arg5[%c0_69, %c832], %119 {strides = array<i32>} : memref<16x1024xf32, #tpu.memory_space<vmem>>, vector<16x32xf32>,
    %121 = vector.extract_strided_slice %66 {offsets = [0, 918], sizes = [16, 32], strides = [1, 1]} : vector<16x1152xf32> to vector<16x32xf32>
    %c0_70 = arith.constant 0 : index
    %c864 = arith.constant 864 : index
    %122 = vector.load %arg5[%c0_70, %c864] : memref<16x1024xf32, #tpu.memory_space<vmem>>, vector<16x32xf32>
    tpu.vector_store %arg5[%c0_70, %c864], %121 {strides = array<i32>} : memref<16x1024xf32, #tpu.memory_space<vmem>>, vector<16x32xf32>,
    %123 = vector.extract_strided_slice %66 {offsets = [0, 952], sizes = [16, 32], strides = [1, 1]} : vector<16x1152xf32> to vector<16x32xf32>
    %c0_71 = arith.constant 0 : index
    %c896 = arith.constant 896 : index
    %124 = vector.load %arg5[%c0_71, %c896] : memref<16x1024xf32, #tpu.memory_space<vmem>>, vector<16x32xf32>
    tpu.vector_store %arg5[%c0_71, %c896], %123 {strides = array<i32>} : memref<16x1024xf32, #tpu.memory_space<vmem>>, vector<16x32xf32>,
    %125 = vector.extract_strided_slice %66 {offsets = [0, 986], sizes = [16, 32], strides = [1, 1]} : vector<16x1152xf32> to vector<16x32xf32>
    %c0_72 = arith.constant 0 : index
    %c928 = arith.constant 928 : index
    %126 = vector.load %arg5[%c0_72, %c928] : memref<16x1024xf32, #tpu.memory_space<vmem>>, vector<16x32xf32>
    tpu.vector_store %arg5[%c0_72, %c928], %125 {strides = array<i32>} : memref<16x1024xf32, #tpu.memory_space<vmem>>, vector<16x32xf32>,
    %127 = vector.extract_strided_slice %66 {offsets = [0, 1020], sizes = [16, 32], strides = [1, 1]} : vector<16x1152xf32> to vector<16x32xf32>
    %c0_73 = arith.constant 0 : index
    %c960 = arith.constant 960 : index
    %128 = vector.load %arg5[%c0_73, %c960] : memref<16x1024xf32, #tpu.memory_space<vmem>>, vector<16x32xf32>
    tpu.vector_store %arg5[%c0_73, %c960], %127 {strides = array<i32>} : memref<16x1024xf32, #tpu.memory_space<vmem>>, vector<16x32xf32>,
    %129 = vector.extract_strided_slice %66 {offsets = [0, 1054], sizes = [16, 32], strides = [1, 1]} : vector<16x1152xf32> to vector<16x32xf32>
    %c0_74 = arith.constant 0 : index
    %c992 = arith.constant 992 : index
    %130 = vector.load %arg5[%c0_74, %c992] : memref<16x1024xf32, #tpu.memory_space<vmem>>, vector<16x32xf32>
    tpu.vector_store %arg5[%c0_74, %c992], %129 {strides = array<i32>} : memref<16x1024xf32, #tpu.memory_space<vmem>>, vector<16x32xf32>,
    %c0_75 = arith.constant 0 : index
    %c0_76 = arith.constant 0 : index
    %131 = vector.load %arg5[%c0_75, %c0_76] : memref<16x1024xf32, #tpu.memory_space<vmem>>, vector<16x1024xf32>
    %cst_77 = arith.constant dense<0.000000e+00> : vector<16xf32>
    %132 = vector.multi_reduction <add>, %131, %cst_77 [1] : vector<16x1024xf32> to vector<16xf32>
    %133 = vector.shape_cast %132 : vector<16xf32> to vector<16x1xf32>
    %cst_78 = arith.constant 9.765625E-4 : f32
    %134 = vector.broadcast %cst_78 : f32 to vector<16x1xf32>
    %135 = arith.mulf %133, %134 : vector<16x1xf32>
    %136 = arith.mulf %131, %131 : vector<16x1024xf32>
    %cst_79 = arith.constant dense<0.000000e+00> : vector<16xf32>
    %137 = vector.multi_reduction <add>, %136, %cst_79 [1] : vector<16x1024xf32> to vector<16xf32>
    %138 = vector.shape_cast %137 : vector<16xf32> to vector<16x1xf32>
    %cst_80 = arith.constant 9.765625E-4 : f32
    %139 = vector.broadcast %cst_80 : f32 to vector<16x1xf32>
    %140 = arith.mulf %138, %139 : vector<16x1xf32>
    %141 = arith.mulf %135, %135 : vector<16x1xf32>
    %142 = arith.subf %140, %141 : vector<16x1xf32>
    %cst_81 = arith.constant 0.000000e+00 : f32
    %143 = vector.broadcast %cst_81 : f32 to vector<16x1xf32>
    %144 = arith.maximumf %142, %143 : vector<16x1xf32>
    %145 = vector.broadcast %135 : vector<16x1xf32> to vector<16x1024xf32>
    %146 = arith.subf %131, %145 : vector<16x1024xf32>
    %cst_82 = arith.constant 9.99999974E-6 : f32
    %147 = vector.broadcast %cst_82 : f32 to vector<16x1xf32>
    %148 = arith.addf %144, %147 : vector<16x1xf32>
    %149 = math.rsqrt %148 : vector<16x1xf32>
    %150 = vector.broadcast %149 : vector<16x1xf32> to vector<16x1024xf32>
    %151 = arith.mulf %146, %150 : vector<16x1024xf32>
    %cst_83 = arith.constant 0.000000e+00 : f32
    %152 = vector.broadcast %cst_83 : f32 to vector<16x1024xf32>
    %153 = arith.cmpf ogt, %151, %152 : vector<16x1024xf32>
    %154 = math.exp %151 : vector<16x1024xf32>
    %cst_84 = arith.constant 1.000000e+00 : f32
    %155 = vector.broadcast %cst_84 : f32 to vector<16x1024xf32>
    %156 = arith.subf %154, %155 : vector<16x1024xf32>
    %157 = arith.select %153, %151, %156 : vector<16x1024xi1>, vector<16x1024xf32>
    %c0_85 = arith.constant 0 : index
    %c0_86 = arith.constant 0 : index
    %158 = vector.load %arg5[%c0_85, %c0_86] : memref<16x1024xf32, #tpu.memory_space<vmem>>, vector<16x1024xf32>
    tpu.vector_store %arg5[%c0_85, %c0_86], %157 {strides = array<i32>} : memref<16x1024xf32, #tpu.memory_space<vmem>>, vector<16x1024xf32>,
    return
  }
  func.func @transform_0(%arg0: i32) -> (i32, i32) {
    %c0_i32 = arith.constant 0 : i32
    %c0_i32_0 = arith.constant 0 : i32
    %c0_i32_1 = arith.constant 0 : i32
    return %c0_i32, %c0_i32_0 : i32, i32
  }
  func.func @transform_1(%arg0: i32) -> (i32, i32) {
    %c0_i32 = arith.constant 0 : i32
    %c0_i32_0 = arith.constant 0 : i32
    %c0_i32_1 = arith.constant 0 : i32
    return %c0_i32, %c0_i32_0 : i32, i32
  }
  func.func @transform_2(%arg0: i32) -> (i32, i32) {
    %c0_i32 = arith.constant 0 : i32
    %c0_i32_0 = arith.constant 0 : i32
    %c0_i32_1 = arith.constant 0 : i32
    return %c0_i32, %c0_i32_0 : i32, i32
  }
  func.func @transform_3(%arg0: i32) -> (i32, i32) {
    %c0_i32 = arith.constant 0 : i32
    %c0_i32_0 = arith.constant 0 : i32
    %c0_i32_1 = arith.constant 0 : i32
    return %c0_i32, %c0_i32_0 : i32, i32
  }
  func.func @transform_4(%arg0: i32) -> (i32, i32) {
    %c0_i32 = arith.constant 0 : i32
    %c0_i32_0 = arith.constant 0 : i32
    %c0_i32_1 = arith.constant 0 : i32
    return %c0_i32, %c0_i32_0 : i32, i32
  }
}

</mosaic_0001>

<llo_original>
// kernel: ginka_input_forward.1
$region0: #{ginka_input_forward.1}
  #allocation0 [shape = 'u32[]', space=smem, size = 0x4, offset = 0x4, fixed_abs, tag = 'smem constant byte address 0x4 - core index']
  #allocation1 [shape = 'u32[144,128]{1,0:T(1,128)}', space=vmem, size = 0x12000, scoped, tag = 'internal scratch']
  #allocation2 [shape = 'f32[8,1280]{1,0:T(8,128)}', space=vmem, size = 0xa000, scoped, tag = 'scratch operand']
  #allocation3 [shape = 'f32[72,1152]{1,0:T(8,128)}', space=vmem, size = 0x51000, scoped, tag = 'scratch operand']
  %s0 = inlined_call_operand.vmem [shape: f32[8,169], index: 0, kind: input, shape index: {}]
  %s1 = inlined_call_operand.hbm [shape: bf16[169,1280], index: 1, kind: input, shape index: {}]
  %s2 = inlined_call_operand.vmem [shape: f32[4,1280], index: 2, kind: input, shape index: {}]
  %s3 = inlined_call_operand.vmem [shape: f32[16,72], index: 3, kind: input, shape index: {}]
  %s4 = inlined_call_operand.vmem [shape: f32[16,1024], index: 4, kind: output, shape index: {}]
  %s5 = sld [smem:[#allocation0]]
  $region30: #{ginka_input_forward.1} parent=0
    _
  %s7 = ssub.s32 1, %s5
  %s8 = scalar_select 0, %s7, %s5
  $region1: #{ginka_input_forward.1} parent=0
    #allocation4 [shape = 'u8[450560]{0}', space=vmem, size = 0x6e000, scoped, tag = 'input window, operand 1, single buffered']
    #allocation5 [shape = 's32[1]{0}', space=sflag, size = 0x4, scoped, tag = 'scoped memory for ginka_input_forward.1']
    %9 = vsyncpa [#allocation5], 0
    // Predicated region
    $region2: #{ginka_input_forward.1} parent=1 // pred_check
      _
    $region3: #{ginka_input_forward.1} parent=1 // pred_check_branch
      %11 = sbr.rel (0) target = $region5
    $region4: #{ginka_input_forward.1} parent=1 // pred_region
      _
    $region5: #{ginka_input_forward.1} parent=1 // pred_fallthru
      _
    // Predicated region
    $region6: #{ginka_input_forward.1} parent=1 // pred_check
      _
    $region7: #{ginka_input_forward.1} parent=1 // pred_check_branch
      %13 = sbr.rel (0) target = $region9
    $region8: #{ginka_input_forward.1} parent=1 // pred_region
      %s15 = ssub.s32 14080, 14080
      %16 = vsyncadd [#allocation5], %s15
      %s17 = sshll.u32 [#allocation4], 4
      %s18 = int_to_ptr.vmem [resolvable:$true] %s17
      %23 = dma.hbm_to_vmem [thread:$0]  %s1, 14080, %s18, [#allocation5], 640, 640, 40
    $region9: #{ginka_input_forward.1} parent=1 // pred_fallthru
      _
    // Predicated region
    $region10: #{ginka_input_forward.1} parent=1 // pred_check
      _
    $region11: #{ginka_input_forward.1} parent=1 // pred_check_branch
      %25 = sbr.rel (0) target = $region13
    $region12: #{ginka_input_forward.1} parent=1 // pred_region
      _
    $region13: #{ginka_input_forward.1} parent=1 // pred_fallthru
      _
    // Predicated region
    $region14: #{ginka_input_forward.1} parent=1 // pred_check
      _
    $region15: #{ginka_input_forward.1} parent=1 // pred_check_branch
      %27 = sbr.rel (0) target = $region17
    $region16: #{ginka_input_forward.1} parent=1 // pred_region
      _
    $region17: #{ginka_input_forward.1} parent=1 // pred_fallthru
      _
    // Predicated region
    $region18: #{ginka_input_forward.1} parent=1 // pred_check
      _
    $region19: #{ginka_input_forward.1} parent=1 // pred_check_branch
      %29 = sbr.rel (0) target = $region21
    $region20: #{ginka_input_forward.1} parent=1 // pred_region
      %30 = dma.done [#allocation5], 14080
    $region21: #{ginka_input_forward.1} parent=1 // pred_fallthru
      _
    %v32 = vld [vmem:[%s0] sm:$0xff]
    %v33 = vld [vmem:[%s0 + $0x8] sm:$0xff]
    %v34 = vpack.c.bf16 %v32, %v32
    %v35 = vpack.c.bf16 %v33, %v33
    %v36 = vld [vmem:[#allocation4] sm:$0xff]
    %v37 = vld [vmem:[#allocation4 + $0x8] sm:$0xff]
    %v38 = vld [vmem:[#allocation4 + $0x10] sm:$0xff]
    %v39 = vld [vmem:[#allocation4 + $0x18] sm:$0xff]
    %v40 = vld [vmem:[#allocation4 + $0x20] sm:$0xff]
    %v41 = vld [vmem:[#allocation4 + $0x28] sm:$0xff]
    %v42 = vld [vmem:[#allocation4 + $0x30] sm:$0xff]
    %v43 = vld [vmem:[#allocation4 + $0x38] sm:$0xff]
    %v44 = vld [vmem:[#allocation4 + $0x40] sm:$0xff]
    %v45 = vld [vmem:[#allocation4 + $0x48] sm:$0xff]
    %v46 = vld [vmem:[#allocation4 + $0x50] sm:$0xff]
    %v47 = vld [vmem:[#allocation4 + $0x58] sm:$0xff]
    %v48 = vld [vmem:[#allocation4 + $0x60] sm:$0xff]
    %v49 = vld [vmem:[#allocation4 + $0x68] sm:$0xff]
    %v50 = vld [vmem:[#allocation4 + $0x70] sm:$0xff]
    %v51 = vld [vmem:[#allocation4 + $0x78] sm:$0xff]
    %v52 = vld [vmem:[#allocation4 + $0x80] sm:$0xff]
    %v53 = vld [vmem:[#allocation4 + $0x88] sm:$0xff]
    %v54 = vld [vmem:[#allocation4 + $0x90] sm:$0xff]
    %v55 = vld [vmem:[#allocation4 + $0x98] sm:$0xff]
    %v56 = vld [vmem:[#allocation4 + $0xa0] sm:$0xff]
    %v57 = vld [vmem:[#allocation4 + $0xa8] sm:$0xff]
    %v58 = vld [vmem:[#allocation4 + $0xb0] sm:$0xff]
    %v59 = vld [vmem:[#allocation4 + $0xb8] sm:$0xff]
    %v60 = vld [vmem:[#allocation4 + $0xc0] sm:$0xff]
    %v61 = vld [vmem:[#allocation4 + $0xc8] sm:$0xff]
    %v62 = vld [vmem:[#allocation4 + $0xd0] sm:$0xff]
    %v63 = vld [vmem:[#allocation4 + $0xd8] sm:$0xff]
    %v64 = vld [vmem:[#allocation4 + $0xe0] sm:$0xff]
    %v65 = vld [vmem:[#allocation4 + $0xe8] sm:$0xff]
    %v66 = vld [vmem:[#allocation4 + $0xf0] sm:$0xff]
    %v67 = vld [vmem:[#allocation4 + $0xf8] sm:$0xff]
    %v68 = vld [vmem:[#allocation4 + $0x100] sm:$0xff]
    %v69 = vld [vmem:[#allocation4 + $0x108] sm:$0xff]
    %v70 = vld [vmem:[#allocation4 + $0x110] sm:$0xff]
    %v71 = vld [vmem:[#allocation4 + $0x118] sm:$0xff]
    %v72 = vld [vmem:[#allocation4 + $0x120] sm:$0xff]
    %v73 = vld [vmem:[#allocation4 + $0x128] sm:$0xff]
    %v74 = vld [vmem:[#allocation4 + $0x130] sm:$0xff]
    %v75 = vld [vmem:[#allocation4 + $0x138] sm:$0xff]
    %v76 = vld [vmem:[#allocation4 + $0x140] sm:$0xff]
    %v77 = vld [vmem:[#allocation4 + $0x148] sm:$0xff]
    %v78 = vld [vmem:[#allocation4 + $0x150] sm:$0xff]
    %v79 = vld [vmem:[#allocation4 + $0x158] sm:$0xff]
    %v80 = vld [vmem:[#allocation4 + $0x160] sm:$0xff]
    %v81 = vld [vmem:[#allocation4 + $0x168] sm:$0xff]
    %v82 = vld [vmem:[#allocation4 + $0x170] sm:$0xff]
    %v83 = vld [vmem:[#allocation4 + $0x178] sm:$0xff]
    %v84 = vld [vmem:[#allocation4 + $0x180] sm:$0xff]
    %v85 = vld [vmem:[#allocation4 + $0x188] sm:$0xff]
    %v86 = vld [vmem:[#allocation4 + $0x190] sm:$0xff]
    %v87 = vld [vmem:[#allocation4 + $0x198] sm:$0xff]
    %v88 = vld [vmem:[#allocation4 + $0x1a0] sm:$0xff]
    %v89 = vld [vmem:[#allocation4 + $0x1a8] sm:$0xff]
    %v90 = vld [vmem:[#allocation4 + $0x1b0] sm:$0xff]
    %v91 = vld [vmem:[#allocation4 + $0x1b8] sm:$0xff]
    %v92 = vld [vmem:[#allocation4 + $0x1c0] sm:$0xff]
    %v93 = vld [vmem:[#allocation4 + $0x1c8] sm:$0xff]
    %v94 = vld [vmem:[#allocation4 + $0x1d0] sm:$0xff]
    %v95 = vld [vmem:[#allocation4 + $0x1d8] sm:$0xff]
    %v96 = vld [vmem:[#allocation4 + $0x1e0] sm:$0xff]
    %v97 = vld [vmem:[#allocation4 + $0x1e8] sm:$0xff]
    %v98 = vld [vmem:[#allocation4 + $0x1f0] sm:$0xff]
    %v99 = vld [vmem:[#allocation4 + $0x1f8] sm:$0xff]
    %v100 = vld [vmem:[#allocation4 + $0x200] sm:$0xff]
    %v101 = vld [vmem:[#allocation4 + $0x208] sm:$0xff]
    %v102 = vld [vmem:[#allocation4 + $0x210] sm:$0xff]
    %v103 = vld [vmem:[#allocation4 + $0x218] sm:$0xff]
    %v104 = vld [vmem:[#allocation4 + $0x220] sm:$0xff]
    %v105 = vld [vmem:[#allocation4 + $0x228] sm:$0xff]
    %v106 = vld [vmem:[#allocation4 + $0x230] sm:$0xff]
    %v107 = vld [vmem:[#allocation4 + $0x238] sm:$0xff]
    %v108 = vld [vmem:[#allocation4 + $0x240] sm:$0xff]
    %v109 = vld [vmem:[#allocation4 + $0x248] sm:$0xff]
    %v110 = vld [vmem:[#allocation4 + $0x250] sm:$0xff]
    %v111 = vld [vmem:[#allocation4 + $0x258] sm:$0xff]
    %v112 = vld [vmem:[#allocation4 + $0x260] sm:$0xff]
    %v113 = vld [vmem:[#allocation4 + $0x268] sm:$0xff]
    %v114 = vld [vmem:[#allocation4 + $0x270] sm:$0xff]
    %v115 = vld [vmem:[#allocation4 + $0x278] sm:$0xff]
    %v116 = vld [vmem:[#allocation4 + $0x280] sm:$0xff]
    %v117 = vld [vmem:[#allocation4 + $0x288] sm:$0xff]
    %v118 = vld [vmem:[#allocation4 + $0x290] sm:$0xff]
    %v119 = vld [vmem:[#allocation4 + $0x298] sm:$0xff]
    %v120 = vld [vmem:[#allocation4 + $0x2a0] sm:$0xff]
    %v121 = vld [vmem:[#allocation4 + $0x2a8] sm:$0xff]
    %v122 = vld [vmem:[#allocation4 + $0x2b0] sm:$0xff]
    %v123 = vld [vmem:[#allocation4 + $0x2b8] sm:$0xff]
    %v124 = vld [vmem:[#allocation4 + $0x2c0] sm:$0xff]
    %v125 = vld [vmem:[#allocation4 + $0x2c8] sm:$0xff]
    %v126 = vld [vmem:[#allocation4 + $0x2d0] sm:$0xff]
    %v127 = vld [vmem:[#allocation4 + $0x2d8] sm:$0xff]
    %v128 = vld [vmem:[#allocation4 + $0x2e0] sm:$0xff]
    %v129 = vld [vmem:[#allocation4 + $0x2e8] sm:$0xff]
    %v130 = vld [vmem:[#allocation4 + $0x2f0] sm:$0xff]
    %v131 = vld [vmem:[#allocation4 + $0x2f8] sm:$0xff]
    %v132 = vld [vmem:[#allocation4 + $0x300] sm:$0xff]
    %v133 = vld [vmem:[#allocation4 + $0x308] sm:$0xff]
    %v134 = vld [vmem:[#allocation4 + $0x310] sm:$0xff]
    %v135 = vld [vmem:[#allocation4 + $0x318] sm:$0xff]
    %v136 = vld [vmem:[#allocation4 + $0x320] sm:$0xff]
    %v137 = vld [vmem:[#allocation4 + $0x328] sm:$0xff]
    %v138 = vld [vmem:[#allocation4 + $0x330] sm:$0xff]
    %v139 = vld [vmem:[#allocation4 + $0x338] sm:$0xff]
    %v140 = vld [vmem:[#allocation4 + $0x340] sm:$0xff]
    %v141 = vld [vmem:[#allocation4 + $0x348] sm:$0x11]
    %v142 = vld [vmem:[#allocation4 + $0x350] sm:$0x11]
    %v143 = vld [vmem:[#allocation4 + $0x358] sm:$0x11]
    %v144 = vld [vmem:[#allocation4 + $0x360] sm:$0x11]
    %v145 = vld [vmem:[#allocation4 + $0x368] sm:$0x11]
    %v146 = vld [vmem:[%s2] sm:$0xff]
    %v147 = vld [vmem:[%s2 + $0x8] sm:$0xff]
    %v148 = vld [vmem:[%s2 + $0x10] sm:$0xff]
    %v149 = vld [vmem:[%s2 + $0x18] sm:$0xff]
    %v150 = vld [vmem:[%s2 + $0x20] sm:$0xff]
    %v156 = vlaneseq
    %v157 = vshrl.u32 %v156, 7
    %v158 = vsub.s32 0, %v157
    %v159 = vrot.slane %v146, %v158
    %v160 = vlaneseq
    %v161 = vshrl.u32 %v160, 7
    %v162 = vsub.s32 4, %v161
    %v163 = vrot.slane %v146, %v162
    %v164 = vlaneseq
    %v165 = vshrl.u32 %v164, 7
    %v166 = vsub.s32 0, %v165
    %v167 = vrot.slane %v147, %v166
    %v168 = vlaneseq
    %v169 = vshrl.u32 %v168, 7
    %v170 = vsub.s32 4, %v169
    %v171 = vrot.slane %v147, %v170
    %v172 = vlaneseq
    %v173 = vshrl.u32 %v172, 7
    %v174 = vsub.s32 0, %v173
    %v175 = vrot.slane %v148, %v174
    %v176 = vlaneseq
    %v177 = vshrl.u32 %v176, 7
    %v178 = vsub.s32 4, %v177
    %v179 = vrot.slane %v148, %v178
    %v180 = vlaneseq
    %v181 = vshrl.u32 %v180, 7
    %v182 = vsub.s32 0, %v181
    %v183 = vrot.slane %v149, %v182
    %v184 = vlaneseq
    %v185 = vshrl.u32 %v184, 7
    %v186 = vsub.s32 4, %v185
    %v187 = vrot.slane %v149, %v186
    %v188 = vlaneseq
    %v189 = vshrl.u32 %v188, 7
    %v190 = vsub.s32 0, %v189
    %v191 = vrot.slane %v150, %v190
    %v192 = vlaneseq
    %v193 = vshrl.u32 %v192, 7
    %v194 = vsub.s32 4, %v193
    %v195 = vrot.slane %v150, %v194
    %v206 = vlaneseq
    %v207 = vshrl.u32 %v206, 7
    %v208 = vsub.s32 0, %v207
    %v209 = vrot.slane %v159, %v208
    %v210 = vlaneseq
    %v211 = vshrl.u32 %v210, 7
    %v212 = vsub.s32 0, %v211
    %v213 = vrot.slane %v163, %v212
    %v214 = vlaneseq
    %v215 = vshrl.u32 %v214, 7
    %v216 = vsub.s32 0, %v215
    %v217 = vrot.slane %v167, %v216
    %v218 = vlaneseq
    %v219 = vshrl.u32 %v218, 7
    %v220 = vsub.s32 0, %v219
    %v221 = vrot.slane %v171, %v220
    %v222 = vlaneseq
    %v223 = vshrl.u32 %v222, 7
    %v224 = vsub.s32 0, %v223
    %v225 = vrot.slane %v175, %v224
    %v226 = vlaneseq
    %v227 = vshrl.u32 %v226, 7
    %v228 = vsub.s32 0, %v227
    %v229 = vrot.slane %v179, %v228
    %v230 = vlaneseq
    %v231 = vshrl.u32 %v230, 7
    %v232 = vsub.s32 0, %v231
    %v233 = vrot.slane %v183, %v232
    %v234 = vlaneseq
    %v235 = vshrl.u32 %v234, 7
    %v236 = vsub.s32 0, %v235
    %v237 = vrot.slane %v187, %v236
    %v238 = vlaneseq
    %v239 = vshrl.u32 %v238, 7
    %v240 = vsub.s32 0, %v239
    %v241 = vrot.slane %v191, %v240
    %v242 = vlaneseq
    %v243 = vshrl.u32 %v242, 7
    %v244 = vsub.s32 0, %v243
    %v245 = vrot.slane %v195, %v244
    %v356 = vunpack.c.l.b16 %v36
    %v357 = vunpack.c.h.b16 %v36
    %v358 = vunpack.c.l.b16 %v37
    %v359 = vunpack.c.h.b16 %v37
    %v360 = vunpack.c.l.b16 %v38
    %v361 = vunpack.c.h.b16 %v38
    %v362 = vunpack.c.l.b16 %v39
    %v363 = vunpack.c.h.b16 %v39
    %v364 = vunpack.c.l.b16 %v40
    %v365 = vunpack.c.h.b16 %v40
    %v366 = vunpack.c.l.b16 %v41
    %v367 = vunpack.c.h.b16 %v41
    %v368 = vunpack.c.l.b16 %v42
    %v369 = vunpack.c.h.b16 %v42
    %v370 = vunpack.c.l.b16 %v43
    %v371 = vunpack.c.h.b16 %v43
    %v372 = vunpack.c.l.b16 %v44
    %v373 = vunpack.c.h.b16 %v44
    %v374 = vunpack.c.l.b16 %v45
    %v375 = vunpack.c.h.b16 %v45
    %v376 = vunpack.c.l.b16 %v46
    %v377 = vunpack.c.h.b16 %v46
    %v378 = vunpack.c.l.b16 %v47
    %v379 = vunpack.c.h.b16 %v47
    %v380 = vunpack.c.l.b16 %v48
    %v381 = vunpack.c.h.b16 %v48
    %v382 = vunpack.c.l.b16 %v49
    %v383 = vunpack.c.h.b16 %v49
    %v384 = vunpack.c.l.b16 %v50
    %v385 = vunpack.c.h.b16 %v50
    %v386 = vunpack.c.l.b16 %v51
    %v387 = vunpack.c.h.b16 %v51
    %v388 = vunpack.c.l.b16 %v52
    %v389 = vunpack.c.h.b16 %v52
    %v390 = vunpack.c.l.b16 %v53
    %v391 = vunpack.c.h.b16 %v53
    %v392 = vunpack.c.l.b16 %v54
    %v393 = vunpack.c.h.b16 %v54
    %v394 = vunpack.c.l.b16 %v55
    %v395 = vunpack.c.h.b16 %v55
    %v396 = vunpack.c.l.b16 %v56
    %v397 = vunpack.c.h.b16 %v56
    %v398 = vunpack.c.l.b16 %v57
    %v399 = vunpack.c.h.b16 %v57
    %v400 = vunpack.c.l.b16 %v58
    %v401 = vunpack.c.h.b16 %v58
    %v402 = vunpack.c.l.b16 %v59
    %v403 = vunpack.c.h.b16 %v59
    %v404 = vunpack.c.l.b16 %v60
    %v405 = vunpack.c.h.b16 %v60
    %v406 = vunpack.c.l.b16 %v61
    %v407 = vunpack.c.h.b16 %v61
    %v408 = vunpack.c.l.b16 %v62
    %v409 = vunpack.c.h.b16 %v62
    %v410 = vunpack.c.l.b16 %v63
    %v411 = vunpack.c.h.b16 %v63
    %v412 = vunpack.c.l.b16 %v64
    %v413 = vunpack.c.h.b16 %v64
    %v414 = vunpack.c.l.b16 %v65
    %v415 = vunpack.c.h.b16 %v65
    %v416 = vunpack.c.l.b16 %v66
    %v417 = vunpack.c.h.b16 %v66
    %v418 = vunpack.c.l.b16 %v67
    %v419 = vunpack.c.h.b16 %v67
    %v420 = vunpack.c.l.b16 %v68
    %v421 = vunpack.c.h.b16 %v68
    %v422 = vunpack.c.l.b16 %v69
    %v423 = vunpack.c.h.b16 %v69
    %v424 = vunpack.c.l.b16 %v70
    %v425 = vunpack.c.h.b16 %v70
    %v426 = vunpack.c.l.b16 %v71
    %v427 = vunpack.c.h.b16 %v71
    %v428 = vunpack.c.l.b16 %v72
    %v429 = vunpack.c.h.b16 %v72
    %v430 = vunpack.c.l.b16 %v73
    %v431 = vunpack.c.h.b16 %v73
    %v432 = vunpack.c.l.b16 %v74
    %v433 = vunpack.c.h.b16 %v74
    %v434 = vunpack.c.l.b16 %v75
    %v435 = vunpack.c.h.b16 %v75
    %v436 = vunpack.c.l.b16 %v76
    %v437 = vunpack.c.h.b16 %v76
    %v438 = vunpack.c.l.b16 %v77
    %v439 = vunpack.c.h.b16 %v77
    %v440 = vunpack.c.l.b16 %v78
    %v441 = vunpack.c.h.b16 %v78
    %v442 = vunpack.c.l.b16 %v79
    %v443 = vunpack.c.h.b16 %v79
    %v444 = vunpack.c.l.b16 %v80
    %v445 = vunpack.c.h.b16 %v80
    %v446 = vunpack.c.l.b16 %v81
    %v447 = vunpack.c.h.b16 %v81
    %v448 = vunpack.c.l.b16 %v82
    %v449 = vunpack.c.h.b16 %v82
    %v450 = vunpack.c.l.b16 %v83
    %v451 = vunpack.c.h.b16 %v83
    %v452 = vunpack.c.l.b16 %v84
    %v453 = vunpack.c.h.b16 %v84
    %v454 = vunpack.c.l.b16 %v85
    %v455 = vunpack.c.h.b16 %v85
    %v456 = vunpack.c.l.b16 %v86
    %v457 = vunpack.c.h.b16 %v86
    %v458 = vunpack.c.l.b16 %v87
    %v459 = vunpack.c.h.b16 %v87
    %v460 = vunpack.c.l.b16 %v88
    %v461 = vunpack.c.h.b16 %v88
    %v462 = vunpack.c.l.b16 %v89
    %v463 = vunpack.c.h.b16 %v89
    %v464 = vunpack.c.l.b16 %v90
    %v465 = vunpack.c.h.b16 %v90
    %v466 = vunpack.c.l.b16 %v91
    %v467 = vunpack.c.h.b16 %v91
    %v468 = vunpack.c.l.b16 %v92
    %v469 = vunpack.c.h.b16 %v92
    %v470 = vunpack.c.l.b16 %v93
    %v471 = vunpack.c.h.b16 %v93
    %v472 = vunpack.c.l.b16 %v94
    %v473 = vunpack.c.h.b16 %v94
    %v474 = vunpack.c.l.b16 %v95
    %v475 = vunpack.c.h.b16 %v95
    %v476 = vunpack.c.l.b16 %v96
    %v477 = vunpack.c.h.b16 %v96
    %v478 = vunpack.c.l.b16 %v97
    %v479 = vunpack.c.h.b16 %v97
    %v480 = vunpack.c.l.b16 %v98
    %v481 = vunpack.c.h.b16 %v98
    %v482 = vunpack.c.l.b16 %v99
    %v483 = vunpack.c.h.b16 %v99
    %v484 = vunpack.c.l.b16 %v100
    %v485 = vunpack.c.h.b16 %v100
    %v486 = vunpack.c.l.b16 %v101
    %v487 = vunpack.c.h.b16 %v101
    %v488 = vunpack.c.l.b16 %v102
    %v489 = vunpack.c.h.b16 %v102
    %v490 = vunpack.c.l.b16 %v103
    %v491 = vunpack.c.h.b16 %v103
    %v492 = vunpack.c.l.b16 %v104
    %v493 = vunpack.c.h.b16 %v104
    %v494 = vunpack.c.l.b16 %v105
    %v495 = vunpack.c.h.b16 %v105
    %v496 = vunpack.c.l.b16 %v106
    %v497 = vunpack.c.h.b16 %v106
    %v498 = vunpack.c.l.b16 %v107
    %v499 = vunpack.c.h.b16 %v107
    %v500 = vunpack.c.l.b16 %v108
    %v501 = vunpack.c.h.b16 %v108
    %v502 = vunpack.c.l.b16 %v109
    %v503 = vunpack.c.h.b16 %v109
    %v504 = vunpack.c.l.b16 %v110
    %v505 = vunpack.c.h.b16 %v110
    %v506 = vunpack.c.l.b16 %v111
    %v507 = vunpack.c.h.b16 %v111
    %v508 = vunpack.c.l.b16 %v112
    %v509 = vunpack.c.h.b16 %v112
    %v510 = vunpack.c.l.b16 %v113
    %v511 = vunpack.c.h.b16 %v113
    %v512 = vunpack.c.l.b16 %v114
    %v513 = vunpack.c.h.b16 %v114
    %v514 = vunpack.c.l.b16 %v115
    %v515 = vunpack.c.h.b16 %v115
    %v516 = vunpack.c.l.b16 %v116
    %v517 = vunpack.c.h.b16 %v116
    %v518 = vunpack.c.l.b16 %v117
    %v519 = vunpack.c.h.b16 %v117
    %v520 = vunpack.c.l.b16 %v118
    %v521 = vunpack.c.h.b16 %v118
    %v522 = vunpack.c.l.b16 %v119
    %v523 = vunpack.c.h.b16 %v119
    %v524 = vunpack.c.l.b16 %v120
    %v525 = vunpack.c.h.b16 %v120
    %v526 = vunpack.c.l.b16 %v121
    %v527 = vunpack.c.h.b16 %v121
    %v528 = vunpack.c.l.b16 %v122
    %v529 = vunpack.c.h.b16 %v122
    %v530 = vunpack.c.l.b16 %v123
    %v531 = vunpack.c.h.b16 %v123
    %v532 = vunpack.c.l.b16 %v124
    %v533 = vunpack.c.h.b16 %v124
    %v534 = vunpack.c.l.b16 %v125
    %v535 = vunpack.c.h.b16 %v125
    %v536 = vunpack.c.l.b16 %v126
    %v537 = vunpack.c.h.b16 %v126
    %v538 = vunpack.c.l.b16 %v127
    %v539 = vunpack.c.h.b16 %v127
    %v540 = vunpack.c.l.b16 %v128
    %v541 = vunpack.c.h.b16 %v128
    %v542 = vunpack.c.l.b16 %v129
    %v543 = vunpack.c.h.b16 %v129
    %v544 = vunpack.c.l.b16 %v130
    %v545 = vunpack.c.h.b16 %v130
    %v546 = vunpack.c.l.b16 %v131
    %v547 = vunpack.c.h.b16 %v131
    %v548 = vunpack.c.l.b16 %v132
    %v549 = vunpack.c.h.b16 %v132
    %v550 = vunpack.c.l.b16 %v133
    %v551 = vunpack.c.h.b16 %v133
    %v552 = vunpack.c.l.b16 %v134
    %v553 = vunpack.c.h.b16 %v134
    %v554 = vunpack.c.l.b16 %v135
    %v555 = vunpack.c.h.b16 %v135
    %v556 = vunpack.c.l.b16 %v136
    %v557 = vunpack.c.h.b16 %v136
    %v558 = vunpack.c.l.b16 %v137
    %v559 = vunpack.c.h.b16 %v137
    %v560 = vunpack.c.l.b16 %v138
    %v561 = vunpack.c.h.b16 %v138
    %v562 = vunpack.c.l.b16 %v139
    %v563 = vunpack.c.h.b16 %v139
    %v564 = vunpack.c.l.b16 %v140
    %v565 = vunpack.c.h.b16 %v140
    %v566 = vunpack.c.l.b16 %v141
    %v567 = vunpack.c.h.b16 %v141
    %v568 = vunpack.c.l.b16 %v142
    %v569 = vunpack.c.h.b16 %v142
    %v570 = vunpack.c.l.b16 %v143
    %v571 = vunpack.c.h.b16 %v143
    %v572 = vunpack.c.l.b16 %v144
    %v573 = vunpack.c.h.b16 %v144
    %v574 = vunpack.c.l.b16 %v145
    %v575 = vunpack.c.h.b16 %v145
    %v576 = vpack.c.b16 %v366, %v356
    %v577 = vpack.c.b16 %v367, %v357
    %v578 = vpack.c.b16 %v368, %v358
    %v579 = vpack.c.b16 %v369, %v359
    %v580 = vpack.c.b16 %v370, %v360
    %v581 = vpack.c.b16 %v371, %v361
    %v582 = vpack.c.b16 %v372, %v362
    %v583 = vpack.c.b16 %v373, %v363
    %v584 = vpack.c.b16 %v374, %v364
    %v585 = vpack.c.b16 %v375, %v365
    %v586 = vpack.c.b16 %v386, %v376
    %v587 = vpack.c.b16 %v387, %v377
    %v588 = vpack.c.b16 %v388, %v378
    %v589 = vpack.c.b16 %v389, %v379
    %v590 = vpack.c.b16 %v390, %v380
    %v591 = vpack.c.b16 %v391, %v381
    %v592 = vpack.c.b16 %v392, %v382
    %v593 = vpack.c.b16 %v393, %v383
    %v594 = vpack.c.b16 %v394, %v384
    %v595 = vpack.c.b16 %v395, %v385
    %v596 = vpack.c.b16 %v406, %v396
    %v597 = vpack.c.b16 %v407, %v397
    %v598 = vpack.c.b16 %v408, %v398
    %v599 = vpack.c.b16 %v409, %v399
    %v600 = vpack.c.b16 %v410, %v400
    %v601 = vpack.c.b16 %v411, %v401
    %v602 = vpack.c.b16 %v412, %v402
    %v603 = vpack.c.b16 %v413, %v403
    %v604 = vpack.c.b16 %v414, %v404
    %v605 = vpack.c.b16 %v415, %v405
    %v606 = vpack.c.b16 %v426, %v416
    %v607 = vpack.c.b16 %v427, %v417
    %v608 = vpack.c.b16 %v428, %v418
    %v609 = vpack.c.b16 %v429, %v419
    %v610 = vpack.c.b16 %v430, %v420
    %v611 = vpack.c.b16 %v431, %v421
    %v612 = vpack.c.b16 %v432, %v422
    %v613 = vpack.c.b16 %v433, %v423
    %v614 = vpack.c.b16 %v434, %v424
    %v615 = vpack.c.b16 %v435, %v425
    %v616 = vpack.c.b16 %v446, %v436
    %v617 = vpack.c.b16 %v447, %v437
    %v618 = vpack.c.b16 %v448, %v438
    %v619 = vpack.c.b16 %v449, %v439
    %v620 = vpack.c.b16 %v450, %v440
    %v621 = vpack.c.b16 %v451, %v441
    %v622 = vpack.c.b16 %v452, %v442
    %v623 = vpack.c.b16 %v453, %v443
    %v624 = vpack.c.b16 %v454, %v444
    %v625 = vpack.c.b16 %v455, %v445
    %v626 = vpack.c.b16 %v466, %v456
    %v627 = vpack.c.b16 %v467, %v457
    %v628 = vpack.c.b16 %v468, %v458
    %v629 = vpack.c.b16 %v469, %v459
    %v630 = vpack.c.b16 %v470, %v460
    %v631 = vpack.c.b16 %v471, %v461
    %v632 = vpack.c.b16 %v472, %v462
    %v633 = vpack.c.b16 %v473, %v463
    %v634 = vpack.c.b16 %v474, %v464
    %v635 = vpack.c.b16 %v475, %v465
    %v636 = vpack.c.b16 %v486, %v476
    %v637 = vpack.c.b16 %v487, %v477
    %v638 = vpack.c.b16 %v488, %v478
    %v639 = vpack.c.b16 %v489, %v479
    %v640 = vpack.c.b16 %v490, %v480
    %v641 = vpack.c.b16 %v491, %v481
    %v642 = vpack.c.b16 %v492, %v482
    %v643 = vpack.c.b16 %v493, %v483
    %v644 = vpack.c.b16 %v494, %v484
    %v645 = vpack.c.b16 %v495, %v485
    %v646 = vpack.c.b16 %v506, %v496
    %v647 = vpack.c.b16 %v507, %v497
    %v648 = vpack.c.b16 %v508, %v498
    %v649 = vpack.c.b16 %v509, %v499
    %v650 = vpack.c.b16 %v510, %v500
    %v651 = vpack.c.b16 %v511, %v501
    %v652 = vpack.c.b16 %v512, %v502
    %v653 = vpack.c.b16 %v513, %v503
    %v654 = vpack.c.b16 %v514, %v504
    %v655 = vpack.c.b16 %v515, %v505
    %v656 = vpack.c.b16 %v526, %v516
    %v657 = vpack.c.b16 %v527, %v517
    %v658 = vpack.c.b16 %v528, %v518
    %v659 = vpack.c.b16 %v529, %v519
    %v660 = vpack.c.b16 %v530, %v520
    %v661 = vpack.c.b16 %v531, %v521
    %v662 = vpack.c.b16 %v532, %v522
    %v663 = vpack.c.b16 %v533, %v523
    %v664 = vpack.c.b16 %v534, %v524
    %v665 = vpack.c.b16 %v535, %v525
    %v666 = vpack.c.b16 %v546, %v536
    %v667 = vpack.c.b16 %v547, %v537
    %v668 = vpack.c.b16 %v548, %v538
    %v669 = vpack.c.b16 %v549, %v539
    %v670 = vpack.c.b16 %v550, %v540
    %v671 = vpack.c.b16 %v551, %v541
    %v672 = vpack.c.b16 %v552, %v542
    %v673 = vpack.c.b16 %v553, %v543
    %v674 = vpack.c.b16 %v554, %v544
    %v675 = vpack.c.b16 %v555, %v545
    %v676 = vpack.c.b16 %v566, %v556
    %v677 = vpack.c.b16 %v567, %v557
    %v678 = vpack.c.b16 %v568, %v558
    %v679 = vpack.c.b16 %v569, %v559
    %v680 = vpack.c.b16 %v570, %v560
    %v681 = vpack.c.b16 %v571, %v561
    %v682 = vpack.c.b16 %v572, %v562
    %v683 = vpack.c.b16 %v573, %v563
    %v684 = vpack.c.b16 %v574, %v564
    %v685 = vpack.c.b16 %v575, %v565
    %vm786 = vcmask 334848
    %v788 = vsel %vm786, %v35, 0
    %vm790 = vcmask 1043456
    %vm791 = vcmask 1044480
    %v792 = vsel %vm790, 4294967295, 65535
    %v793 = vsel %vm791, %v792, 0
    %v795 = vand.u32 %v676, %v793
    %v798 = vand.u32 %v677, %v793
    %v801 = vand.u32 %v678, %v793
    %v804 = vand.u32 %v679, %v793
    %v807 = vand.u32 %v680, %v793
    %v810 = vand.u32 %v681, %v793
    %v813 = vand.u32 %v682, %v793
    %v816 = vand.u32 %v683, %v793
    %v819 = vand.u32 %v684, %v793
    %v822 = vand.u32 %v685, %v793
    %824 = vmatprep.subr.bf16.mxu0 %v647
    %825 = vmatpush1.bf16.msra.mxu0 %v646
    %826 = vmatprep.subr.bf16.mxu0 %v637
    %827 = vmatpush1.bf16.msra.mxu0 %v636
    %828 = vmatprep.subr.bf16.mxu0 %v627
    %829 = vmatpush1.bf16.msra.mxu0 %v626
    %830 = vmatprep.subr.bf16.mxu0 %v617
    %831 = vmatpush1.bf16.msra.mxu0 %v616
    %832 = vmatprep.subr.bf16.mxu0 %v607
    %833 = vmatpush1.bf16.msra.mxu0 %v606
    %834 = vmatprep.subr.bf16.mxu0 %v597
    %835 = vmatpush1.bf16.msra.mxu0 %v596
    %836 = vmatprep.subr.bf16.mxu0 %v587
    %837 = vmatpush1.bf16.msra.mxu0 %v586
    %838 = vmatprep.subr.bf16.mxu0 %v577
    %839 = vmatpush1.bf16.msra.mxu0 %v576
    %840 = vmatprep.subr.bf16.mxu0 0
    %841 = vmatpush2.bf16.msra.mxu0 0
    %842 = vmatprep.subr.bf16.mxu0 0
    %843 = vmatpush2.bf16.msra.mxu0 0
    %844 = vmatprep.subr.bf16.mxu0 0
    %845 = vmatpush2.bf16.msra.mxu0 0
    %846 = vmatprep.subr.bf16.mxu0 0
    %847 = vmatpush2.bf16.msra.mxu0 0
    %848 = vmatprep.subr.bf16.mxu0 0
    %849 = vmatpush2.bf16.msra.mxu0 0
    %850 = vmatprep.subr.bf16.mxu0 %v798
    %851 = vmatpush2.bf16.msra.mxu0 %v795
    %852 = vmatprep.subr.bf16.mxu0 %v667
    %853 = vmatpush2.bf16.msra.mxu0 %v666
    %854 = vmatprep.subr.bf16.mxu0 %v657
    %855 = vmatpush2.bf16.msra.mxu0 %v656
    %856 = vmatprep.mubr.bf16.mxu0 %v788
    %857 = vmatmul.mubr.bf16.gmra.mxu0 %v34
    %v858 = vpop.f32.mrf.mxu0
    %v859 = vadd.f32 %v209, %v858
    %v860 = vpop.f32.mrf.mxu0
    %v861 = vadd.f32 %v213, %v860
    %v862 = vpop.f32.mrf.mxu0
    %v863 = vpop.f32.mrf.mxu0
    %864 = vdwg.mxu0
    %865 = vmatprep.subr.bf16.mxu0 %v649
    %866 = vmatpush1.bf16.msra.mxu0 %v648
    %867 = vmatprep.subr.bf16.mxu0 %v639
    %868 = vmatpush1.bf16.msra.mxu0 %v638
    %869 = vmatprep.subr.bf16.mxu0 %v629
    %870 = vmatpush1.bf16.msra.mxu0 %v628
    %871 = vmatprep.subr.bf16.mxu0 %v619
    %872 = vmatpush1.bf16.msra.mxu0 %v618
    %873 = vmatprep.subr.bf16.mxu0 %v609
    %874 = vmatpush1.bf16.msra.mxu0 %v608
    %875 = vmatprep.subr.bf16.mxu0 %v599
    %876 = vmatpush1.bf16.msra.mxu0 %v598
    %877 = vmatprep.subr.bf16.mxu0 %v589
    %878 = vmatpush1.bf16.msra.mxu0 %v588
    %879 = vmatprep.subr.bf16.mxu0 %v579
    %880 = vmatpush1.bf16.msra.mxu0 %v578
    %881 = vmatprep.subr.bf16.mxu0 0
    %882 = vmatpush2.bf16.msra.mxu0 0
    %883 = vmatprep.subr.bf16.mxu0 0
    %884 = vmatpush2.bf16.msra.mxu0 0
    %885 = vmatprep.subr.bf16.mxu0 0
    %886 = vmatpush2.bf16.msra.mxu0 0
    %887 = vmatprep.subr.bf16.mxu0 0
    %888 = vmatpush2.bf16.msra.mxu0 0
    %889 = vmatprep.subr.bf16.mxu0 0
    %890 = vmatpush2.bf16.msra.mxu0 0
    %891 = vmatprep.subr.bf16.mxu0 %v804
    %892 = vmatpush2.bf16.msra.mxu0 %v801
    %893 = vmatprep.subr.bf16.mxu0 %v669
    %894 = vmatpush2.bf16.msra.mxu0 %v668
    %895 = vmatprep.subr.bf16.mxu0 %v659
    %896 = vmatpush2.bf16.msra.mxu0 %v658
    %897 = vmatprep.mubr.bf16.mxu0 %v788
    %898 = vmatmul.mubr.bf16.gmra.mxu0 %v34
    %v899 = vpop.f32.mrf.mxu0
    %v900 = vadd.f32 %v217, %v899
    %v901 = vpop.f32.mrf.mxu0
    %v902 = vadd.f32 %v221, %v901
    %v903 = vpop.f32.mrf.mxu0
    %v904 = vpop.f32.mrf.mxu0
    %905 = vdwg.mxu0
    %906 = vmatprep.subr.bf16.mxu0 %v651
    %907 = vmatpush1.bf16.msra.mxu0 %v650
    %908 = vmatprep.subr.bf16.mxu0 %v641
    %909 = vmatpush1.bf16.msra.mxu0 %v640
    %910 = vmatprep.subr.bf16.mxu0 %v631
    %911 = vmatpush1.bf16.msra.mxu0 %v630
    %912 = vmatprep.subr.bf16.mxu0 %v621
    %913 = vmatpush1.bf16.msra.mxu0 %v620
    %914 = vmatprep.subr.bf16.mxu0 %v611
    %915 = vmatpush1.bf16.msra.mxu0 %v610
    %916 = vmatprep.subr.bf16.mxu0 %v601
    %917 = vmatpush1.bf16.msra.mxu0 %v600
    %918 = vmatprep.subr.bf16.mxu0 %v591
    %919 = vmatpush1.bf16.msra.mxu0 %v590
    %920 = vmatprep.subr.bf16.mxu0 %v581
    %921 = vmatpush1.bf16.msra.mxu0 %v580
    %922 = vmatprep.subr.bf16.mxu0 0
    %923 = vmatpush2.bf16.msra.mxu0 0
    %924 = vmatprep.subr.bf16.mxu0 0
    %925 = vmatpush2.bf16.msra.mxu0 0
    %926 = vmatprep.subr.bf16.mxu0 0
    %927 = vmatpush2.bf16.msra.mxu0 0
    %928 = vmatprep.subr.bf16.mxu0 0
    %929 = vmatpush2.bf16.msra.mxu0 0
    %930 = vmatprep.subr.bf16.mxu0 0
    %931 = vmatpush2.bf16.msra.mxu0 0
    %932 = vmatprep.subr.bf16.mxu0 %v810
    %933 = vmatpush2.bf16.msra.mxu0 %v807
    %934 = vmatprep.subr.bf16.mxu0 %v671
    %935 = vmatpush2.bf16.msra.mxu0 %v670
    %936 = vmatprep.subr.bf16.mxu0 %v661
    %937 = vmatpush2.bf16.msra.mxu0 %v660
    %938 = vmatprep.mubr.bf16.mxu0 %v788
    %939 = vmatmul.mubr.bf16.gmra.mxu0 %v34
    %v940 = vpop.f32.mrf.mxu0
    %v941 = vadd.f32 %v225, %v940
    %v942 = vpop.f32.mrf.mxu0
    %v943 = vadd.f32 %v229, %v942
    %v944 = vpop.f32.mrf.mxu0
    %v945 = vpop.f32.mrf.mxu0
    %946 = vdwg.mxu0
    %947 = vmatprep.subr.bf16.mxu0 %v653
    %948 = vmatpush1.bf16.msra.mxu0 %v652
    %949 = vmatprep.subr.bf16.mxu0 %v643
    %950 = vmatpush1.bf16.msra.mxu0 %v642
    %951 = vmatprep.subr.bf16.mxu0 %v633
    %952 = vmatpush1.bf16.msra.mxu0 %v632
    %953 = vmatprep.subr.bf16.mxu0 %v623
    %954 = vmatpush1.bf16.msra.mxu0 %v622
    %955 = vmatprep.subr.bf16.mxu0 %v613
    %956 = vmatpush1.bf16.msra.mxu0 %v612
    %957 = vmatprep.subr.bf16.mxu0 %v603
    %958 = vmatpush1.bf16.msra.mxu0 %v602
    %959 = vmatprep.subr.bf16.mxu0 %v593
    %960 = vmatpush1.bf16.msra.mxu0 %v592
    %961 = vmatprep.subr.bf16.mxu0 %v583
    %962 = vmatpush1.bf16.msra.mxu0 %v582
    %963 = vmatprep.subr.bf16.mxu0 0
    %964 = vmatpush2.bf16.msra.mxu0 0
    %965 = vmatprep.subr.bf16.mxu0 0
    %966 = vmatpush2.bf16.msra.mxu0 0
    %967 = vmatprep.subr.bf16.mxu0 0
    %968 = vmatpush2.bf16.msra.mxu0 0
    %969 = vmatprep.subr.bf16.mxu0 0
    %970 = vmatpush2.bf16.msra.mxu0 0
    %971 = vmatprep.subr.bf16.mxu0 0
    %972 = vmatpush2.bf16.msra.mxu0 0
    %973 = vmatprep.subr.bf16.mxu0 %v816
    %974 = vmatpush2.bf16.msra.mxu0 %v813
    %975 = vmatprep.subr.bf16.mxu0 %v673
    %976 = vmatpush2.bf16.msra.mxu0 %v672
    %977 = vmatprep.subr.bf16.mxu0 %v663
    %978 = vmatpush2.bf16.msra.mxu0 %v662
    %979 = vmatprep.mubr.bf16.mxu0 %v788
    %980 = vmatmul.mubr.bf16.gmra.mxu0 %v34
    %v981 = vpop.f32.mrf.mxu0
    %v982 = vadd.f32 %v233, %v981
    %v983 = vpop.f32.mrf.mxu0
    %v984 = vadd.f32 %v237, %v983
    %v985 = vpop.f32.mrf.mxu0
    %v986 = vpop.f32.mrf.mxu0
    %987 = vdwg.mxu0
    %988 = vmatprep.subr.bf16.mxu0 %v655
    %989 = vmatpush1.bf16.msra.mxu0 %v654
    %990 = vmatprep.subr.bf16.mxu0 %v645
    %991 = vmatpush1.bf16.msra.mxu0 %v644
    %992 = vmatprep.subr.bf16.mxu0 %v635
    %993 = vmatpush1.bf16.msra.mxu0 %v634
    %994 = vmatprep.subr.bf16.mxu0 %v625
    %995 = vmatpush1.bf16.msra.mxu0 %v624
    %996 = vmatprep.subr.bf16.mxu0 %v615
    %997 = vmatpush1.bf16.msra.mxu0 %v614
    %998 = vmatprep.subr.bf16.mxu0 %v605
    %999 = vmatpush1.bf16.msra.mxu0 %v604
    %1000 = vmatprep.subr.bf16.mxu0 %v595
    %1001 = vmatpush1.bf16.msra.mxu0 %v594
    %1002 = vmatprep.subr.bf16.mxu0 %v585
    %1003 = vmatpush1.bf16.msra.mxu0 %v584
    %1004 = vmatprep.subr.bf16.mxu0 0
    %1005 = vmatpush2.bf16.msra.mxu0 0
    %1006 = vmatprep.subr.bf16.mxu0 0
    %1007 = vmatpush2.bf16.msra.mxu0 0
    %1008 = vmatprep.subr.bf16.mxu0 0
    %1009 = vmatpush2.bf16.msra.mxu0 0
    %1010 = vmatprep.subr.bf16.mxu0 0
    %1011 = vmatpush2.bf16.msra.mxu0 0
    %1012 = vmatprep.subr.bf16.mxu0 0
    %1013 = vmatpush2.bf16.msra.mxu0 0
    %1014 = vmatprep.subr.bf16.mxu0 %v822
    %1015 = vmatpush2.bf16.msra.mxu0 %v819
    %1016 = vmatprep.subr.bf16.mxu0 %v675
    %1017 = vmatpush2.bf16.msra.mxu0 %v674
    %1018 = vmatprep.subr.bf16.mxu0 %v665
    %1019 = vmatpush2.bf16.msra.mxu0 %v664
    %1020 = vmatprep.mubr.bf16.mxu0 %v788
    %1021 = vmatmul.mubr.bf16.gmra.mxu0 %v34
    %v1022 = vpop.f32.mrf.mxu0
    %v1023 = vadd.f32 %v241, %v1022
    %v1024 = vpop.f32.mrf.mxu0
    %v1025 = vadd.f32 %v245, %v1024
    %v1026 = vpop.f32.mrf.mxu0
    %v1027 = vpop.f32.mrf.mxu0
    %1028 = vdwg.mxu0
    %v1029 = vlaneseq
    %v1030 = vshrl.u32 %v1029, 7
    %v1031 = vsub.s32 3, %v1030
    %v1032 = vrot.slane %v146, %v1031
    %v1033 = vlaneseq
    %v1034 = vshrl.u32 %v1033, 7
    %v1035 = vsub.s32 7, %v1034
    %v1036 = vrot.slane %v146, %v1035
    %v1037 = vlaneseq
    %v1038 = vshrl.u32 %v1037, 7
    %v1039 = vsub.s32 3, %v1038
    %v1040 = vrot.slane %v147, %v1039
    %v1041 = vlaneseq
    %v1042 = vshrl.u32 %v1041, 7
    %v1043 = vsub.s32 7, %v1042
    %v1044 = vrot.slane %v147, %v1043
    %v1045 = vlaneseq
    %v1046 = vshrl.u32 %v1045, 7
    %v1047 = vsub.s32 3, %v1046
    %v1048 = vrot.slane %v148, %v1047
    %v1049 = vlaneseq
    %v1050 = vshrl.u32 %v1049, 7
    %v1051 = vsub.s32 7, %v1050
    %v1052 = vrot.slane %v148, %v1051
    %v1053 = vlaneseq
    %v1054 = vshrl.u32 %v1053, 7
    %v1055 = vsub.s32 3, %v1054
    %v1056 = vrot.slane %v149, %v1055
    %v1057 = vlaneseq
    %v1058 = vshrl.u32 %v1057, 7
    %v1059 = vsub.s32 7, %v1058
    %v1060 = vrot.slane %v149, %v1059
    %v1061 = vlaneseq
    %v1062 = vshrl.u32 %v1061, 7
    %v1063 = vsub.s32 3, %v1062
    %v1064 = vrot.slane %v150, %v1063
    %v1065 = vlaneseq
    %v1066 = vshrl.u32 %v1065, 7
    %v1067 = vsub.s32 7, %v1066
    %v1068 = vrot.slane %v150, %v1067
    %v1079 = vlaneseq
    %v1080 = vshrl.u32 %v1079, 7
    %v1081 = vsub.s32 3, %v1080
    %v1082 = vrot.slane %v1032, %v1081
    %v1083 = vlaneseq
    %v1084 = vshrl.u32 %v1083, 7
    %v1085 = vsub.s32 3, %v1084
    %v1086 = vrot.slane %v1036, %v1085
    %v1087 = vlaneseq
    %v1088 = vshrl.u32 %v1087, 7
    %v1089 = vsub.s32 3, %v1088
    %v1090 = vrot.slane %v1040, %v1089
    %v1091 = vlaneseq
    %v1092 = vshrl.u32 %v1091, 7
    %v1093 = vsub.s32 3, %v1092
    %v1094 = vrot.slane %v1044, %v1093
    %v1095 = vlaneseq
    %v1096 = vshrl.u32 %v1095, 7
    %v1097 = vsub.s32 3, %v1096
    %v1098 = vrot.slane %v1048, %v1097
    %v1099 = vlaneseq
    %v1100 = vshrl.u32 %v1099, 7
    %v1101 = vsub.s32 3, %v1100
    %v1102 = vrot.slane %v1052, %v1101
    %v1103 = vlaneseq
    %v1104 = vshrl.u32 %v1103, 7
    %v1105 = vsub.s32 3, %v1104
    %v1106 = vrot.slane %v1056, %v1105
    %v1107 = vlaneseq
    %v1108 = vshrl.u32 %v1107, 7
    %v1109 = vsub.s32 3, %v1108
    %v1110 = vrot.slane %v1060, %v1109
    %v1111 = vlaneseq
    %v1112 = vshrl.u32 %v1111, 7
    %v1113 = vsub.s32 3, %v1112
    %v1114 = vrot.slane %v1064, %v1113
    %v1115 = vlaneseq
    %v1116 = vshrl.u32 %v1115, 7
    %v1117 = vsub.s32 3, %v1116
    %v1118 = vrot.slane %v1068, %v1117
    %v1119 = vmul.f32 %v859, %v1082
    %v1120 = vmul.f32 %v861, %v1086
    %v1121 = vmul.f32 %v900, %v1090
    %v1122 = vmul.f32 %v902, %v1094
    %v1123 = vmul.f32 %v941, %v1098
    %v1124 = vmul.f32 %v943, %v1102
    %v1125 = vmul.f32 %v982, %v1106
    %v1126 = vmul.f32 %v984, %v1110
    %v1127 = vmul.f32 %v1023, %v1114
    %v1128 = vmul.f32 %v1025, %v1118
    %v1129 = vadd.f32 %v1119, %v1120
    %v1130 = vadd.f32 %v1129, %v1121
    %v1131 = vadd.f32 %v1130, %v1122
    %v1132 = vadd.f32 %v1131, %v1123
    %v1133 = vadd.f32 %v1132, %v1124
    %v1134 = vadd.f32 %v1133, %v1125
    %v1135 = vadd.f32 %v1134, %v1126
    %v1136 = vadd.f32 %v1135, %v1127
    %v1137 = vadd.f32 %v1136, %v1128
    %1138 = vadd.xlane.f32.xlu0 %v1137
    %v1139 = vpop.xlane.xlu0 %1138
    %v1140 = vmul.f32 %v1139, 0.0009765625
    %v1141 = vmul.f32 %v859, %v859
    %v1142 = vmul.f32 %v861, %v861
    %v1143 = vmul.f32 %v900, %v900
    %v1144 = vmul.f32 %v902, %v902
    %v1145 = vmul.f32 %v941, %v941
    %v1146 = vmul.f32 %v943, %v943
    %v1147 = vmul.f32 %v982, %v982
    %v1148 = vmul.f32 %v984, %v984
    %v1149 = vmul.f32 %v1023, %v1023
    %v1150 = vmul.f32 %v1025, %v1025
    %v1151 = vmul.f32 %v1141, %v1082
    %v1152 = vmul.f32 %v1142, %v1086
    %v1153 = vmul.f32 %v1143, %v1090
    %v1154 = vmul.f32 %v1144, %v1094
    %v1155 = vmul.f32 %v1145, %v1098
    %v1156 = vmul.f32 %v1146, %v1102
    %v1157 = vmul.f32 %v1147, %v1106
    %v1158 = vmul.f32 %v1148, %v1110
    %v1159 = vmul.f32 %v1149, %v1114
    %v1160 = vmul.f32 %v1150, %v1118
    %v1161 = vadd.f32 %v1151, %v1152
    %v1162 = vadd.f32 %v1161, %v1153
    %v1163 = vadd.f32 %v1162, %v1154
    %v1164 = vadd.f32 %v1163, %v1155
    %v1165 = vadd.f32 %v1164, %v1156
    %v1166 = vadd.f32 %v1165, %v1157
    %v1167 = vadd.f32 %v1166, %v1158
    %v1168 = vadd.f32 %v1167, %v1159
    %v1169 = vadd.f32 %v1168, %v1160
    %1170 = vadd.xlane.f32.xlu0 %v1169
    %v1171 = vpop.xlane.xlu0 %1170
    %v1172 = vmul.f32 %v1171, 0.0009765625
    %v1173 = vmul.f32 %v1140, %v1140
    %v1174 = vsub.f32 %v1172, %v1173
    %v1175 = vmax.f32 %v1174, 0.0
    %v1176 = vsub.f32 %v859, %v1140
    %v1177 = vsub.f32 %v861, %v1140
    %v1178 = vsub.f32 %v900, %v1140
    %v1179 = vsub.f32 %v902, %v1140
    %v1180 = vsub.f32 %v941, %v1140
    %v1181 = vsub.f32 %v943, %v1140
    %v1182 = vsub.f32 %v982, %v1140
    %v1183 = vsub.f32 %v984, %v1140
    %v1184 = vsub.f32 %v1023, %v1140
    %v1185 = vsub.f32 %v1025, %v1140
    %v1186 = vadd.f32 %v1175, 1e-05
    %v1187 = vrsqrt.pop %v1186
    %v1188 = vmul.f32 %v1176, %v1187
    %v1189 = vmul.f32 %v1177, %v1187
    %v1190 = vmul.f32 %v1178, %v1187
    %v1191 = vmul.f32 %v1179, %v1187
    %v1192 = vmul.f32 %v1180, %v1187
    %v1193 = vmul.f32 %v1181, %v1187
    %v1194 = vmul.f32 %v1182, %v1187
    %v1195 = vmul.f32 %v1183, %v1187
    %v1196 = vmul.f32 %v1184, %v1187
    %v1197 = vmul.f32 %v1185, %v1187
    %v1198 = vlaneseq
    %v1199 = vshrl.u32 %v1198, 7
    %v1200 = vsub.s32 1, %v1199
    %v1201 = vrot.slane %v146, %v1200
    %v1202 = vlaneseq
    %v1203 = vshrl.u32 %v1202, 7
    %v1204 = vsub.s32 5, %v1203
    %v1205 = vrot.slane %v146, %v1204
    %v1206 = vlaneseq
    %v1207 = vshrl.u32 %v1206, 7
    %v1208 = vsub.s32 1, %v1207
    %v1209 = vrot.slane %v147, %v1208
    %v1210 = vlaneseq
    %v1211 = vshrl.u32 %v1210, 7
    %v1212 = vsub.s32 5, %v1211
    %v1213 = vrot.slane %v147, %v1212
    %v1214 = vlaneseq
    %v1215 = vshrl.u32 %v1214, 7
    %v1216 = vsub.s32 1, %v1215
    %v1217 = vrot.slane %v148, %v1216
    %v1218 = vlaneseq
    %v1219 = vshrl.u32 %v1218, 7
    %v1220 = vsub.s32 5, %v1219
    %v1221 = vrot.slane %v148, %v1220
    %v1222 = vlaneseq
    %v1223 = vshrl.u32 %v1222, 7
    %v1224 = vsub.s32 1, %v1223
    %v1225 = vrot.slane %v149, %v1224
    %v1226 = vlaneseq
    %v1227 = vshrl.u32 %v1226, 7
    %v1228 = vsub.s32 5, %v1227
    %v1229 = vrot.slane %v149, %v1228
    %v1230 = vlaneseq
    %v1231 = vshrl.u32 %v1230, 7
    %v1232 = vsub.s32 1, %v1231
    %v1233 = vrot.slane %v150, %v1232
    %v1234 = vlaneseq
    %v1235 = vshrl.u32 %v1234, 7
    %v1236 = vsub.s32 5, %v1235
    %v1237 = vrot.slane %v150, %v1236
    %v1248 = vlaneseq
    %v1249 = vshrl.u32 %v1248, 7
    %v1250 = vsub.s32 1, %v1249
    %v1251 = vrot.slane %v1201, %v1250
    %v1252 = vlaneseq
    %v1253 = vshrl.u32 %v1252, 7
    %v1254 = vsub.s32 1, %v1253
    %v1255 = vrot.slane %v1205, %v1254
    %v1256 = vlaneseq
    %v1257 = vshrl.u32 %v1256, 7
    %v1258 = vsub.s32 1, %v1257
    %v1259 = vrot.slane %v1209, %v1258
    %v1260 = vlaneseq
    %v1261 = vshrl.u32 %v1260, 7
    %v1262 = vsub.s32 1, %v1261
    %v1263 = vrot.slane %v1213, %v1262
    %v1264 = vlaneseq
    %v1265 = vshrl.u32 %v1264, 7
    %v1266 = vsub.s32 1, %v1265
    %v1267 = vrot.slane %v1217, %v1266
    %v1268 = vlaneseq
    %v1269 = vshrl.u32 %v1268, 7
    %v1270 = vsub.s32 1, %v1269
    %v1271 = vrot.slane %v1221, %v1270
    %v1272 = vlaneseq
    %v1273 = vshrl.u32 %v1272, 7
    %v1274 = vsub.s32 1, %v1273
    %v1275 = vrot.slane %v1225, %v1274
    %v1276 = vlaneseq
    %v1277 = vshrl.u32 %v1276, 7
    %v1278 = vsub.s32 1, %v1277
    %v1279 = vrot.slane %v1229, %v1278
    %v1280 = vlaneseq
    %v1281 = vshrl.u32 %v1280, 7
    %v1282 = vsub.s32 1, %v1281
    %v1283 = vrot.slane %v1233, %v1282
    %v1284 = vlaneseq
    %v1285 = vshrl.u32 %v1284, 7
    %v1286 = vsub.s32 1, %v1285
    %v1287 = vrot.slane %v1237, %v1286
    %v1288 = vmul.f32 %v1188, %v1251
    %v1289 = vmul.f32 %v1189, %v1255
    %v1290 = vmul.f32 %v1190, %v1259
    %v1291 = vmul.f32 %v1191, %v1263
    %v1292 = vmul.f32 %v1192, %v1267
    %v1293 = vmul.f32 %v1193, %v1271
    %v1294 = vmul.f32 %v1194, %v1275
    %v1295 = vmul.f32 %v1195, %v1279
    %v1296 = vmul.f32 %v1196, %v1283
    %v1297 = vmul.f32 %v1197, %v1287
    %v1298 = vlaneseq
    %v1299 = vshrl.u32 %v1298, 7
    %v1300 = vsub.s32 2, %v1299
    %v1301 = vrot.slane %v146, %v1300
    %v1302 = vlaneseq
    %v1303 = vshrl.u32 %v1302, 7
    %v1304 = vsub.s32 6, %v1303
    %v1305 = vrot.slane %v146, %v1304
    %v1306 = vlaneseq
    %v1307 = vshrl.u32 %v1306, 7
    %v1308 = vsub.s32 2, %v1307
    %v1309 = vrot.slane %v147, %v1308
    %v1310 = vlaneseq
    %v1311 = vshrl.u32 %v1310, 7
    %v1312 = vsub.s32 6, %v1311
    %v1313 = vrot.slane %v147, %v1312
    %v1314 = vlaneseq
    %v1315 = vshrl.u32 %v1314, 7
    %v1316 = vsub.s32 2, %v1315
    %v1317 = vrot.slane %v148, %v1316
    %v1318 = vlaneseq
    %v1319 = vshrl.u32 %v1318, 7
    %v1320 = vsub.s32 6, %v1319
    %v1321 = vrot.slane %v148, %v1320
    %v1322 = vlaneseq
    %v1323 = vshrl.u32 %v1322, 7
    %v1324 = vsub.s32 2, %v1323
    %v1325 = vrot.slane %v149, %v1324
    %v1326 = vlaneseq
    %v1327 = vshrl.u32 %v1326, 7
    %v1328 = vsub.s32 6, %v1327
    %v1329 = vrot.slane %v149, %v1328
    %v1330 = vlaneseq
    %v1331 = vshrl.u32 %v1330, 7
    %v1332 = vsub.s32 2, %v1331
    %v1333 = vrot.slane %v150, %v1332
    %v1334 = vlaneseq
    %v1335 = vshrl.u32 %v1334, 7
    %v1336 = vsub.s32 6, %v1335
    %v1337 = vrot.slane %v150, %v1336
    %v1348 = vlaneseq
    %v1349 = vshrl.u32 %v1348, 7
    %v1350 = vsub.s32 2, %v1349
    %v1351 = vrot.slane %v1301, %v1350
    %v1352 = vlaneseq
    %v1353 = vshrl.u32 %v1352, 7
    %v1354 = vsub.s32 2, %v1353
    %v1355 = vrot.slane %v1305, %v1354
    %v1356 = vlaneseq
    %v1357 = vshrl.u32 %v1356, 7
    %v1358 = vsub.s32 2, %v1357
    %v1359 = vrot.slane %v1309, %v1358
    %v1360 = vlaneseq
    %v1361 = vshrl.u32 %v1360, 7
    %v1362 = vsub.s32 2, %v1361
    %v1363 = vrot.slane %v1313, %v1362
    %v1364 = vlaneseq
    %v1365 = vshrl.u32 %v1364, 7
    %v1366 = vsub.s32 2, %v1365
    %v1367 = vrot.slane %v1317, %v1366
    %v1368 = vlaneseq
    %v1369 = vshrl.u32 %v1368, 7
    %v1370 = vsub.s32 2, %v1369
    %v1371 = vrot.slane %v1321, %v1370
    %v1372 = vlaneseq
    %v1373 = vshrl.u32 %v1372, 7
    %v1374 = vsub.s32 2, %v1373
    %v1375 = vrot.slane %v1325, %v1374
    %v1376 = vlaneseq
    %v1377 = vshrl.u32 %v1376, 7
    %v1378 = vsub.s32 2, %v1377
    %v1379 = vrot.slane %v1329, %v1378
    %v1380 = vlaneseq
    %v1381 = vshrl.u32 %v1380, 7
    %v1382 = vsub.s32 2, %v1381
    %v1383 = vrot.slane %v1333, %v1382
    %v1384 = vlaneseq
    %v1385 = vshrl.u32 %v1384, 7
    %v1386 = vsub.s32 2, %v1385
    %v1387 = vrot.slane %v1337, %v1386
    %v1388 = vadd.f32 %v1288, %v1351
    %v1389 = vadd.f32 %v1289, %v1355
    %v1390 = vadd.f32 %v1290, %v1359
    %v1391 = vadd.f32 %v1291, %v1363
    %v1392 = vadd.f32 %v1292, %v1367
    %v1393 = vadd.f32 %v1293, %v1371
    %v1394 = vadd.f32 %v1294, %v1375
    %v1395 = vadd.f32 %v1295, %v1379
    %v1396 = vadd.f32 %v1296, %v1383
    %v1397 = vadd.f32 %v1297, %v1387
    %vm1398 = vcmp.gt.f32.partialorder %v1388, 0.0
    %vm1399 = vcmp.gt.f32.partialorder %v1389, 0.0
    %vm1400 = vcmp.gt.f32.partialorder %v1390, 0.0
    %vm1401 = vcmp.gt.f32.partialorder %v1391, 0.0
    %vm1402 = vcmp.gt.f32.partialorder %v1392, 0.0
    %vm1403 = vcmp.gt.f32.partialorder %v1393, 0.0
    %vm1404 = vcmp.gt.f32.partialorder %v1394, 0.0
    %vm1405 = vcmp.gt.f32.partialorder %v1395, 0.0
    %vm1406 = vcmp.gt.f32.partialorder %v1396, 0.0
    %vm1407 = vcmp.gt.f32.partialorder %v1397, 0.0
    %v1408 = vmul.f32 %v1388, 1.442695
    %v1409 = vpow.pop %v1408
    %v1410 = vmul.f32 %v1389, 1.442695
    %v1411 = vpow.pop %v1410
    %v1412 = vmul.f32 %v1390, 1.442695
    %v1413 = vpow.pop %v1412
    %v1414 = vmul.f32 %v1391, 1.442695
    %v1415 = vpow.pop %v1414
    %v1416 = vmul.f32 %v1392, 1.442695
    %v1417 = vpow.pop %v1416
    %v1418 = vmul.f32 %v1393, 1.442695
    %v1419 = vpow.pop %v1418
    %v1420 = vmul.f32 %v1394, 1.442695
    %v1421 = vpow.pop %v1420
    %v1422 = vmul.f32 %v1395, 1.442695
    %v1423 = vpow.pop %v1422
    %v1424 = vmul.f32 %v1396, 1.442695
    %v1425 = vpow.pop %v1424
    %v1426 = vmul.f32 %v1397, 1.442695
    %v1427 = vpow.pop %v1426
    %v1428 = vsub.f32 %v1409, 1.0
    %v1429 = vsub.f32 %v1411, 1.0
    %v1430 = vsub.f32 %v1413, 1.0
    %v1431 = vsub.f32 %v1415, 1.0
    %v1432 = vsub.f32 %v1417, 1.0
    %v1433 = vsub.f32 %v1419, 1.0
    %v1434 = vsub.f32 %v1421, 1.0
    %v1435 = vsub.f32 %v1423, 1.0
    %v1436 = vsub.f32 %v1425, 1.0
    %v1437 = vsub.f32 %v1427, 1.0
    %v1438 = vsel %vm1398, %v1388, %v1428
    %v1439 = vsel %vm1399, %v1389, %v1429
    %v1440 = vsel %vm1400, %v1390, %v1430
    %v1441 = vsel %vm1401, %v1391, %v1431
    %v1442 = vsel %vm1402, %v1392, %v1432
    %v1443 = vsel %vm1403, %v1393, %v1433
    %v1444 = vsel %vm1404, %v1394, %v1434
    %v1445 = vsel %vm1405, %v1395, %v1435
    %v1446 = vsel %vm1406, %v1396, %v1436
    %v1447 = vsel %vm1407, %v1397, %v1437
    %1448 = vst [vmem:[#allocation2] sm:$0xff] %v1438
    %1449 = vst [vmem:[#allocation2 + $0x8] sm:$0xff] %v1439
    %1450 = vst [vmem:[#allocation2 + $0x10] sm:$0xff] %v1440
    %1451 = vst [vmem:[#allocation2 + $0x18] sm:$0xff] %v1441
    %1452 = vst [vmem:[#allocation2 + $0x20] sm:$0xff] %v1442
    %1453 = vst [vmem:[#allocation2 + $0x28] sm:$0xff] %v1443
    %1454 = vst [vmem:[#allocation2 + $0x30] sm:$0xff] %v1444
    %1455 = vst [vmem:[#allocation2 + $0x38] sm:$0xff] %v1445
    %1456 = vst [vmem:[#allocation2 + $0x40] sm:$0xff] %v1446
    %1457 = vst [vmem:[#allocation2 + $0x48] sm:$0xff] %v1447
    %v1458 = vld [vmem:[#allocation2] sm:$0xff]
    %v1459 = vld [vmem:[#allocation2 + $0x8] sm:$0xff]
    %v1460 = vld [vmem:[#allocation2 + $0x10] sm:$0xff]
    %v1461 = vld [vmem:[#allocation2 + $0x18] sm:$0xff]
    %v1462 = vld [vmem:[#allocation2 + $0x20] sm:$0xff]
    %v1463 = vld [vmem:[#allocation2 + $0x28] sm:$0xff]
    %v1464 = vld [vmem:[#allocation2 + $0x30] sm:$0xff]
    %v1465 = vld [vmem:[#allocation2 + $0x38] sm:$0xff]
    %v1466 = vld [vmem:[#allocation2 + $0x40] sm:$0xff]
    %1467 = vst [vmem:[#allocation3] sm:$0xff] %v1458
    %1468 = vst [vmem:[#allocation3 + $0x8] sm:$0xff] %v1459
    %1469 = vst [vmem:[#allocation3 + $0x10] sm:$0xff] %v1460
    %1470 = vst [vmem:[#allocation3 + $0x18] sm:$0xff] %v1461
    %1471 = vst [vmem:[#allocation3 + $0x20] sm:$0xff] %v1462
    %1472 = vst [vmem:[#allocation3 + $0x28] sm:$0xff] %v1463
    %1473 = vst [vmem:[#allocation3 + $0x30] sm:$0xff] %v1464
    %1474 = vst [vmem:[#allocation3 + $0x38] sm:$0xff] %v1465
    %1475 = vst [vmem:[#allocation3 + $0x40] sm:$0xff] %v1466
    %v1476 = vld [vmem:[#allocation2] sm:$0xff]
    %v1477 = vld [vmem:[#allocation2 + $0x8] sm:$0xff]
    %v1478 = vld [vmem:[#allocation2 + $0x10] sm:$0xff]
    %v1479 = vld [vmem:[#allocation2 + $0x18] sm:$0xff]
    %v1480 = vld [vmem:[#allocation2 + $0x20] sm:$0xff]
    %v1481 = vld [vmem:[#allocation2 + $0x28] sm:$0xff]
    %v1482 = vld [vmem:[#allocation2 + $0x30] sm:$0xff]
    %v1483 = vld [vmem:[#allocation2 + $0x38] sm:$0xff]
    %v1484 = vld [vmem:[#allocation2 + $0x40] sm:$0xff]
    %v1485 = vld [vmem:[#allocation2 + $0x48] sm:$0xff]
    %1496 = vrot.lane.b32.xlu0 %v1476, 127
    %v1497 = vpop.permute.xlu0 %1496
    %1498 = vrot.lane.b32.xlu0 %v1477, 127
    %v1499 = vpop.permute.xlu0 %1498
    %1500 = vrot.lane.b32.xlu0 %v1478, 127
    %v1501 = vpop.permute.xlu0 %1500
    %1502 = vrot.lane.b32.xlu0 %v1479, 127
    %v1503 = vpop.permute.xlu0 %1502
    %1504 = vrot.lane.b32.xlu0 %v1480, 127
    %v1505 = vpop.permute.xlu0 %1504
    %1506 = vrot.lane.b32.xlu0 %v1481, 127
    %v1507 = vpop.permute.xlu0 %1506
    %1508 = vrot.lane.b32.xlu0 %v1482, 127
    %v1509 = vpop.permute.xlu0 %1508
    %1510 = vrot.lane.b32.xlu0 %v1483, 127
    %v1511 = vpop.permute.xlu0 %1510
    %1512 = vrot.lane.b32.xlu0 %v1484, 127
    %v1513 = vpop.permute.xlu0 %1512
    %1514 = vrot.lane.b32.xlu0 %v1485, 127
    %v1515 = vpop.permute.xlu0 %1514
    %vm1516 = vcmask 1039360
    %v1517 = vsel %vm1516, %v1497, %v1499
    %v1518 = vsel %vm1516, %v1499, %v1501
    %v1519 = vsel %vm1516, %v1501, %v1503
    %v1520 = vsel %vm1516, %v1503, %v1505
    %v1521 = vsel %vm1516, %v1505, %v1507
    %v1522 = vsel %vm1516, %v1507, %v1509
    %v1523 = vsel %vm1516, %v1509, %v1511
    %v1524 = vsel %vm1516, %v1511, %v1513
    %v1525 = vsel %vm1516, %v1513, %v1515
    %1535 = vst [vmem:[#allocation3 + $0x48] sm:$0xff] %v1517
    %1536 = vst [vmem:[#allocation3 + $0x50] sm:$0xff] %v1518
    %1537 = vst [vmem:[#allocation3 + $0x58] sm:$0xff] %v1519
    %1538 = vst [vmem:[#allocation3 + $0x60] sm:$0xff] %v1520
    %1539 = vst [vmem:[#allocation3 + $0x68] sm:$0xff] %v1521
    %1540 = vst [vmem:[#allocation3 + $0x70] sm:$0xff] %v1522
    %1541 = vst [vmem:[#allocation3 + $0x78] sm:$0xff] %v1523
    %1542 = vst [vmem:[#allocation3 + $0x80] sm:$0xff] %v1524
    %1543 = vst [vmem:[#allocation3 + $0x88] sm:$0xff] %v1525
    %v1544 = vld [vmem:[#allocation2] sm:$0xff]
    %v1545 = vld [vmem:[#allocation2 + $0x8] sm:$0xff]
    %v1546 = vld [vmem:[#allocation2 + $0x10] sm:$0xff]
    %v1547 = vld [vmem:[#allocation2 + $0x18] sm:$0xff]
    %v1548 = vld [vmem:[#allocation2 + $0x20] sm:$0xff]
    %v1549 = vld [vmem:[#allocation2 + $0x28] sm:$0xff]
    %v1550 = vld [vmem:[#allocation2 + $0x30] sm:$0xff]
    %v1551 = vld [vmem:[#allocation2 + $0x38] sm:$0xff]
    %v1552 = vld [vmem:[#allocation2 + $0x40] sm:$0xff]
    %v1553 = vld [vmem:[#allocation2 + $0x48] sm:$0xff]
    %1564 = vrot.lane.b32.xlu0 %v1544, 126
    %v1565 = vpop.permute.xlu0 %1564
    %1566 = vrot.lane.b32.xlu0 %v1545, 126
    %v1567 = vpop.permute.xlu0 %1566
    %1568 = vrot.lane.b32.xlu0 %v1546, 126
    %v1569 = vpop.permute.xlu0 %1568
    %1570 = vrot.lane.b32.xlu0 %v1547, 126
    %v1571 = vpop.permute.xlu0 %1570
    %1572 = vrot.lane.b32.xlu0 %v1548, 126
    %v1573 = vpop.permute.xlu0 %1572
    %1574 = vrot.lane.b32.xlu0 %v1549, 126
    %v1575 = vpop.permute.xlu0 %1574
    %1576 = vrot.lane.b32.xlu0 %v1550, 126
    %v1577 = vpop.permute.xlu0 %1576
    %1578 = vrot.lane.b32.xlu0 %v1551, 126
    %v1579 = vpop.permute.xlu0 %1578
    %1580 = vrot.lane.b32.xlu0 %v1552, 126
    %v1581 = vpop.permute.xlu0 %1580
    %1582 = vrot.lane.b32.xlu0 %v1553, 126
    %v1583 = vpop.permute.xlu0 %1582
    %vm1584 = vcmask 1031168
    %v1585 = vsel %vm1584, %v1565, %v1567
    %v1586 = vsel %vm1584, %v1567, %v1569
    %v1587 = vsel %vm1584, %v1569, %v1571
    %v1588 = vsel %vm1584, %v1571, %v1573
    %v1589 = vsel %vm1584, %v1573, %v1575
    %v1590 = vsel %vm1584, %v1575, %v1577
    %v1591 = vsel %vm1584, %v1577, %v1579
    %v1592 = vsel %vm1584, %v1579, %v1581
    %v1593 = vsel %vm1584, %v1581, %v1583
    %1603 = vst [vmem:[#allocation3 + $0x90] sm:$0xff] %v1585
    %1604 = vst [vmem:[#allocation3 + $0x98] sm:$0xff] %v1586
    %1605 = vst [vmem:[#allocation3 + $0xa0] sm:$0xff] %v1587
    %1606 = vst [vmem:[#allocation3 + $0xa8] sm:$0xff] %v1588
    %1607 = vst [vmem:[#allocation3 + $0xb0] sm:$0xff] %v1589
    %1608 = vst [vmem:[#allocation3 + $0xb8] sm:$0xff] %v1590
    %1609 = vst [vmem:[#allocation3 + $0xc0] sm:$0xff] %v1591
    %1610 = vst [vmem:[#allocation3 + $0xc8] sm:$0xff] %v1592
    %1611 = vst [vmem:[#allocation3 + $0xd0] sm:$0xff] %v1593
    %v1612 = vld [vmem:[#allocation2] sm:$0xff]
    %v1613 = vld [vmem:[#allocation2 + $0x8] sm:$0xff]
    %v1614 = vld [vmem:[#allocation2 + $0x10] sm:$0xff]
    %v1615 = vld [vmem:[#allocation2 + $0x18] sm:$0xff]
    %v1616 = vld [vmem:[#allocation2 + $0x20] sm:$0xff]
    %v1617 = vld [vmem:[#allocation2 + $0x28] sm:$0xff]
    %v1618 = vld [vmem:[#allocation2 + $0x30] sm:$0xff]
    %v1619 = vld [vmem:[#allocation2 + $0x38] sm:$0xff]
    %v1620 = vld [vmem:[#allocation2 + $0x40] sm:$0xff]
    %v1621 = vld [vmem:[#allocation2 + $0x48] sm:$0xff]
    %1632 = vrot.lane.b32.xlu0 %v1612, 94
    %v1633 = vpop.permute.xlu0 %1632
    %1634 = vrot.lane.b32.xlu0 %v1613, 94
    %v1635 = vpop.permute.xlu0 %1634
    %1636 = vrot.lane.b32.xlu0 %v1614, 94
    %v1637 = vpop.permute.xlu0 %1636
    %1638 = vrot.lane.b32.xlu0 %v1615, 94
    %v1639 = vpop.permute.xlu0 %1638
    %1640 = vrot.lane.b32.xlu0 %v1616, 94
    %v1641 = vpop.permute.xlu0 %1640
    %1642 = vrot.lane.b32.xlu0 %v1617, 94
    %v1643 = vpop.permute.xlu0 %1642
    %1644 = vrot.lane.b32.xlu0 %v1618, 94
    %v1645 = vpop.permute.xlu0 %1644
    %1646 = vrot.lane.b32.xlu0 %v1619, 94
    %v1647 = vpop.permute.xlu0 %1646
    %1648 = vrot.lane.b32.xlu0 %v1620, 94
    %v1649 = vpop.permute.xlu0 %1648
    %1650 = vrot.lane.b32.xlu0 %v1621, 94
    %v1651 = vpop.permute.xlu0 %1650
    %vm1652 = vcmask 769024
    %v1653 = vsel %vm1652, %v1633, %v1635
    %v1654 = vsel %vm1652, %v1635, %v1637
    %v1655 = vsel %vm1652, %v1637, %v1639
    %v1656 = vsel %vm1652, %v1639, %v1641
    %v1657 = vsel %vm1652, %v1641, %v1643
    %v1658 = vsel %vm1652, %v1643, %v1645
    %v1659 = vsel %vm1652, %v1645, %v1647
    %v1660 = vsel %vm1652, %v1647, %v1649
    %v1661 = vsel %vm1652, %v1649, %v1651
    %1671 = vst [vmem:[#allocation3 + $0xd8] sm:$0xff] %v1653
    %1672 = vst [vmem:[#allocation3 + $0xe0] sm:$0xff] %v1654
    %1673 = vst [vmem:[#allocation3 + $0xe8] sm:$0xff] %v1655
    %1674 = vst [vmem:[#allocation3 + $0xf0] sm:$0xff] %v1656
    %1675 = vst [vmem:[#allocation3 + $0xf8] sm:$0xff] %v1657
    %1676 = vst [vmem:[#allocation3 + $0x100] sm:$0xff] %v1658
    %1677 = vst [vmem:[#allocation3 + $0x108] sm:$0xff] %v1659
    %1678 = vst [vmem:[#allocation3 + $0x110] sm:$0xff] %v1660
    %1679 = vst [vmem:[#allocation3 + $0x118] sm:$0xff] %v1661
    %v1680 = vld [vmem:[#allocation2] sm:$0xff]
    %v1681 = vld [vmem:[#allocation2 + $0x8] sm:$0xff]
    %v1682 = vld [vmem:[#allocation2 + $0x10] sm:$0xff]
    %v1683 = vld [vmem:[#allocation2 + $0x18] sm:$0xff]
    %v1684 = vld [vmem:[#allocation2 + $0x20] sm:$0xff]
    %v1685 = vld [vmem:[#allocation2 + $0x28] sm:$0xff]
    %v1686 = vld [vmem:[#allocation2 + $0x30] sm:$0xff]
    %v1687 = vld [vmem:[#allocation2 + $0x38] sm:$0xff]
    %v1688 = vld [vmem:[#allocation2 + $0x40] sm:$0xff]
    %v1689 = vld [vmem:[#allocation2 + $0x48] sm:$0xff]
    %1700 = vrot.lane.b32.xlu0 %v1680, 93
    %v1701 = vpop.permute.xlu0 %1700
    %1702 = vrot.lane.b32.xlu0 %v1681, 93
    %v1703 = vpop.permute.xlu0 %1702
    %1704 = vrot.lane.b32.xlu0 %v1682, 93
    %v1705 = vpop.permute.xlu0 %1704
    %1706 = vrot.lane.b32.xlu0 %v1683, 93
    %v1707 = vpop.permute.xlu0 %1706
    %1708 = vrot.lane.b32.xlu0 %v1684, 93
    %v1709 = vpop.permute.xlu0 %1708
    %1710 = vrot.lane.b32.xlu0 %v1685, 93
    %v1711 = vpop.permute.xlu0 %1710
    %1712 = vrot.lane.b32.xlu0 %v1686, 93
    %v1713 = vpop.permute.xlu0 %1712
    %1714 = vrot.lane.b32.xlu0 %v1687, 93
    %v1715 = vpop.permute.xlu0 %1714
    %1716 = vrot.lane.b32.xlu0 %v1688, 93
    %v1717 = vpop.permute.xlu0 %1716
    %1718 = vrot.lane.b32.xlu0 %v1689, 93
    %v1719 = vpop.permute.xlu0 %1718
    %vm1720 = vcmask 760832
    %v1721 = vsel %vm1720, %v1701, %v1703
    %v1722 = vsel %vm1720, %v1703, %v1705
    %v1723 = vsel %vm1720, %v1705, %v1707
    %v1724 = vsel %vm1720, %v1707, %v1709
    %v1725 = vsel %vm1720, %v1709, %v1711
    %v1726 = vsel %vm1720, %v1711, %v1713
    %v1727 = vsel %vm1720, %v1713, %v1715
    %v1728 = vsel %vm1720, %v1715, %v1717
    %v1729 = vsel %vm1720, %v1717, %v1719
    %1739 = vst [vmem:[#allocation3 + $0x120] sm:$0xff] %v1721
    %1740 = vst [vmem:[#allocation3 + $0x128] sm:$0xff] %v1722
    %1741 = vst [vmem:[#allocation3 + $0x130] sm:$0xff] %v1723
    %1742 = vst [vmem:[#allocation3 + $0x138] sm:$0xff] %v1724
    %1743 = vst [vmem:[#allocation3 + $0x140] sm:$0xff] %v1725
    %1744 = vst [vmem:[#allocation3 + $0x148] sm:$0xff] %v1726
    %1745 = vst [vmem:[#allocation3 + $0x150] sm:$0xff] %v1727
    %1746 = vst [vmem:[#allocation3 + $0x158] sm:$0xff] %v1728
    %1747 = vst [vmem:[#allocation3 + $0x160] sm:$0xff] %v1729
    %v1748 = vld [vmem:[#allocation2] sm:$0xff]
    %v1749 = vld [vmem:[#allocation2 + $0x8] sm:$0xff]
    %v1750 = vld [vmem:[#allocation2 + $0x10] sm:$0xff]
    %v1751 = vld [vmem:[#allocation2 + $0x18] sm:$0xff]
    %v1752 = vld [vmem:[#allocation2 + $0x20] sm:$0xff]
    %v1753 = vld [vmem:[#allocation2 + $0x28] sm:$0xff]
    %v1754 = vld [vmem:[#allocation2 + $0x30] sm:$0xff]
    %v1755 = vld [vmem:[#allocation2 + $0x38] sm:$0xff]
    %v1756 = vld [vmem:[#allocation2 + $0x40] sm:$0xff]
    %v1757 = vld [vmem:[#allocation2 + $0x48] sm:$0xff]
    %1768 = vrot.lane.b32.xlu0 %v1748, 92
    %v1769 = vpop.permute.xlu0 %1768
    %1770 = vrot.lane.b32.xlu0 %v1749, 92
    %v1771 = vpop.permute.xlu0 %1770
    %1772 = vrot.lane.b32.xlu0 %v1750, 92
    %v1773 = vpop.permute.xlu0 %1772
    %1774 = vrot.lane.b32.xlu0 %v1751, 92
    %v1775 = vpop.permute.xlu0 %1774
    %1776 = vrot.lane.b32.xlu0 %v1752, 92
    %v1777 = vpop.permute.xlu0 %1776
    %1778 = vrot.lane.b32.xlu0 %v1753, 92
    %v1779 = vpop.permute.xlu0 %1778
    %1780 = vrot.lane.b32.xlu0 %v1754, 92
    %v1781 = vpop.permute.xlu0 %1780
    %1782 = vrot.lane.b32.xlu0 %v1755, 92
    %v1783 = vpop.permute.xlu0 %1782
    %1784 = vrot.lane.b32.xlu0 %v1756, 92
    %v1785 = vpop.permute.xlu0 %1784
    %1786 = vrot.lane.b32.xlu0 %v1757, 92
    %v1787 = vpop.permute.xlu0 %1786
    %vm1788 = vcmask 752640
    %v1789 = vsel %vm1788, %v1769, %v1771
    %v1790 = vsel %vm1788, %v1771, %v1773
    %v1791 = vsel %vm1788, %v1773, %v1775
    %v1792 = vsel %vm1788, %v1775, %v1777
    %v1793 = vsel %vm1788, %v1777, %v1779
    %v1794 = vsel %vm1788, %v1779, %v1781
    %v1795 = vsel %vm1788, %v1781, %v1783
    %v1796 = vsel %vm1788, %v1783, %v1785
    %v1797 = vsel %vm1788, %v1785, %v1787
    %1807 = vst [vmem:[#allocation3 + $0x168] sm:$0xff] %v1789
    %1808 = vst [vmem:[#allocation3 + $0x170] sm:$0xff] %v1790
    %1809 = vst [vmem:[#allocation3 + $0x178] sm:$0xff] %v1791
    %1810 = vst [vmem:[#allocation3 + $0x180] sm:$0xff] %v1792
    %1811 = vst [vmem:[#allocation3 + $0x188] sm:$0xff] %v1793
    %1812 = vst [vmem:[#allocation3 + $0x190] sm:$0xff] %v1794
    %1813 = vst [vmem:[#allocation3 + $0x198] sm:$0xff] %v1795
    %1814 = vst [vmem:[#allocation3 + $0x1a0] sm:$0xff] %v1796
    %1815 = vst [vmem:[#allocation3 + $0x1a8] sm:$0xff] %v1797
    %v1816 = vld [vmem:[#allocation2] sm:$0xff]
    %v1817 = vld [vmem:[#allocation2 + $0x8] sm:$0xff]
    %v1818 = vld [vmem:[#allocation2 + $0x10] sm:$0xff]
    %v1819 = vld [vmem:[#allocation2 + $0x18] sm:$0xff]
    %v1820 = vld [vmem:[#allocation2 + $0x20] sm:$0xff]
    %v1821 = vld [vmem:[#allocation2 + $0x28] sm:$0xff]
    %v1822 = vld [vmem:[#allocation2 + $0x30] sm:$0xff]
    %v1823 = vld [vmem:[#allocation2 + $0x38] sm:$0xff]
    %v1824 = vld [vmem:[#allocation2 + $0x40] sm:$0xff]
    %v1825 = vld [vmem:[#allocation2 + $0x48] sm:$0xff]
    %1836 = vrot.lane.b32.xlu0 %v1816, 60
    %v1837 = vpop.permute.xlu0 %1836
    %1838 = vrot.lane.b32.xlu0 %v1817, 60
    %v1839 = vpop.permute.xlu0 %1838
    %1840 = vrot.lane.b32.xlu0 %v1818, 60
    %v1841 = vpop.permute.xlu0 %1840
    %1842 = vrot.lane.b32.xlu0 %v1819, 60
    %v1843 = vpop.permute.xlu0 %1842
    %1844 = vrot.lane.b32.xlu0 %v1820, 60
    %v1845 = vpop.permute.xlu0 %1844
    %1846 = vrot.lane.b32.xlu0 %v1821, 60
    %v1847 = vpop.permute.xlu0 %1846
    %1848 = vrot.lane.b32.xlu0 %v1822, 60
    %v1849 = vpop.permute.xlu0 %1848
    %1850 = vrot.lane.b32.xlu0 %v1823, 60
    %v1851 = vpop.permute.xlu0 %1850
    %1852 = vrot.lane.b32.xlu0 %v1824, 60
    %v1853 = vpop.permute.xlu0 %1852
    %1854 = vrot.lane.b32.xlu0 %v1825, 60
    %v1855 = vpop.permute.xlu0 %1854
    %vm1856 = vcmask 490496
    %v1857 = vsel %vm1856, %v1837, %v1839
    %v1858 = vsel %vm1856, %v1839, %v1841
    %v1859 = vsel %vm1856, %v1841, %v1843
    %v1860 = vsel %vm1856, %v1843, %v1845
    %v1861 = vsel %vm1856, %v1845, %v1847
    %v1862 = vsel %vm1856, %v1847, %v1849
    %v1863 = vsel %vm1856, %v1849, %v1851
    %v1864 = vsel %vm1856, %v1851, %v1853
    %v1865 = vsel %vm1856, %v1853, %v1855
    %1875 = vst [vmem:[#allocation3 + $0x1b0] sm:$0xff] %v1857
    %1876 = vst [vmem:[#allocation3 + $0x1b8] sm:$0xff] %v1858
    %1877 = vst [vmem:[#allocation3 + $0x1c0] sm:$0xff] %v1859
    %1878 = vst [vmem:[#allocation3 + $0x1c8] sm:$0xff] %v1860
    %1879 = vst [vmem:[#allocation3 + $0x1d0] sm:$0xff] %v1861
    %1880 = vst [vmem:[#allocation3 + $0x1d8] sm:$0xff] %v1862
    %1881 = vst [vmem:[#allocation3 + $0x1e0] sm:$0xff] %v1863
    %1882 = vst [vmem:[#allocation3 + $0x1e8] sm:$0xff] %v1864
    %1883 = vst [vmem:[#allocation3 + $0x1f0] sm:$0xff] %v1865
    %v1884 = vld [vmem:[#allocation2] sm:$0xff]
    %v1885 = vld [vmem:[#allocation2 + $0x8] sm:$0xff]
    %v1886 = vld [vmem:[#allocation2 + $0x10] sm:$0xff]
    %v1887 = vld [vmem:[#allocation2 + $0x18] sm:$0xff]
    %v1888 = vld [vmem:[#allocation2 + $0x20] sm:$0xff]
    %v1889 = vld [vmem:[#allocation2 + $0x28] sm:$0xff]
    %v1890 = vld [vmem:[#allocation2 + $0x30] sm:$0xff]
    %v1891 = vld [vmem:[#allocation2 + $0x38] sm:$0xff]
    %v1892 = vld [vmem:[#allocation2 + $0x40] sm:$0xff]
    %v1893 = vld [vmem:[#allocation2 + $0x48] sm:$0xff]
    %1904 = vrot.lane.b32.xlu0 %v1884, 59
    %v1905 = vpop.permute.xlu0 %1904
    %1906 = vrot.lane.b32.xlu0 %v1885, 59
    %v1907 = vpop.permute.xlu0 %1906
    %1908 = vrot.lane.b32.xlu0 %v1886, 59
    %v1909 = vpop.permute.xlu0 %1908
    %1910 = vrot.lane.b32.xlu0 %v1887, 59
    %v1911 = vpop.permute.xlu0 %1910
    %1912 = vrot.lane.b32.xlu0 %v1888, 59
    %v1913 = vpop.permute.xlu0 %1912
    %1914 = vrot.lane.b32.xlu0 %v1889, 59
    %v1915 = vpop.permute.xlu0 %1914
    %1916 = vrot.lane.b32.xlu0 %v1890, 59
    %v1917 = vpop.permute.xlu0 %1916
    %1918 = vrot.lane.b32.xlu0 %v1891, 59
    %v1919 = vpop.permute.xlu0 %1918
    %1920 = vrot.lane.b32.xlu0 %v1892, 59
    %v1921 = vpop.permute.xlu0 %1920
    %1922 = vrot.lane.b32.xlu0 %v1893, 59
    %v1923 = vpop.permute.xlu0 %1922
    %vm1924 = vcmask 482304
    %v1925 = vsel %vm1924, %v1905, %v1907
    %v1926 = vsel %vm1924, %v1907, %v1909
    %v1927 = vsel %vm1924, %v1909, %v1911
    %v1928 = vsel %vm1924, %v1911, %v1913
    %v1929 = vsel %vm1924, %v1913, %v1915
    %v1930 = vsel %vm1924, %v1915, %v1917
    %v1931 = vsel %vm1924, %v1917, %v1919
    %v1932 = vsel %vm1924, %v1919, %v1921
    %v1933 = vsel %vm1924, %v1921, %v1923
    %1943 = vst [vmem:[#allocation3 + $0x1f8] sm:$0xff] %v1925
    %1944 = vst [vmem:[#allocation3 + $0x200] sm:$0xff] %v1926
    %1945 = vst [vmem:[#allocation3 + $0x208] sm:$0xff] %v1927
    %1946 = vst [vmem:[#allocation3 + $0x210] sm:$0xff] %v1928
    %1947 = vst [vmem:[#allocation3 + $0x218] sm:$0xff] %v1929
    %1948 = vst [vmem:[#allocation3 + $0x220] sm:$0xff] %v1930
    %1949 = vst [vmem:[#allocation3 + $0x228] sm:$0xff] %v1931
    %1950 = vst [vmem:[#allocation3 + $0x230] sm:$0xff] %v1932
    %1951 = vst [vmem:[#allocation3 + $0x238] sm:$0xff] %v1933
    %v1952 = vld [vmem:[#allocation2] sm:$0xff]
    %v1953 = vld [vmem:[#allocation2 + $0x8] sm:$0xff]
    %v1954 = vld [vmem:[#allocation2 + $0x10] sm:$0xff]
    %v1955 = vld [vmem:[#allocation2 + $0x18] sm:$0xff]
    %v1956 = vld [vmem:[#allocation2 + $0x20] sm:$0xff]
    %v1957 = vld [vmem:[#allocation2 + $0x28] sm:$0xff]
    %v1958 = vld [vmem:[#allocation2 + $0x30] sm:$0xff]
    %v1959 = vld [vmem:[#allocation2 + $0x38] sm:$0xff]
    %v1960 = vld [vmem:[#allocation2 + $0x40] sm:$0xff]
    %v1961 = vld [vmem:[#allocation2 + $0x48] sm:$0xff]
    %1972 = vrot.lane.b32.xlu0 %v1952, 58
    %v1973 = vpop.permute.xlu0 %1972
    %1974 = vrot.lane.b32.xlu0 %v1953, 58
    %v1975 = vpop.permute.xlu0 %1974
    %1976 = vrot.lane.b32.xlu0 %v1954, 58
    %v1977 = vpop.permute.xlu0 %1976
    %1978 = vrot.lane.b32.xlu0 %v1955, 58
    %v1979 = vpop.permute.xlu0 %1978
    %1980 = vrot.lane.b32.xlu0 %v1956, 58
    %v1981 = vpop.permute.xlu0 %1980
    %1982 = vrot.lane.b32.xlu0 %v1957, 58
    %v1983 = vpop.permute.xlu0 %1982
    %1984 = vrot.lane.b32.xlu0 %v1958, 58
    %v1985 = vpop.permute.xlu0 %1984
    %1986 = vrot.lane.b32.xlu0 %v1959, 58
    %v1987 = vpop.permute.xlu0 %1986
    %1988 = vrot.lane.b32.xlu0 %v1960, 58
    %v1989 = vpop.permute.xlu0 %1988
    %1990 = vrot.lane.b32.xlu0 %v1961, 58
    %v1991 = vpop.permute.xlu0 %1990
    %vm1992 = vcmask 474112
    %v1993 = vsel %vm1992, %v1973, %v1975
    %v1994 = vsel %vm1992, %v1975, %v1977
    %v1995 = vsel %vm1992, %v1977, %v1979
    %v1996 = vsel %vm1992, %v1979, %v1981
    %v1997 = vsel %vm1992, %v1981, %v1983
    %v1998 = vsel %vm1992, %v1983, %v1985
    %v1999 = vsel %vm1992, %v1985, %v1987
    %v2000 = vsel %vm1992, %v1987, %v1989
    %v2001 = vsel %vm1992, %v1989, %v1991
    %2011 = vst [vmem:[#allocation3 + $0x240] sm:$0xff] %v1993
    %2012 = vst [vmem:[#allocation3 + $0x248] sm:$0xff] %v1994
    %2013 = vst [vmem:[#allocation3 + $0x250] sm:$0xff] %v1995
    %2014 = vst [vmem:[#allocation3 + $0x258] sm:$0xff] %v1996
    %2015 = vst [vmem:[#allocation3 + $0x260] sm:$0xff] %v1997
    %2016 = vst [vmem:[#allocation3 + $0x268] sm:$0xff] %v1998
    %2017 = vst [vmem:[#allocation3 + $0x270] sm:$0xff] %v1999
    %2018 = vst [vmem:[#allocation3 + $0x278] sm:$0xff] %v2000
    %2019 = vst [vmem:[#allocation3 + $0x280] sm:$0xff] %v2001
    %v2020 = vld [vmem:[%s3] sm:$0xff]
    %v2021 = vld [vmem:[%s3 + $0x8] sm:$0xff]
    %v2022 = vld [vmem:[#allocation3] sm:$0xff]
    %v2023 = vld [vmem:[#allocation3 + $0x8] sm:$0xff]
    %v2024 = vld [vmem:[#allocation3 + $0x10] sm:$0xff]
    %v2025 = vld [vmem:[#allocation3 + $0x18] sm:$0xff]
    %v2026 = vld [vmem:[#allocation3 + $0x20] sm:$0xff]
    %v2027 = vld [vmem:[#allocation3 + $0x28] sm:$0xff]
    %v2028 = vld [vmem:[#allocation3 + $0x30] sm:$0xff]
    %v2029 = vld [vmem:[#allocation3 + $0x38] sm:$0xff]
    %v2030 = vld [vmem:[#allocation3 + $0x40] sm:$0xff]
    %v2031 = vld [vmem:[#allocation3 + $0x48] sm:$0xff]
    %v2032 = vld [vmem:[#allocation3 + $0x50] sm:$0xff]
    %v2033 = vld [vmem:[#allocation3 + $0x58] sm:$0xff]
    %v2034 = vld [vmem:[#allocation3 + $0x60] sm:$0xff]
    %v2035 = vld [vmem:[#allocation3 + $0x68] sm:$0xff]
    %v2036 = vld [vmem:[#allocation3 + $0x70] sm:$0xff]
    %v2037 = vld [vmem:[#allocation3 + $0x78] sm:$0xff]
    %v2038 = vld [vmem:[#allocation3 + $0x80] sm:$0xff]
    %v2039 = vld [vmem:[#allocation3 + $0x88] sm:$0xff]
    %v2040 = vld [vmem:[#allocation3 + $0x90] sm:$0xff]
    %v2041 = vld [vmem:[#allocation3 + $0x98] sm:$0xff]
    %v2042 = vld [vmem:[#allocation3 + $0xa0] sm:$0xff]
    %v2043 = vld [vmem:[#allocation3 + $0xa8] sm:$0xff]
    %v2044 = vld [vmem:[#allocation3 + $0xb0] sm:$0xff]
    %v2045 = vld [vmem:[#allocation3 + $0xb8] sm:$0xff]
    %v2046 = vld [vmem:[#allocation3 + $0xc0] sm:$0xff]
    %v2047 = vld [vmem:[#allocation3 + $0xc8] sm:$0xff]
    %v2048 = vld [vmem:[#allocation3 + $0xd0] sm:$0xff]
    %v2049 = vld [vmem:[#allocation3 + $0xd8] sm:$0xff]
    %v2050 = vld [vmem:[#allocation3 + $0xe0] sm:$0xff]
    %v2051 = vld [vmem:[#allocation3 + $0xe8] sm:$0xff]
    %v2052 = vld [vmem:[#allocation3 + $0xf0] sm:$0xff]
    %v2053 = vld [vmem:[#allocation3 + $0xf8] sm:$0xff]
    %v2054 = vld [vmem:[#allocation3 + $0x100] sm:$0xff]
    %v2055 = vld [vmem:[#allocation3 + $0x108] sm:$0xff]
    %v2056 = vld [vmem:[#allocation3 + $0x110] sm:$0xff]
    %v2057 = vld [vmem:[#allocation3 + $0x118] sm:$0xff]
    %v2058 = vld [vmem:[#allocation3 + $0x120] sm:$0xff]
    %v2059 = vld [vmem:[#allocation3 + $0x128] sm:$0xff]
    %v2060 = vld [vmem:[#allocation3 + $0x130] sm:$0xff]
    %v2061 = vld [vmem:[#allocation3 + $0x138] sm:$0xff]
    %v2062 = vld [vmem:[#allocation3 + $0x140] sm:$0xff]
    %v2063 = vld [vmem:[#allocation3 + $0x148] sm:$0xff]
    %v2064 = vld [vmem:[#allocation3 + $0x150] sm:$0xff]
    %v2065 = vld [vmem:[#allocation3 + $0x158] sm:$0xff]
    %v2066 = vld [vmem:[#allocation3 + $0x160] sm:$0xff]
    %v2067 = vld [vmem:[#allocation3 + $0x168] sm:$0xff]
    %v2068 = vld [vmem:[#allocation3 + $0x170] sm:$0xff]
    %v2069 = vld [vmem:[#allocation3 + $0x178] sm:$0xff]
    %v2070 = vld [vmem:[#allocation3 + $0x180] sm:$0xff]
    %v2071 = vld [vmem:[#allocation3 + $0x188] sm:$0xff]
    %v2072 = vld [vmem:[#allocation3 + $0x190] sm:$0xff]
    %v2073 = vld [vmem:[#allocation3 + $0x198] sm:$0xff]
    %v2074 = vld [vmem:[#allocation3 + $0x1a0] sm:$0xff]
    %v2075 = vld [vmem:[#allocation3 + $0x1a8] sm:$0xff]
    %v2076 = vld [vmem:[#allocation3 + $0x1b0] sm:$0xff]
    %v2077 = vld [vmem:[#allocation3 + $0x1b8] sm:$0xff]
    %v2078 = vld [vmem:[#allocation3 + $0x1c0] sm:$0xff]
    %v2079 = vld [vmem:[#allocation3 + $0x1c8] sm:$0xff]
    %v2080 = vld [vmem:[#allocation3 + $0x1d0] sm:$0xff]
    %v2081 = vld [vmem:[#allocation3 + $0x1d8] sm:$0xff]
    %v2082 = vld [vmem:[#allocation3 + $0x1e0] sm:$0xff]
    %v2083 = vld [vmem:[#allocation3 + $0x1e8] sm:$0xff]
    %v2084 = vld [vmem:[#allocation3 + $0x1f0] sm:$0xff]
    %v2085 = vld [vmem:[#allocation3 + $0x1f8] sm:$0xff]
    %v2086 = vld [vmem:[#allocation3 + $0x200] sm:$0xff]
    %v2087 = vld [vmem:[#allocation3 + $0x208] sm:$0xff]
    %v2088 = vld [vmem:[#allocation3 + $0x210] sm:$0xff]
    %v2089 = vld [vmem:[#allocation3 + $0x218] sm:$0xff]
    %v2090 = vld [vmem:[#allocation3 + $0x220] sm:$0xff]
    %v2091 = vld [vmem:[#allocation3 + $0x228] sm:$0xff]
    %v2092 = vld [vmem:[#allocation3 + $0x230] sm:$0xff]
    %v2093 = vld [vmem:[#allocation3 + $0x238] sm:$0xff]
    %v2094 = vld [vmem:[#allocation3 + $0x240] sm:$0xff]
    %v2095 = vld [vmem:[#allocation3 + $0x248] sm:$0xff]
    %v2096 = vld [vmem:[#allocation3 + $0x250] sm:$0xff]
    %v2097 = vld [vmem:[#allocation3 + $0x258] sm:$0xff]
    %v2098 = vld [vmem:[#allocation3 + $0x260] sm:$0xff]
    %v2099 = vld [vmem:[#allocation3 + $0x268] sm:$0xff]
    %v2100 = vld [vmem:[#allocation3 + $0x270] sm:$0xff]
    %v2101 = vld [vmem:[#allocation3 + $0x278] sm:$0xff]
    %v2102 = vld [vmem:[#allocation3 + $0x280] sm:$0xff]
    %vm2103 = vcmask 588800
    %v2105 = vsel %vm2103, %v2020, 0
    %v2108 = vsel %vm2103, %v2021, 0
    %2110 = vmatprep.subr.mxu0 0.0
    %2111 = vmatpush1.msra.mxu0 0.0
    %2112 = vmatprep.subr.mxu0 0.0
    %2113 = vmatpush1.msra.mxu0 0.0
    %2114 = vmatprep.subr.mxu0 0.0
    %2115 = vmatpush1.msra.mxu0 0.0
    %2116 = vmatprep.subr.mxu0 0.0
    %2117 = vmatpush1.msra.mxu0 0.0
    %2118 = vmatprep.subr.mxu0 0.0
    %2119 = vmatpush1.msra.mxu0 0.0
    %2120 = vmatprep.subr.mxu0 0.0
    %2121 = vmatpush1.msra.mxu0 0.0
    %2122 = vmatprep.subr.mxu0 0.0
    %2123 = vmatpush1.msra.mxu0 0.0
    %2124 = vmatprep.subr.mxu0 %v2095
    %2125 = vmatpush1.msra.mxu0 %v2094
    %2126 = vmatprep.subr.mxu0 %v2086
    %2127 = vmatpush1.msra.mxu0 %v2085
    %2128 = vmatprep.subr.mxu0 %v2077
    %2129 = vmatpush1.msra.mxu0 %v2076
    %2130 = vmatprep.subr.mxu0 %v2068
    %2131 = vmatpush1.msra.mxu0 %v2067
    %2132 = vmatprep.subr.mxu0 %v2059
    %2133 = vmatpush1.msra.mxu0 %v2058
    %2134 = vmatprep.subr.mxu0 %v2050
    %2135 = vmatpush1.msra.mxu0 %v2049
    %2136 = vmatprep.subr.mxu0 %v2041
    %2137 = vmatpush1.msra.mxu0 %v2040
    %2138 = vmatprep.subr.mxu0 %v2032
    %2139 = vmatpush1.msra.mxu0 %v2031
    %2140 = vmatprep.subr.mxu0 %v2023
    %2141 = vmatpush1.msra.mxu0 %v2022
    %2142 = vmatprep.subr.mxu0 0.0
    %2143 = vmatpush2.msra.mxu0 0.0
    %2144 = vmatprep.subr.mxu0 0.0
    %2145 = vmatpush2.msra.mxu0 0.0
    %2146 = vmatprep.subr.mxu0 0.0
    %2147 = vmatpush2.msra.mxu0 0.0
    %2148 = vmatprep.subr.mxu0 0.0
    %2149 = vmatpush2.msra.mxu0 0.0
    %2150 = vmatprep.subr.mxu0 0.0
    %2151 = vmatpush2.msra.mxu0 0.0
    %2152 = vmatprep.subr.mxu0 0.0
    %2153 = vmatpush2.msra.mxu0 0.0
    %2154 = vmatprep.subr.mxu0 0.0
    %2155 = vmatpush2.msra.mxu0 0.0
    %2156 = vmatprep.subr.mxu0 0.0
    %2157 = vmatpush2.msra.mxu0 0.0
    %2158 = vmatprep.subr.mxu0 0.0
    %2159 = vmatpush2.msra.mxu0 0.0
    %2160 = vmatprep.subr.mxu0 0.0
    %2161 = vmatpush2.msra.mxu0 0.0
    %2162 = vmatprep.subr.mxu0 0.0
    %2163 = vmatpush2.msra.mxu0 0.0
    %2164 = vmatprep.subr.mxu0 0.0
    %2165 = vmatpush2.msra.mxu0 0.0
    %2166 = vmatprep.subr.mxu0 0.0
    %2167 = vmatpush2.msra.mxu0 0.0
    %2168 = vmatprep.subr.mxu0 0.0
    %2169 = vmatpush2.msra.mxu0 0.0
    %2170 = vmatprep.subr.mxu0 0.0
    %2171 = vmatpush2.msra.mxu0 0.0
    %2172 = vmatprep.subr.mxu0 0.0
    %2173 = vmatpush2.msra.mxu0 0.0
    %2174 = vmatprep.mubr.f32.mxu0 0.0
    %2175 = vmatmul.mubr.f32.gmra.mxu0 %v2105
    %v2176 = vpop.f32.mrf.mxu0
    %v2177 = vadd.f32 0.0, %v2176
    %v2178 = vpop.f32.mrf.mxu0
    %v2179 = vadd.f32 0.0, %v2178
    %2180 = vmatprep.mubr.f32.mxu0 0.0
    %2181 = vmatmul.mubr.f32.gmra.mxu0 %v2108
    %v2182 = vpop.f32.mrf.mxu0
    %v2183 = vadd.f32 0.0, %v2182
    %v2184 = vpop.f32.mrf.mxu0
    %v2185 = vadd.f32 0.0, %v2184
    %2186 = vdwg.mxu0
    %2187 = vmatprep.subr.mxu0 0.0
    %2188 = vmatpush1.msra.mxu0 0.0
    %2189 = vmatprep.subr.mxu0 0.0
    %2190 = vmatpush1.msra.mxu0 0.0
    %2191 = vmatprep.subr.mxu0 0.0
    %2192 = vmatpush1.msra.mxu0 0.0
    %2193 = vmatprep.subr.mxu0 0.0
    %2194 = vmatpush1.msra.mxu0 0.0
    %2195 = vmatprep.subr.mxu0 0.0
    %2196 = vmatpush1.msra.mxu0 0.0
    %2197 = vmatprep.subr.mxu0 0.0
    %2198 = vmatpush1.msra.mxu0 0.0
    %2199 = vmatprep.subr.mxu0 0.0
    %2200 = vmatpush1.msra.mxu0 0.0
    %2201 = vmatprep.subr.mxu0 %v2097
    %2202 = vmatpush1.msra.mxu0 %v2096
    %2203 = vmatprep.subr.mxu0 %v2088
    %2204 = vmatpush1.msra.mxu0 %v2087
    %2205 = vmatprep.subr.mxu0 %v2079
    %2206 = vmatpush1.msra.mxu0 %v2078
    %2207 = vmatprep.subr.mxu0 %v2070
    %2208 = vmatpush1.msra.mxu0 %v2069
    %2209 = vmatprep.subr.mxu0 %v2061
    %2210 = vmatpush1.msra.mxu0 %v2060
    %2211 = vmatprep.subr.mxu0 %v2052
    %2212 = vmatpush1.msra.mxu0 %v2051
    %2213 = vmatprep.subr.mxu0 %v2043
    %2214 = vmatpush1.msra.mxu0 %v2042
    %2215 = vmatprep.subr.mxu0 %v2034
    %2216 = vmatpush1.msra.mxu0 %v2033
    %2217 = vmatprep.subr.mxu0 %v2025
    %2218 = vmatpush1.msra.mxu0 %v2024
    %2219 = vmatprep.subr.mxu0 0.0
    %2220 = vmatpush2.msra.mxu0 0.0
    %2221 = vmatprep.subr.mxu0 0.0
    %2222 = vmatpush2.msra.mxu0 0.0
    %2223 = vmatprep.subr.mxu0 0.0
    %2224 = vmatpush2.msra.mxu0 0.0
    %2225 = vmatprep.subr.mxu0 0.0
    %2226 = vmatpush2.msra.mxu0 0.0
    %2227 = vmatprep.subr.mxu0 0.0
    %2228 = vmatpush2.msra.mxu0 0.0
    %2229 = vmatprep.subr.mxu0 0.0
    %2230 = vmatpush2.msra.mxu0 0.0
    %2231 = vmatprep.subr.mxu0 0.0
    %2232 = vmatpush2.msra.mxu0 0.0
    %2233 = vmatprep.subr.mxu0 0.0
    %2234 = vmatpush2.msra.mxu0 0.0
    %2235 = vmatprep.subr.mxu0 0.0
    %2236 = vmatpush2.msra.mxu0 0.0
    %2237 = vmatprep.subr.mxu0 0.0
    %2238 = vmatpush2.msra.mxu0 0.0
    %2239 = vmatprep.subr.mxu0 0.0
    %2240 = vmatpush2.msra.mxu0 0.0
    %2241 = vmatprep.subr.mxu0 0.0
    %2242 = vmatpush2.msra.mxu0 0.0
    %2243 = vmatprep.subr.mxu0 0.0
    %2244 = vmatpush2.msra.mxu0 0.0
    %2245 = vmatprep.subr.mxu0 0.0
    %2246 = vmatpush2.msra.mxu0 0.0
    %2247 = vmatprep.subr.mxu0 0.0
    %2248 = vmatpush2.msra.mxu0 0.0
    %2249 = vmatprep.subr.mxu0 0.0
    %2250 = vmatpush2.msra.mxu0 0.0
    %2251 = vmatprep.mubr.f32.mxu0 0.0
    %2252 = vmatmul.mubr.f32.gmra.mxu0 %v2105
    %v2253 = vpop.f32.mrf.mxu0
    %v2254 = vadd.f32 0.0, %v2253
    %v2255 = vpop.f32.mrf.mxu0
    %v2256 = vadd.f32 0.0, %v2255
    %2257 = vmatprep.mubr.f32.mxu0 0.0
    %2258 = vmatmul.mubr.f32.gmra.mxu0 %v2108
    %v2259 = vpop.f32.mrf.mxu0
    %v2260 = vadd.f32 0.0, %v2259
    %v2261 = vpop.f32.mrf.mxu0
    %v2262 = vadd.f32 0.0, %v2261
    %2263 = vdwg.mxu0
    %2264 = vmatprep.subr.mxu0 0.0
    %2265 = vmatpush1.msra.mxu0 0.0
    %2266 = vmatprep.subr.mxu0 0.0
    %2267 = vmatpush1.msra.mxu0 0.0
    %2268 = vmatprep.subr.mxu0 0.0
    %2269 = vmatpush1.msra.mxu0 0.0
    %2270 = vmatprep.subr.mxu0 0.0
    %2271 = vmatpush1.msra.mxu0 0.0
    %2272 = vmatprep.subr.mxu0 0.0
    %2273 = vmatpush1.msra.mxu0 0.0
    %2274 = vmatprep.subr.mxu0 0.0
    %2275 = vmatpush1.msra.mxu0 0.0
    %2276 = vmatprep.subr.mxu0 0.0
    %2277 = vmatpush1.msra.mxu0 0.0
    %2278 = vmatprep.subr.mxu0 %v2099
    %2279 = vmatpush1.msra.mxu0 %v2098
    %2280 = vmatprep.subr.mxu0 %v2090
    %2281 = vmatpush1.msra.mxu0 %v2089
    %2282 = vmatprep.subr.mxu0 %v2081
    %2283 = vmatpush1.msra.mxu0 %v2080
    %2284 = vmatprep.subr.mxu0 %v2072
    %2285 = vmatpush1.msra.mxu0 %v2071
    %2286 = vmatprep.subr.mxu0 %v2063
    %2287 = vmatpush1.msra.mxu0 %v2062
    %2288 = vmatprep.subr.mxu0 %v2054
    %2289 = vmatpush1.msra.mxu0 %v2053
    %2290 = vmatprep.subr.mxu0 %v2045
    %2291 = vmatpush1.msra.mxu0 %v2044
    %2292 = vmatprep.subr.mxu0 %v2036
    %2293 = vmatpush1.msra.mxu0 %v2035
    %2294 = vmatprep.subr.mxu0 %v2027
    %2295 = vmatpush1.msra.mxu0 %v2026
    %2296 = vmatprep.subr.mxu0 0.0
    %2297 = vmatpush2.msra.mxu0 0.0
    %2298 = vmatprep.subr.mxu0 0.0
    %2299 = vmatpush2.msra.mxu0 0.0
    %2300 = vmatprep.subr.mxu0 0.0
    %2301 = vmatpush2.msra.mxu0 0.0
    %2302 = vmatprep.subr.mxu0 0.0
    %2303 = vmatpush2.msra.mxu0 0.0
    %2304 = vmatprep.subr.mxu0 0.0
    %2305 = vmatpush2.msra.mxu0 0.0
    %2306 = vmatprep.subr.mxu0 0.0
    %2307 = vmatpush2.msra.mxu0 0.0
    %2308 = vmatprep.subr.mxu0 0.0
    %2309 = vmatpush2.msra.mxu0 0.0
    %2310 = vmatprep.subr.mxu0 0.0
    %2311 = vmatpush2.msra.mxu0 0.0
    %2312 = vmatprep.subr.mxu0 0.0
    %2313 = vmatpush2.msra.mxu0 0.0
    %2314 = vmatprep.subr.mxu0 0.0
    %2315 = vmatpush2.msra.mxu0 0.0
    %2316 = vmatprep.subr.mxu0 0.0
    %2317 = vmatpush2.msra.mxu0 0.0
    %2318 = vmatprep.subr.mxu0 0.0
    %2319 = vmatpush2.msra.mxu0 0.0
    %2320 = vmatprep.subr.mxu0 0.0
    %2321 = vmatpush2.msra.mxu0 0.0
    %2322 = vmatprep.subr.mxu0 0.0
    %2323 = vmatpush2.msra.mxu0 0.0
    %2324 = vmatprep.subr.mxu0 0.0
    %2325 = vmatpush2.msra.mxu0 0.0
    %2326 = vmatprep.subr.mxu0 0.0
    %2327 = vmatpush2.msra.mxu0 0.0
    %2328 = vmatprep.mubr.f32.mxu0 0.0
    %2329 = vmatmul.mubr.f32.gmra.mxu0 %v2105
    %v2330 = vpop.f32.mrf.mxu0
    %v2331 = vadd.f32 0.0, %v2330
    %v2332 = vpop.f32.mrf.mxu0
    %v2333 = vadd.f32 0.0, %v2332
    %2334 = vmatprep.mubr.f32.mxu0 0.0
    %2335 = vmatmul.mubr.f32.gmra.mxu0 %v2108
    %v2336 = vpop.f32.mrf.mxu0
    %v2337 = vadd.f32 0.0, %v2336
    %v2338 = vpop.f32.mrf.mxu0
    %v2339 = vadd.f32 0.0, %v2338
    %2340 = vdwg.mxu0
    %2341 = vmatprep.subr.mxu0 0.0
    %2342 = vmatpush1.msra.mxu0 0.0
    %2343 = vmatprep.subr.mxu0 0.0
    %2344 = vmatpush1.msra.mxu0 0.0
    %2345 = vmatprep.subr.mxu0 0.0
    %2346 = vmatpush1.msra.mxu0 0.0
    %2347 = vmatprep.subr.mxu0 0.0
    %2348 = vmatpush1.msra.mxu0 0.0
    %2349 = vmatprep.subr.mxu0 0.0
    %2350 = vmatpush1.msra.mxu0 0.0
    %2351 = vmatprep.subr.mxu0 0.0
    %2352 = vmatpush1.msra.mxu0 0.0
    %2353 = vmatprep.subr.mxu0 0.0
    %2354 = vmatpush1.msra.mxu0 0.0
    %2355 = vmatprep.subr.mxu0 %v2101
    %2356 = vmatpush1.msra.mxu0 %v2100
    %2357 = vmatprep.subr.mxu0 %v2092
    %2358 = vmatpush1.msra.mxu0 %v2091
    %2359 = vmatprep.subr.mxu0 %v2083
    %2360 = vmatpush1.msra.mxu0 %v2082
    %2361 = vmatprep.subr.mxu0 %v2074
    %2362 = vmatpush1.msra.mxu0 %v2073
    %2363 = vmatprep.subr.mxu0 %v2065
    %2364 = vmatpush1.msra.mxu0 %v2064
    %2365 = vmatprep.subr.mxu0 %v2056
    %2366 = vmatpush1.msra.mxu0 %v2055
    %2367 = vmatprep.subr.mxu0 %v2047
    %2368 = vmatpush1.msra.mxu0 %v2046
    %2369 = vmatprep.subr.mxu0 %v2038
    %2370 = vmatpush1.msra.mxu0 %v2037
    %2371 = vmatprep.subr.mxu0 %v2029
    %2372 = vmatpush1.msra.mxu0 %v2028
    %2373 = vmatprep.subr.mxu0 0.0
    %2374 = vmatpush2.msra.mxu0 0.0
    %2375 = vmatprep.subr.mxu0 0.0
    %2376 = vmatpush2.msra.mxu0 0.0
    %2377 = vmatprep.subr.mxu0 0.0
    %2378 = vmatpush2.msra.mxu0 0.0
    %2379 = vmatprep.subr.mxu0 0.0
    %2380 = vmatpush2.msra.mxu0 0.0
    %2381 = vmatprep.subr.mxu0 0.0
    %2382 = vmatpush2.msra.mxu0 0.0
    %2383 = vmatprep.subr.mxu0 0.0
    %2384 = vmatpush2.msra.mxu0 0.0
    %2385 = vmatprep.subr.mxu0 0.0
    %2386 = vmatpush2.msra.mxu0 0.0
    %2387 = vmatprep.subr.mxu0 0.0
    %2388 = vmatpush2.msra.mxu0 0.0
    %2389 = vmatprep.subr.mxu0 0.0
    %2390 = vmatpush2.msra.mxu0 0.0
    %2391 = vmatprep.subr.mxu0 0.0
    %2392 = vmatpush2.msra.mxu0 0.0
    %2393 = vmatprep.subr.mxu0 0.0
    %2394 = vmatpush2.msra.mxu0 0.0
    %2395 = vmatprep.subr.mxu0 0.0
    %2396 = vmatpush2.msra.mxu0 0.0
    %2397 = vmatprep.subr.mxu0 0.0
    %2398 = vmatpush2.msra.mxu0 0.0
    %2399 = vmatprep.subr.mxu0 0.0
    %2400 = vmatpush2.msra.mxu0 0.0
    %2401 = vmatprep.subr.mxu0 0.0
    %2402 = vmatpush2.msra.mxu0 0.0
    %2403 = vmatprep.subr.mxu0 0.0
    %2404 = vmatpush2.msra.mxu0 0.0
    %2405 = vmatprep.mubr.f32.mxu0 0.0
    %2406 = vmatmul.mubr.f32.gmra.mxu0 %v2105
    %v2407 = vpop.f32.mrf.mxu0
    %v2408 = vadd.f32 0.0, %v2407
    %v2409 = vpop.f32.mrf.mxu0
    %v2410 = vadd.f32 0.0, %v2409
    %2411 = vmatprep.mubr.f32.mxu0 0.0
    %2412 = vmatmul.mubr.f32.gmra.mxu0 %v2108
    %v2413 = vpop.f32.mrf.mxu0
    %v2414 = vadd.f32 0.0, %v2413
    %v2415 = vpop.f32.mrf.mxu0
    %v2416 = vadd.f32 0.0, %v2415
    %2417 = vdwg.mxu0
    %2418 = vmatprep.subr.mxu0 0.0
    %2419 = vmatpush1.msra.mxu0 0.0
    %2420 = vmatprep.subr.mxu0 0.0
    %2421 = vmatpush1.msra.mxu0 0.0
    %2422 = vmatprep.subr.mxu0 0.0
    %2423 = vmatpush1.msra.mxu0 0.0
    %2424 = vmatprep.subr.mxu0 0.0
    %2425 = vmatpush1.msra.mxu0 0.0
    %2426 = vmatprep.subr.mxu0 0.0
    %2427 = vmatpush1.msra.mxu0 0.0
    %2428 = vmatprep.subr.mxu0 0.0
    %2429 = vmatpush1.msra.mxu0 0.0
    %2430 = vmatprep.subr.mxu0 0.0
    %2431 = vmatpush1.msra.mxu0 0.0
    %2432 = vmatprep.subr.mxu0 0.0
    %2433 = vmatpush1.msra.mxu0 %v2102
    %2434 = vmatprep.subr.mxu0 0.0
    %2435 = vmatpush1.msra.mxu0 %v2093
    %2436 = vmatprep.subr.mxu0 0.0
    %2437 = vmatpush1.msra.mxu0 %v2084
    %2438 = vmatprep.subr.mxu0 0.0
    %2439 = vmatpush1.msra.mxu0 %v2075
    %2440 = vmatprep.subr.mxu0 0.0
    %2441 = vmatpush1.msra.mxu0 %v2066
    %2442 = vmatprep.subr.mxu0 0.0
    %2443 = vmatpush1.msra.mxu0 %v2057
    %2444 = vmatprep.subr.mxu0 0.0
    %2445 = vmatpush1.msra.mxu0 %v2048
    %2446 = vmatprep.subr.mxu0 0.0
    %2447 = vmatpush1.msra.mxu0 %v2039
    %2448 = vmatprep.subr.mxu0 0.0
    %2449 = vmatpush1.msra.mxu0 %v2030
    %2450 = vmatprep.subr.mxu0 0.0
    %2451 = vmatpush2.msra.mxu0 0.0
    %2452 = vmatprep.subr.mxu0 0.0
    %2453 = vmatpush2.msra.mxu0 0.0
    %2454 = vmatprep.subr.mxu0 0.0
    %2455 = vmatpush2.msra.mxu0 0.0
    %2456 = vmatprep.subr.mxu0 0.0
    %2457 = vmatpush2.msra.mxu0 0.0
    %2458 = vmatprep.subr.mxu0 0.0
    %2459 = vmatpush2.msra.mxu0 0.0
    %2460 = vmatprep.subr.mxu0 0.0
    %2461 = vmatpush2.msra.mxu0 0.0
    %2462 = vmatprep.subr.mxu0 0.0
    %2463 = vmatpush2.msra.mxu0 0.0
    %2464 = vmatprep.subr.mxu0 0.0
    %2465 = vmatpush2.msra.mxu0 0.0
    %2466 = vmatprep.subr.mxu0 0.0
    %2467 = vmatpush2.msra.mxu0 0.0
    %2468 = vmatprep.subr.mxu0 0.0
    %2469 = vmatpush2.msra.mxu0 0.0
    %2470 = vmatprep.subr.mxu0 0.0
    %2471 = vmatpush2.msra.mxu0 0.0
    %2472 = vmatprep.subr.mxu0 0.0
    %2473 = vmatpush2.msra.mxu0 0.0
    %2474 = vmatprep.subr.mxu0 0.0
    %2475 = vmatpush2.msra.mxu0 0.0
    %2476 = vmatprep.subr.mxu0 0.0
    %2477 = vmatpush2.msra.mxu0 0.0
    %2478 = vmatprep.subr.mxu0 0.0
    %2479 = vmatpush2.msra.mxu0 0.0
    %2480 = vmatprep.subr.mxu0 0.0
    %2481 = vmatpush2.msra.mxu0 0.0
    %2482 = vmatprep.mubr.f32.mxu0 0.0
    %2483 = vmatmul.mubr.f32.gmra.mxu0 %v2105
    %v2484 = vpop.f32.mrf.mxu0
    %v2485 = vadd.f32 0.0, %v2484
    %v2486 = vpop.f32.mrf.mxu0
    %2487 = vmatprep.mubr.f32.mxu0 0.0
    %2488 = vmatmul.mubr.f32.gmra.mxu0 %v2108
    %v2489 = vpop.f32.mrf.mxu0
    %v2490 = vadd.f32 0.0, %v2489
    %v2491 = vpop.f32.mrf.mxu0
    %2492 = vdwg.mxu0
    %vm2493 = vcmask 261120
    %2494 = vst.msk [vmem:[%s4] sm:$0xff] %vm2493, %v2177
    %2495 = vst.msk [vmem:[%s4 + $0x40] sm:$0xff] %vm2493, %v2183
    %2498 = vrot.lane.b32.xlu0 %v2177, 126
    %v2499 = vpop.permute.xlu0 %2498
    %2500 = vrot.lane.b32.xlu0 %v2183, 126
    %v2501 = vpop.permute.xlu0 %2500
    %vm2504 = vcmask 523520
    %2505 = vst.msk [vmem:[%s4] sm:$0xff] %vm2504, %v2499
    %2506 = vst.msk [vmem:[%s4 + $0x40] sm:$0xff] %vm2504, %v2501
    %2507 = vrot.lane.b32.xlu0 %v2177, 124
    %v2508 = vpop.permute.xlu0 %2507
    %2509 = vrot.lane.b32.xlu0 %v2183, 124
    %v2510 = vpop.permute.xlu0 %2509
    %vm2513 = vcmask 785920
    %2514 = vst.msk [vmem:[%s4] sm:$0xff] %vm2513, %v2508
    %2515 = vst.msk [vmem:[%s4 + $0x40] sm:$0xff] %vm2513, %v2510
    %2518 = vrot.lane.b32.xlu0 %v2177, 122
    %v2519 = vpop.permute.xlu0 %2518
    %2520 = vrot.lane.b32.xlu0 %v2179, 122
    %v2521 = vpop.permute.xlu0 %2520
    %2522 = vrot.lane.b32.xlu0 %v2183, 122
    %v2523 = vpop.permute.xlu0 %2522
    %2524 = vrot.lane.b32.xlu0 %v2185, 122
    %v2525 = vpop.permute.xlu0 %2524
    %vm2526 = vcmask 998400
    %v2527 = vsel %vm2526, %v2519, %v2521
    %v2528 = vsel %vm2526, %v2523, %v2525
    %vm2531 = vcmask 1048320
    %2532 = vst.msk [vmem:[%s4] sm:$0xff] %vm2531, %v2527
    %2533 = vst.msk [vmem:[%s4 + $0x40] sm:$0xff] %vm2531, %v2528
    %2534 = vrot.lane.b32.xlu0 %v2179, 120
    %v2535 = vpop.permute.xlu0 %2534
    %2536 = vrot.lane.b32.xlu0 %v2185, 120
    %v2537 = vpop.permute.xlu0 %2536
    %2540 = vst.msk [vmem:[%s4 + $0x8] sm:$0xff] %vm2493, %v2535
    %2541 = vst.msk [vmem:[%s4 + $0x48] sm:$0xff] %vm2493, %v2537
    %2542 = vrot.lane.b32.xlu0 %v2179, 118
    %v2543 = vpop.permute.xlu0 %2542
    %2544 = vrot.lane.b32.xlu0 %v2185, 118
    %v2545 = vpop.permute.xlu0 %2544
    %2548 = vst.msk [vmem:[%s4 + $0x8] sm:$0xff] %vm2504, %v2543
    %2549 = vst.msk [vmem:[%s4 + $0x48] sm:$0xff] %vm2504, %v2545
    %2550 = vrot.lane.b32.xlu0 %v2179, 116
    %v2551 = vpop.permute.xlu0 %2550
    %2552 = vrot.lane.b32.xlu0 %v2185, 116
    %v2553 = vpop.permute.xlu0 %2552
    %2556 = vst.msk [vmem:[%s4 + $0x8] sm:$0xff] %vm2513, %v2551
    %2557 = vst.msk [vmem:[%s4 + $0x48] sm:$0xff] %vm2513, %v2553
    %2560 = vrot.lane.b32.xlu0 %v2179, 114
    %v2561 = vpop.permute.xlu0 %2560
    %2562 = vrot.lane.b32.xlu0 %v2254, 114
    %v2563 = vpop.permute.xlu0 %2562
    %2564 = vrot.lane.b32.xlu0 %v2185, 114
    %v2565 = vpop.permute.xlu0 %2564
    %2566 = vrot.lane.b32.xlu0 %v2260, 114
    %v2567 = vpop.permute.xlu0 %2566
    %vm2568 = vcmask 932864
    %v2569 = vsel %vm2568, %v2561, %v2563
    %v2570 = vsel %vm2568, %v2565, %v2567
    %2573 = vst.msk [vmem:[%s4 + $0x8] sm:$0xff] %vm2531, %v2569
    %2574 = vst.msk [vmem:[%s4 + $0x48] sm:$0xff] %vm2531, %v2570
    %2575 = vrot.lane.b32.xlu0 %v2254, 112
    %v2576 = vpop.permute.xlu0 %2575
    %2577 = vrot.lane.b32.xlu0 %v2260, 112
    %v2578 = vpop.permute.xlu0 %2577
    %2581 = vst.msk [vmem:[%s4 + $0x10] sm:$0xff] %vm2493, %v2576
    %2582 = vst.msk [vmem:[%s4 + $0x50] sm:$0xff] %vm2493, %v2578
    %2583 = vrot.lane.b32.xlu0 %v2254, 110
    %v2584 = vpop.permute.xlu0 %2583
    %2585 = vrot.lane.b32.xlu0 %v2260, 110
    %v2586 = vpop.permute.xlu0 %2585
    %2589 = vst.msk [vmem:[%s4 + $0x10] sm:$0xff] %vm2504, %v2584
    %2590 = vst.msk [vmem:[%s4 + $0x50] sm:$0xff] %vm2504, %v2586
    %2591 = vrot.lane.b32.xlu0 %v2254, 108
    %v2592 = vpop.permute.xlu0 %2591
    %2593 = vrot.lane.b32.xlu0 %v2260, 108
    %v2594 = vpop.permute.xlu0 %2593
    %2597 = vst.msk [vmem:[%s4 + $0x10] sm:$0xff] %vm2513, %v2592
    %2598 = vst.msk [vmem:[%s4 + $0x50] sm:$0xff] %vm2513, %v2594
    %2601 = vrot.lane.b32.xlu0 %v2254, 106
    %v2602 = vpop.permute.xlu0 %2601
    %2603 = vrot.lane.b32.xlu0 %v2256, 106
    %v2604 = vpop.permute.xlu0 %2603
    %2605 = vrot.lane.b32.xlu0 %v2260, 106
    %v2606 = vpop.permute.xlu0 %2605
    %2607 = vrot.lane.b32.xlu0 %v2262, 106
    %v2608 = vpop.permute.xlu0 %2607
    %vm2609 = vcmask 867328
    %v2610 = vsel %vm2609, %v2602, %v2604
    %v2611 = vsel %vm2609, %v2606, %v2608
    %2614 = vst.msk [vmem:[%s4 + $0x10] sm:$0xff] %vm2531, %v2610
    %2615 = vst.msk [vmem:[%s4 + $0x50] sm:$0xff] %vm2531, %v2611
    %2616 = vrot.lane.b32.xlu0 %v2256, 104
    %v2617 = vpop.permute.xlu0 %2616
    %2618 = vrot.lane.b32.xlu0 %v2262, 104
    %v2619 = vpop.permute.xlu0 %2618
    %2622 = vst.msk [vmem:[%s4 + $0x18] sm:$0xff] %vm2493, %v2617
    %2623 = vst.msk [vmem:[%s4 + $0x58] sm:$0xff] %vm2493, %v2619
    %2624 = vrot.lane.b32.xlu0 %v2256, 102
    %v2625 = vpop.permute.xlu0 %2624
    %2626 = vrot.lane.b32.xlu0 %v2262, 102
    %v2627 = vpop.permute.xlu0 %2626
    %2630 = vst.msk [vmem:[%s4 + $0x18] sm:$0xff] %vm2504, %v2625
    %2631 = vst.msk [vmem:[%s4 + $0x58] sm:$0xff] %vm2504, %v2627
    %2632 = vrot.lane.b32.xlu0 %v2256, 100
    %v2633 = vpop.permute.xlu0 %2632
    %2634 = vrot.lane.b32.xlu0 %v2262, 100
    %v2635 = vpop.permute.xlu0 %2634
    %2638 = vst.msk [vmem:[%s4 + $0x18] sm:$0xff] %vm2513, %v2633
    %2639 = vst.msk [vmem:[%s4 + $0x58] sm:$0xff] %vm2513, %v2635
    %2642 = vrot.lane.b32.xlu0 %v2256, 98
    %v2643 = vpop.permute.xlu0 %2642
    %2644 = vrot.lane.b32.xlu0 %v2331, 98
    %v2645 = vpop.permute.xlu0 %2644
    %2646 = vrot.lane.b32.xlu0 %v2262, 98
    %v2647 = vpop.permute.xlu0 %2646
    %2648 = vrot.lane.b32.xlu0 %v2337, 98
    %v2649 = vpop.permute.xlu0 %2648
    %vm2650 = vcmask 801792
    %v2651 = vsel %vm2650, %v2643, %v2645
    %v2652 = vsel %vm2650, %v2647, %v2649
    %2655 = vst.msk [vmem:[%s4 + $0x18] sm:$0xff] %vm2531, %v2651
    %2656 = vst.msk [vmem:[%s4 + $0x58] sm:$0xff] %vm2531, %v2652
    %2657 = vrot.lane.b32.xlu0 %v2331, 96
    %v2658 = vpop.permute.xlu0 %2657
    %2659 = vrot.lane.b32.xlu0 %v2337, 96
    %v2660 = vpop.permute.xlu0 %2659
    %2663 = vst.msk [vmem:[%s4 + $0x20] sm:$0xff] %vm2493, %v2658
    %2664 = vst.msk [vmem:[%s4 + $0x60] sm:$0xff] %vm2493, %v2660
    %2665 = vrot.lane.b32.xlu0 %v2331, 94
    %v2666 = vpop.permute.xlu0 %2665
    %2667 = vrot.lane.b32.xlu0 %v2337, 94
    %v2668 = vpop.permute.xlu0 %2667
    %2671 = vst.msk [vmem:[%s4 + $0x20] sm:$0xff] %vm2504, %v2666
    %2672 = vst.msk [vmem:[%s4 + $0x60] sm:$0xff] %vm2504, %v2668
    %2675 = vrot.lane.b32.xlu0 %v2331, 92
    %v2676 = vpop.permute.xlu0 %2675
    %2677 = vrot.lane.b32.xlu0 %v2333, 92
    %v2678 = vpop.permute.xlu0 %2677
    %2679 = vrot.lane.b32.xlu0 %v2337, 92
    %v2680 = vpop.permute.xlu0 %2679
    %2681 = vrot.lane.b32.xlu0 %v2339, 92
    %v2682 = vpop.permute.xlu0 %2681
    %v2683 = vsel %vm1788, %v2676, %v2678
    %v2684 = vsel %vm1788, %v2680, %v2682
    %2687 = vst.msk [vmem:[%s4 + $0x20] sm:$0xff] %vm2513, %v2683
    %2688 = vst.msk [vmem:[%s4 + $0x60] sm:$0xff] %vm2513, %v2684
    %2689 = vrot.lane.b32.xlu0 %v2333, 90
    %v2690 = vpop.permute.xlu0 %2689
    %2691 = vrot.lane.b32.xlu0 %v2339, 90
    %v2692 = vpop.permute.xlu0 %2691
    %2695 = vst.msk [vmem:[%s4 + $0x20] sm:$0xff] %vm2531, %v2690
    %2696 = vst.msk [vmem:[%s4 + $0x60] sm:$0xff] %vm2531, %v2692
    %2697 = vrot.lane.b32.xlu0 %v2333, 88
    %v2698 = vpop.permute.xlu0 %2697
    %2699 = vrot.lane.b32.xlu0 %v2339, 88
    %v2700 = vpop.permute.xlu0 %2699
    %2703 = vst.msk [vmem:[%s4 + $0x28] sm:$0xff] %vm2493, %v2698
    %2704 = vst.msk [vmem:[%s4 + $0x68] sm:$0xff] %vm2493, %v2700
    %2705 = vrot.lane.b32.xlu0 %v2333, 86
    %v2706 = vpop.permute.xlu0 %2705
    %2707 = vrot.lane.b32.xlu0 %v2339, 86
    %v2708 = vpop.permute.xlu0 %2707
    %2711 = vst.msk [vmem:[%s4 + $0x28] sm:$0xff] %vm2504, %v2706
    %2712 = vst.msk [vmem:[%s4 + $0x68] sm:$0xff] %vm2504, %v2708
    %2715 = vrot.lane.b32.xlu0 %v2333, 84
    %v2716 = vpop.permute.xlu0 %2715
    %2717 = vrot.lane.b32.xlu0 %v2408, 84
    %v2718 = vpop.permute.xlu0 %2717
    %2719 = vrot.lane.b32.xlu0 %v2339, 84
    %v2720 = vpop.permute.xlu0 %2719
    %2721 = vrot.lane.b32.xlu0 %v2414, 84
    %v2722 = vpop.permute.xlu0 %2721
    %vm2723 = vcmask 687104
    %v2724 = vsel %vm2723, %v2716, %v2718
    %v2725 = vsel %vm2723, %v2720, %v2722
    %2728 = vst.msk [vmem:[%s4 + $0x28] sm:$0xff] %vm2513, %v2724
    %2729 = vst.msk [vmem:[%s4 + $0x68] sm:$0xff] %vm2513, %v2725
    %2730 = vrot.lane.b32.xlu0 %v2408, 82
    %v2731 = vpop.permute.xlu0 %2730
    %2732 = vrot.lane.b32.xlu0 %v2414, 82
    %v2733 = vpop.permute.xlu0 %2732
    %2736 = vst.msk [vmem:[%s4 + $0x28] sm:$0xff] %vm2531, %v2731
    %2737 = vst.msk [vmem:[%s4 + $0x68] sm:$0xff] %vm2531, %v2733
    %2738 = vrot.lane.b32.xlu0 %v2408, 80
    %v2739 = vpop.permute.xlu0 %2738
    %2740 = vrot.lane.b32.xlu0 %v2414, 80
    %v2741 = vpop.permute.xlu0 %2740
    %2744 = vst.msk [vmem:[%s4 + $0x30] sm:$0xff] %vm2493, %v2739
    %2745 = vst.msk [vmem:[%s4 + $0x70] sm:$0xff] %vm2493, %v2741
    %2746 = vrot.lane.b32.xlu0 %v2408, 78
    %v2747 = vpop.permute.xlu0 %2746
    %2748 = vrot.lane.b32.xlu0 %v2414, 78
    %v2749 = vpop.permute.xlu0 %2748
    %2752 = vst.msk [vmem:[%s4 + $0x30] sm:$0xff] %vm2504, %v2747
    %2753 = vst.msk [vmem:[%s4 + $0x70] sm:$0xff] %vm2504, %v2749
    %2756 = vrot.lane.b32.xlu0 %v2408, 76
    %v2757 = vpop.permute.xlu0 %2756
    %2758 = vrot.lane.b32.xlu0 %v2410, 76
    %v2759 = vpop.permute.xlu0 %2758
    %2760 = vrot.lane.b32.xlu0 %v2414, 76
    %v2761 = vpop.permute.xlu0 %2760
    %2762 = vrot.lane.b32.xlu0 %v2416, 76
    %v2763 = vpop.permute.xlu0 %2762
    %vm2764 = vcmask 621568
    %v2765 = vsel %vm2764, %v2757, %v2759
    %v2766 = vsel %vm2764, %v2761, %v2763
    %2769 = vst.msk [vmem:[%s4 + $0x30] sm:$0xff] %vm2513, %v2765
    %2770 = vst.msk [vmem:[%s4 + $0x70] sm:$0xff] %vm2513, %v2766
    %2771 = vrot.lane.b32.xlu0 %v2410, 74
    %v2772 = vpop.permute.xlu0 %2771
    %2773 = vrot.lane.b32.xlu0 %v2416, 74
    %v2774 = vpop.permute.xlu0 %2773
    %2777 = vst.msk [vmem:[%s4 + $0x30] sm:$0xff] %vm2531, %v2772
    %2778 = vst.msk [vmem:[%s4 + $0x70] sm:$0xff] %vm2531, %v2774
    %2779 = vrot.lane.b32.xlu0 %v2410, 72
    %v2780 = vpop.permute.xlu0 %2779
    %2781 = vrot.lane.b32.xlu0 %v2416, 72
    %v2782 = vpop.permute.xlu0 %2781
    %2785 = vst.msk [vmem:[%s4 + $0x38] sm:$0xff] %vm2493, %v2780
    %2786 = vst.msk [vmem:[%s4 + $0x78] sm:$0xff] %vm2493, %v2782
    %2787 = vrot.lane.b32.xlu0 %v2410, 70
    %v2788 = vpop.permute.xlu0 %2787
    %2789 = vrot.lane.b32.xlu0 %v2416, 70
    %v2790 = vpop.permute.xlu0 %2789
    %2793 = vst.msk [vmem:[%s4 + $0x38] sm:$0xff] %vm2504, %v2788
    %2794 = vst.msk [vmem:[%s4 + $0x78] sm:$0xff] %vm2504, %v2790
    %2797 = vrot.lane.b32.xlu0 %v2410, 68
    %v2798 = vpop.permute.xlu0 %2797
    %2799 = vrot.lane.b32.xlu0 %v2485, 68
    %v2800 = vpop.permute.xlu0 %2799
    %2801 = vrot.lane.b32.xlu0 %v2416, 68
    %v2802 = vpop.permute.xlu0 %2801
    %2803 = vrot.lane.b32.xlu0 %v2490, 68
    %v2804 = vpop.permute.xlu0 %2803
    %vm2805 = vcmask 556032
    %v2806 = vsel %vm2805, %v2798, %v2800
    %v2807 = vsel %vm2805, %v2802, %v2804
    %2810 = vst.msk [vmem:[%s4 + $0x38] sm:$0xff] %vm2513, %v2806
    %2811 = vst.msk [vmem:[%s4 + $0x78] sm:$0xff] %vm2513, %v2807
    %2812 = vrot.lane.b32.xlu0 %v2485, 66
    %v2813 = vpop.permute.xlu0 %2812
    %2814 = vrot.lane.b32.xlu0 %v2490, 66
    %v2815 = vpop.permute.xlu0 %2814
    %2818 = vst.msk [vmem:[%s4 + $0x38] sm:$0xff] %vm2531, %v2813
    %2819 = vst.msk [vmem:[%s4 + $0x78] sm:$0xff] %vm2531, %v2815
    %v2820 = vld [vmem:[%s4] sm:$0xff]
    %v2821 = vld [vmem:[%s4 + $0x8] sm:$0xff]
    %v2822 = vld [vmem:[%s4 + $0x10] sm:$0xff]
    %v2823 = vld [vmem:[%s4 + $0x18] sm:$0xff]
    %v2824 = vld [vmem:[%s4 + $0x20] sm:$0xff]
    %v2825 = vld [vmem:[%s4 + $0x28] sm:$0xff]
    %v2826 = vld [vmem:[%s4 + $0x30] sm:$0xff]
    %v2827 = vld [vmem:[%s4 + $0x38] sm:$0xff]
    %v2828 = vld [vmem:[%s4 + $0x40] sm:$0xff]
    %v2829 = vld [vmem:[%s4 + $0x48] sm:$0xff]
    %v2830 = vld [vmem:[%s4 + $0x50] sm:$0xff]
    %v2831 = vld [vmem:[%s4 + $0x58] sm:$0xff]
    %v2832 = vld [vmem:[%s4 + $0x60] sm:$0xff]
    %v2833 = vld [vmem:[%s4 + $0x68] sm:$0xff]
    %v2834 = vld [vmem:[%s4 + $0x70] sm:$0xff]
    %v2835 = vld [vmem:[%s4 + $0x78] sm:$0xff]
    %v2836 = vadd.f32 %v2820, %v2821
    %v2837 = vadd.f32 %v2836, %v2822
    %v2838 = vadd.f32 %v2837, %v2823
    %v2839 = vadd.f32 %v2838, %v2824
    %v2840 = vadd.f32 %v2839, %v2825
    %v2841 = vadd.f32 %v2840, %v2826
    %v2842 = vadd.f32 %v2841, %v2827
    %2843 = vadd.xlane.f32.xlu0 %v2842
    %v2844 = vpop.xlane.xlu0 %2843
    %v2845 = vadd.f32 %v2828, %v2829
    %v2846 = vadd.f32 %v2845, %v2830
    %v2847 = vadd.f32 %v2846, %v2831
    %v2848 = vadd.f32 %v2847, %v2832
    %v2849 = vadd.f32 %v2848, %v2833
    %v2850 = vadd.f32 %v2849, %v2834
    %v2851 = vadd.f32 %v2850, %v2835
    %2852 = vadd.xlane.f32.xlu0 %v2851
    %v2853 = vpop.xlane.xlu0 %2852
    %v2854 = vmul.f32 %v2844, 0.0009765625
    %v2855 = vmul.f32 %v2853, 0.0009765625
    %v2856 = vmul.f32 %v2820, %v2820
    %v2857 = vmul.f32 %v2821, %v2821
    %v2858 = vmul.f32 %v2822, %v2822
    %v2859 = vmul.f32 %v2823, %v2823
    %v2860 = vmul.f32 %v2824, %v2824
    %v2861 = vmul.f32 %v2825, %v2825
    %v2862 = vmul.f32 %v2826, %v2826
    %v2863 = vmul.f32 %v2827, %v2827
    %v2864 = vmul.f32 %v2828, %v2828
    %v2865 = vmul.f32 %v2829, %v2829
    %v2866 = vmul.f32 %v2830, %v2830
    %v2867 = vmul.f32 %v2831, %v2831
    %v2868 = vmul.f32 %v2832, %v2832
    %v2869 = vmul.f32 %v2833, %v2833
    %v2870 = vmul.f32 %v2834, %v2834
    %v2871 = vmul.f32 %v2835, %v2835
    %v2872 = vadd.f32 %v2856, %v2857
    %v2873 = vadd.f32 %v2872, %v2858
    %v2874 = vadd.f32 %v2873, %v2859
    %v2875 = vadd.f32 %v2874, %v2860
    %v2876 = vadd.f32 %v2875, %v2861
    %v2877 = vadd.f32 %v2876, %v2862
    %v2878 = vadd.f32 %v2877, %v2863
    %2879 = vadd.xlane.f32.xlu0 %v2878
    %v2880 = vpop.xlane.xlu0 %2879
    %v2881 = vadd.f32 %v2864, %v2865
    %v2882 = vadd.f32 %v2881, %v2866
    %v2883 = vadd.f32 %v2882, %v2867
    %v2884 = vadd.f32 %v2883, %v2868
    %v2885 = vadd.f32 %v2884, %v2869
    %v2886 = vadd.f32 %v2885, %v2870
    %v2887 = vadd.f32 %v2886, %v2871
    %2888 = vadd.xlane.f32.xlu0 %v2887
    %v2889 = vpop.xlane.xlu0 %2888
    %v2890 = vmul.f32 %v2880, 0.0009765625
    %v2891 = vmul.f32 %v2889, 0.0009765625
    %v2892 = vmul.f32 %v2854, %v2854
    %v2893 = vmul.f32 %v2855, %v2855
    %v2894 = vsub.f32 %v2890, %v2892
    %v2895 = vsub.f32 %v2891, %v2893
    %v2896 = vmax.f32 %v2894, 0.0
    %v2897 = vmax.f32 %v2895, 0.0
    %v2898 = vsub.f32 %v2820, %v2854
    %v2899 = vsub.f32 %v2821, %v2854
    %v2900 = vsub.f32 %v2822, %v2854
    %v2901 = vsub.f32 %v2823, %v2854
    %v2902 = vsub.f32 %v2824, %v2854
    %v2903 = vsub.f32 %v2825, %v2854
    %v2904 = vsub.f32 %v2826, %v2854
    %v2905 = vsub.f32 %v2827, %v2854
    %v2906 = vsub.f32 %v2828, %v2855
    %v2907 = vsub.f32 %v2829, %v2855
    %v2908 = vsub.f32 %v2830, %v2855
    %v2909 = vsub.f32 %v2831, %v2855
    %v2910 = vsub.f32 %v2832, %v2855
    %v2911 = vsub.f32 %v2833, %v2855
    %v2912 = vsub.f32 %v2834, %v2855
    %v2913 = vsub.f32 %v2835, %v2855
    %v2914 = vadd.f32 %v2896, 1e-05
    %v2915 = vadd.f32 %v2897, 1e-05
    %v2916 = vrsqrt.pop %v2914
    %v2917 = vrsqrt.pop %v2915
    %v2918 = vmul.f32 %v2898, %v2916
    %v2919 = vmul.f32 %v2899, %v2916
    %v2920 = vmul.f32 %v2900, %v2916
    %v2921 = vmul.f32 %v2901, %v2916
    %v2922 = vmul.f32 %v2902, %v2916
    %v2923 = vmul.f32 %v2903, %v2916
    %v2924 = vmul.f32 %v2904, %v2916
    %v2925 = vmul.f32 %v2905, %v2916
    %v2926 = vmul.f32 %v2906, %v2917
    %v2927 = vmul.f32 %v2907, %v2917
    %v2928 = vmul.f32 %v2908, %v2917
    %v2929 = vmul.f32 %v2909, %v2917
    %v2930 = vmul.f32 %v2910, %v2917
    %v2931 = vmul.f32 %v2911, %v2917
    %v2932 = vmul.f32 %v2912, %v2917
    %v2933 = vmul.f32 %v2913, %v2917
    %vm2934 = vcmp.gt.f32.partialorder %v2918, 0.0
    %vm2935 = vcmp.gt.f32.partialorder %v2919, 0.0
    %vm2936 = vcmp.gt.f32.partialorder %v2920, 0.0
    %vm2937 = vcmp.gt.f32.partialorder %v2921, 0.0
    %vm2938 = vcmp.gt.f32.partialorder %v2922, 0.0
    %vm2939 = vcmp.gt.f32.partialorder %v2923, 0.0
    %vm2940 = vcmp.gt.f32.partialorder %v2924, 0.0
    %vm2941 = vcmp.gt.f32.partialorder %v2925, 0.0
    %vm2942 = vcmp.gt.f32.partialorder %v2926, 0.0
    %vm2943 = vcmp.gt.f32.partialorder %v2927, 0.0
    %vm2944 = vcmp.gt.f32.partialorder %v2928, 0.0
    %vm2945 = vcmp.gt.f32.partialorder %v2929, 0.0
    %vm2946 = vcmp.gt.f32.partialorder %v2930, 0.0
    %vm2947 = vcmp.gt.f32.partialorder %v2931, 0.0
    %vm2948 = vcmp.gt.f32.partialorder %v2932, 0.0
    %vm2949 = vcmp.gt.f32.partialorder %v2933, 0.0
    %v2950 = vmul.f32 %v2918, 1.442695
    %v2951 = vpow.pop %v2950
    %v2952 = vmul.f32 %v2919, 1.442695
    %v2953 = vpow.pop %v2952
    %v2954 = vmul.f32 %v2920, 1.442695
    %v2955 = vpow.pop %v2954
    %v2956 = vmul.f32 %v2921, 1.442695
    %v2957 = vpow.pop %v2956
    %v2958 = vmul.f32 %v2922, 1.442695
    %v2959 = vpow.pop %v2958
    %v2960 = vmul.f32 %v2923, 1.442695
    %v2961 = vpow.pop %v2960
    %v2962 = vmul.f32 %v2924, 1.442695
    %v2963 = vpow.pop %v2962
    %v2964 = vmul.f32 %v2925, 1.442695
    %v2965 = vpow.pop %v2964
    %v2966 = vmul.f32 %v2926, 1.442695
    %v2967 = vpow.pop %v2966
    %v2968 = vmul.f32 %v2927, 1.442695
    %v2969 = vpow.pop %v2968
    %v2970 = vmul.f32 %v2928, 1.442695
    %v2971 = vpow.pop %v2970
    %v2972 = vmul.f32 %v2929, 1.442695
    %v2973 = vpow.pop %v2972
    %v2974 = vmul.f32 %v2930, 1.442695
    %v2975 = vpow.pop %v2974
    %v2976 = vmul.f32 %v2931, 1.442695
    %v2977 = vpow.pop %v2976
    %v2978 = vmul.f32 %v2932, 1.442695
    %v2979 = vpow.pop %v2978
    %v2980 = vmul.f32 %v2933, 1.442695
    %v2981 = vpow.pop %v2980
    %v2982 = vsub.f32 %v2951, 1.0
    %v2983 = vsub.f32 %v2953, 1.0
    %v2984 = vsub.f32 %v2955, 1.0
    %v2985 = vsub.f32 %v2957, 1.0
    %v2986 = vsub.f32 %v2959, 1.0
    %v2987 = vsub.f32 %v2961, 1.0
    %v2988 = vsub.f32 %v2963, 1.0
    %v2989 = vsub.f32 %v2965, 1.0
    %v2990 = vsub.f32 %v2967, 1.0
    %v2991 = vsub.f32 %v2969, 1.0
    %v2992 = vsub.f32 %v2971, 1.0
    %v2993 = vsub.f32 %v2973, 1.0
    %v2994 = vsub.f32 %v2975, 1.0
    %v2995 = vsub.f32 %v2977, 1.0
    %v2996 = vsub.f32 %v2979, 1.0
    %v2997 = vsub.f32 %v2981, 1.0
    %v2998 = vsel %vm2934, %v2918, %v2982
    %v2999 = vsel %vm2935, %v2919, %v2983
    %v3000 = vsel %vm2936, %v2920, %v2984
    %v3001 = vsel %vm2937, %v2921, %v2985
    %v3002 = vsel %vm2938, %v2922, %v2986
    %v3003 = vsel %vm2939, %v2923, %v2987
    %v3004 = vsel %vm2940, %v2924, %v2988
    %v3005 = vsel %vm2941, %v2925, %v2989
    %v3006 = vsel %vm2942, %v2926, %v2990
    %v3007 = vsel %vm2943, %v2927, %v2991
    %v3008 = vsel %vm2944, %v2928, %v2992
    %v3009 = vsel %vm2945, %v2929, %v2993
    %v3010 = vsel %vm2946, %v2930, %v2994
    %v3011 = vsel %vm2947, %v2931, %v2995
    %v3012 = vsel %vm2948, %v2932, %v2996
    %v3013 = vsel %vm2949, %v2933, %v2997
    %3014 = vst [vmem:[%s4] sm:$0xff] %v2998
    %3015 = vst [vmem:[%s4 + $0x8] sm:$0xff] %v2999
    %3016 = vst [vmem:[%s4 + $0x10] sm:$0xff] %v3000
    %3017 = vst [vmem:[%s4 + $0x18] sm:$0xff] %v3001
    %3018 = vst [vmem:[%s4 + $0x20] sm:$0xff] %v3002
    %3019 = vst [vmem:[%s4 + $0x28] sm:$0xff] %v3003
    %3020 = vst [vmem:[%s4 + $0x30] sm:$0xff] %v3004
    %3021 = vst [vmem:[%s4 + $0x38] sm:$0xff] %v3005
    %3022 = vst [vmem:[%s4 + $0x40] sm:$0xff] %v3006
    %3023 = vst [vmem:[%s4 + $0x48] sm:$0xff] %v3007
    %3024 = vst [vmem:[%s4 + $0x50] sm:$0xff] %v3008
    %3025 = vst [vmem:[%s4 + $0x58] sm:$0xff] %v3009
    %3026 = vst [vmem:[%s4 + $0x60] sm:$0xff] %v3010
    %3027 = vst [vmem:[%s4 + $0x68] sm:$0xff] %v3011
    %3028 = vst [vmem:[%s4 + $0x70] sm:$0xff] %v3012
    %3029 = vst [vmem:[%s4 + $0x78] sm:$0xff] %v3013
    // Predicated region
    $region22: #{ginka_input_forward.1} parent=1 // pred_check
      _
    $region23: #{ginka_input_forward.1} parent=1 // pred_check_branch
      %3031 = sbr.rel (0) target = $region25
    $region24: #{ginka_input_forward.1} parent=1 // pred_region
      _
    $region25: #{ginka_input_forward.1} parent=1 // pred_fallthru
      _
    // Predicated region
    $region26: #{ginka_input_forward.1} parent=1 // pred_check
      _
    $region27: #{ginka_input_forward.1} parent=1 // pred_check_branch
      %3033 = sbr.rel (0) target = $region29
    $region28: #{ginka_input_forward.1} parent=1 // pred_region
      _
    $region29: #{ginka_input_forward.1} parent=1 // pred_fallthru
      _
    %3034 = vsyncpa [#allocation5], 1

</llo_original>
